<compile_context>
chip_gen: v7x
topology: tpu7x:2x2x1
jax: 0.10.0
libtpu: 0.0.40
codegen_flags: <defaults>
</compile_context>

<pallas_src>
import math

import jax
import jax.numpy as jnp
from jax.experimental import pallas as pl
from jax.experimental.pallas import tpu as pltpu


# ----------------------------------------------------------------------------
# Fused GRU kernel: full history + all weights resident, T-step recurrence inside.
# ----------------------------------------------------------------------------
def _context_gru_kernel(pa_ref, pr_ref, px_ref,
                        wa_ref, wr_ref, wx_ref, wh_ref,
                        br_ref, bz_ref, bin_ref, bhn_ref,
                        o_ref):
    # pa: [T*B, A], pr: [T*B, 1], px: [T*B, O]   (time-major, batch padded to 8k)
    # wa: [3, A, H], wr: [3, 1, H], wx: [3, O, H], wh: [3, H, H]  (gate order r,z,n)
    # biases: [1, H] each; b_r = b_ir + b_hr, b_z = b_iz + b_hz (pre-combined, exact)
    tb = pa_ref.shape[0]
    B, H = o_ref.shape
    T = tb // B

    pa = pa_ref[...]
    pr = pr_ref[...]
    px = px_ref[...]

    # Loop-invariant recurrence weights / bias.
    wh_r, wh_z, wh_n = wh_ref[0], wh_ref[1], wh_ref[2]
    b_hn = bhn_ref[...]

    def in_proj(g, bias_ref):
        # concat([pa, pr, px]) @ W_ig.T + bias == pa@Wa_g + pr*wr_g + px@Wx_g + bias
        return (jnp.dot(pa, wa_ref[g], preferred_element_type=jnp.float32)
                + pr * wr_ref[g]
                + jnp.dot(px, wx_ref[g], preferred_element_type=jnp.float32)
                + bias_ref[...])

    # One batched (T*B)-row MXU pass per gate, hoisted off the sequential path.
    gx_r = in_proj(0, br_ref)     # includes b_ir + b_hr
    gx_z = in_proj(1, bz_ref)     # includes b_iz + b_hz
    gx_n = in_proj(2, bin_ref)    # includes b_in

    h = jnp.zeros((B, H), jnp.float32)
    for t in range(T):            # static trip count; slices are sublane-aligned (B % 8 == 0)
        lo = t * B
        gh_r = jnp.dot(h, wh_r, preferred_element_type=jnp.float32)
        gh_z = jnp.dot(h, wh_z, preferred_element_type=jnp.float32)
        gh_n = jnp.dot(h, wh_n, preferred_element_type=jnp.float32)
        # PyTorch nn.GRU equations
        r = jax.nn.sigmoid(gx_r[lo:lo + B] + gh_r)
        z = jax.nn.sigmoid(gx_z[lo:lo + B] + gh_z)
        n = jnp.tanh(gx_n[lo:lo + B] + r * (gh_n + b_hn))
        h = (1.0 - z) * n + z * h

    o_ref[...] = h.astype(o_ref.dtype)


def context_gru_pallas(pa_t, pr_t, px_t, wa, wr, wx, wh, b_r, b_z, b_in, b_hn):
    # pa_t: [T, B, A], pr_t: [T, B, 1], px_t: [T, B, O]  (time-major)
    T, B, A = pa_t.shape
    O = px_t.shape[-1]
    H = wh.shape[-1]

    # Pad batch to a multiple of 8 so all per-timestep slices inside the kernel
    # are sublane-tile aligned (no mid-tile relayouts). Padded rows are dropped.
    B_pad = max(8, ((B + 7) // 8) * 8)
    if B_pad != B:
        pad = ((0, 0), (0, B_pad - B), (0, 0))
        pa_t = jnp.pad(pa_t, pad)
        pr_t = jnp.pad(pr_t, pad)
        px_t = jnp.pad(px_t, pad)

    pa2 = pa_t.reshape(T * B_pad, A)
    pr2 = pr_t.reshape(T * B_pad, 1)
    px2 = px_t.reshape(T * B_pad, O)

    def full_spec(shape):
        return pl.BlockSpec(shape, lambda i, n=len(shape): (0,) * n)

    in_arrays = [pa2, pr2, px2, wa, wr, wx, wh, b_r, b_z, b_in, b_hn]
    in_specs = [full_spec(a.shape) for a in in_arrays]

    out = pl.pallas_call(
        _context_gru_kernel,
        out_shape=jax.ShapeDtypeStruct((B_pad, H), jnp.float32),
        grid_spec=pltpu.PrefetchScalarGridSpec(
            num_scalar_prefetch=0,
            grid=(1,),
            in_specs=in_specs,
            out_specs=full_spec((B_pad, H)),
        ),
        compiler_params=pltpu.CompilerParams(
            dimension_semantics=("arbitrary",)),
    )(*in_arrays)
    return out[:B]


# ----------------------------------------------------------------------------
# Module
# ----------------------------------------------------------------------------
class ContextRNNPallas:
    def __init__(self, hidden_dim=50, input_dim=None, history_length=1,
                 action_dim=None, obsr_dim=None, num_layers=1, key=None):
        # TODO(synk): num_layers > 1 not supported; the reference module's
        # init_recurrent() also hard-codes a single-layer (1, B, H) hidden state.
        assert num_layers == 1
        self.hidden_dim = hidden_dim
        self.input_dim = input_dim
        self.hist_length = history_length
        self.action_dim = action_dim
        self.obsr_dim = obsr_dim
        H, D, A, O = hidden_dim, input_dim, action_dim, obsr_dim
        assert D == A + 1 + O

        # PyTorch nn.GRU init: uniform(-1/sqrt(H), 1/sqrt(H)); layout [3H, D]/[3H, H],
        # gate row order (r, z, n).
        bound = 1.0 / math.sqrt(H)
        key, k1, k2, k3, k4 = jax.random.split(key, 5)
        self.w_ih = jax.random.uniform(k1, (3 * H, D), jnp.float32, -bound, bound)
        self.w_hh = jax.random.uniform(k2, (3 * H, H), jnp.float32, -bound, bound)
        self.b_ih = jax.random.uniform(k3, (3 * H,), jnp.float32, -bound, bound)
        self.b_hh = jax.random.uniform(k4, (3 * H,), jnp.float32, -bound, bound)

        # Kernel layout: per-gate, per-input-component, pre-transposed to [Din, Dout].
        wa, wr, wx, wh = [], [], [], []
        for g in range(3):
            wig = self.w_ih[g * H:(g + 1) * H]         # [H, D]
            wa.append(wig[:, :A].T)                    # [A, H]
            wr.append(wig[:, A:A + 1].T)               # [1, H]
            wx.append(wig[:, A + 1:].T)                # [O, H]
            wh.append(self.w_hh[g * H:(g + 1) * H].T)  # [H, H]
        self.wa = jnp.stack(wa)                        # [3, A, H]
        self.wr = jnp.stack(wr)                        # [3, 1, H]
        self.wx = jnp.stack(wx)                        # [3, O, H]
        self.wh = jnp.stack(wh)                        # [3, H, H]
        self.b_r = (self.b_ih[:H] + self.b_hh[:H]).reshape(1, H)
        self.b_z = (self.b_ih[H:2 * H] + self.b_hh[H:2 * H]).reshape(1, H)
        self.b_in = self.b_ih[2 * H:].reshape(1, H)
        self.b_hn = self.b_hh[2 * H:].reshape(1, H)

        # Jit the wrapper so layout plumbing (transpose/pad/reshape/slice) fuses
        # around the single pallas_call.
        self._jit_forward = jax.jit(self._forward_impl)

    def _forward_impl(self, previous_action, previous_reward, pre_x):
        bsize = previous_action.shape[0]
        pacts = previous_action.reshape(bsize, -1, self.action_dim)   # [B, T, A]
        prews = previous_reward.reshape(bsize, -1, 1)                 # [B, T, 1]
        pxs = pre_x.reshape(bsize, -1, self.obsr_dim)                 # [B, T, O]
        # Time-major layout for the kernel (tiny layout plumbing; no in-kernel concat).
        pa_t = jnp.transpose(pacts, (1, 0, 2))
        pr_t = jnp.transpose(prews, (1, 0, 2))
        px_t = jnp.transpose(pxs, (1, 0, 2))
        return context_gru_pallas(pa_t, pr_t, px_t,
                                  self.wa, self.wr, self.wx, self.wh,
                                  self.b_r, self.b_z, self.b_in, self.b_hn)

    def forward(self, data):
        previous_action, previous_reward, pre_x = data[0], data[1], data[2]
        return self._jit_forward(previous_action, previous_reward, pre_x)


# ----------------------------------------------------------------------------
# Pure-JAX reference (independent code path, raw PyTorch-style parameters)
# ----------------------------------------------------------------------------
def reference_forward(model, data):
    previous_action, previous_reward, pre_x = data
    B = previous_action.shape[0]
    H = model.hidden_dim
    pacts = previous_action.reshape(B, -1, model.action_dim)
    prews = previous_reward.reshape(B, -1, 1)
    pxs = pre_x.reshape(B, -1, model.obsr_dim)
    x = jnp.concatenate([pacts, prews, pxs], axis=-1)    # [B, T, D]
    T = x.shape[1]
    h = jnp.zeros((B, H), jnp.float32)
    for t in range(T):
        xt = x[:, t, :]
        gi = xt @ model.w_ih.T + model.b_ih
        gh = h @ model.w_hh.T + model.b_hh
        i_r, i_z, i_n = gi[:, :H], gi[:, H:2 * H], gi[:, 2 * H:]
        h_r, h_z, h_n = gh[:, :H], gh[:, H:2 * H], gh[:, 2 * H:]
        r = jax.nn.sigmoid(i_r + h_r)
        z = jax.nn.sigmoid(i_z + h_z)
        n = jnp.tanh(i_n + r * h_n)
        h = (1.0 - z) * n + z * h
    return h


if __name__ == "__main__":
    batch = 4
    hist = 8            # history_length
    action_dim = 6
    obsr_dim = 11
    hidden_dim = 32
    input_dim = action_dim + 1 + obsr_dim

    key = jax.random.PRNGKey(0)
    key, ka, kr, kx, kp = jax.random.split(key, 5)
    prev_action = jax.random.normal(ka, (batch, hist * action_dim), jnp.float32)
    prev_reward = jax.random.normal(kr, (batch, hist * 1), jnp.float32)
    pre_x = jax.random.normal(kx, (batch, hist * obsr_dim), jnp.float32)

    model = ContextRNNPallas(hidden_dim=hidden_dim, input_dim=input_dim,
                             history_length=hist, action_dim=action_dim,
                             obsr_dim=obsr_dim, num_layers=1, key=kp)

    out = model.forward((prev_action, prev_reward, pre_x))
    out = jax.block_until_ready(out)
    assert out.shape == (batch, hidden_dim)

    ref = reference_forward(model, (prev_action, prev_reward, pre_x))
    assert jnp.allclose(out, ref, rtol=1e-3, atol=1e-3), \
        float(jnp.max(jnp.abs(out - ref)))

    print("KERNEL_OK")
</pallas_src>

<mosaic_0001>
module attributes {stable_mosaic.version = 11 : i64} {
  func.func @_context_gru_kernel(%arg0: i32, %arg1: memref<64x6xf32, #tpu.memory_space<vmem>>, %arg2: memref<64x1xf32, #tpu.memory_space<vmem>>, %arg3: memref<64x11xf32, #tpu.memory_space<vmem>>, %arg4: memref<3x6x32xf32, #tpu.memory_space<vmem>>, %arg5: memref<3x1x32xf32, #tpu.memory_space<vmem>>, %arg6: memref<3x11x32xf32, #tpu.memory_space<vmem>>, %arg7: memref<3x32x32xf32, #tpu.memory_space<vmem>>, %arg8: memref<1x32xf32, #tpu.memory_space<vmem>>, %arg9: memref<1x32xf32, #tpu.memory_space<vmem>>, %arg10: memref<1x32xf32, #tpu.memory_space<vmem>>, %arg11: memref<1x32xf32, #tpu.memory_space<vmem>>, %arg12: memref<8x32xf32, #tpu.memory_space<vmem>>) attributes {dimension_semantics = [#tpu.dimension_semantics<arbitrary>], iteration_bounds = array<i64: 1>, scalar_prefetch = 0 : i64, scratch_operands = 0 : i64, tpu.core_type = #tpu.core_type<tc>, window_params = [{pipeline_mode = #tpu.pipeline_mode<synchronous>, transform_indices = @transform_0, window_bounds = array<i64: 64, 6>}, {pipeline_mode = #tpu.pipeline_mode<synchronous>, transform_indices = @transform_1, window_bounds = array<i64: 64, 1>}, {pipeline_mode = #tpu.pipeline_mode<synchronous>, transform_indices = @transform_2, window_bounds = array<i64: 64, 11>}, {pipeline_mode = #tpu.pipeline_mode<synchronous>, transform_indices = @transform_3, window_bounds = array<i64: 3, 6, 32>}, {pipeline_mode = #tpu.pipeline_mode<synchronous>, transform_indices = @transform_4, window_bounds = array<i64: 3, 1, 32>}, {pipeline_mode = #tpu.pipeline_mode<synchronous>, transform_indices = @transform_5, window_bounds = array<i64: 3, 11, 32>}, {pipeline_mode = #tpu.pipeline_mode<synchronous>, transform_indices = @transform_6, window_bounds = array<i64: 3, 32, 32>}, {pipeline_mode = #tpu.pipeline_mode<synchronous>, transform_indices = @transform_7, window_bounds = array<i64: 1, 32>}, {pipeline_mode = #tpu.pipeline_mode<synchronous>, transform_indices = @transform_8, window_bounds = array<i64: 1, 32>}, {pipeline_mode = #tpu.pipeline_mode<synchronous>, transform_indices = @transform_9, window_bounds = array<i64: 1, 32>}, {pipeline_mode = #tpu.pipeline_mode<synchronous>, transform_indices = @transform_10, window_bounds = array<i64: 1, 32>}, {pipeline_mode = #tpu.pipeline_mode<synchronous>, transform_indices = @transform_11, window_bounds = array<i64: 8, 32>}]} {
    %c0 = arith.constant 0 : index
    %c0_0 = arith.constant 0 : index
    %0 = vector.load %arg1[%c0, %c0_0] : memref<64x6xf32, #tpu.memory_space<vmem>>, vector<64x6xf32>
    %c0_1 = arith.constant 0 : index
    %c0_2 = arith.constant 0 : index
    %1 = vector.load %arg2[%c0_1, %c0_2] : memref<64x1xf32, #tpu.memory_space<vmem>>, vector<64x1xf32>
    %c0_3 = arith.constant 0 : index
    %c0_4 = arith.constant 0 : index
    %2 = vector.load %arg3[%c0_3, %c0_4] : memref<64x11xf32, #tpu.memory_space<vmem>>, vector<64x11xf32>
    %c0_5 = arith.constant 0 : index
    %c0_6 = arith.constant 0 : index
    %c0_7 = arith.constant 0 : index
    %3 = vector.load %arg7[%c0_5, %c0_6, %c0_7] : memref<3x32x32xf32, #tpu.memory_space<vmem>>, vector<1x32x32xf32>
    %4 = vector.shape_cast %3 : vector<1x32x32xf32> to vector<32x32xf32>
    %c1 = arith.constant 1 : index
    %c0_8 = arith.constant 0 : index
    %c0_9 = arith.constant 0 : index
    %5 = vector.load %arg7[%c1, %c0_8, %c0_9] : memref<3x32x32xf32, #tpu.memory_space<vmem>>, vector<1x32x32xf32>
    %6 = vector.shape_cast %5 : vector<1x32x32xf32> to vector<32x32xf32>
    %c2 = arith.constant 2 : index
    %c0_10 = arith.constant 0 : index
    %c0_11 = arith.constant 0 : index
    %7 = vector.load %arg7[%c2, %c0_10, %c0_11] : memref<3x32x32xf32, #tpu.memory_space<vmem>>, vector<1x32x32xf32>
    %8 = vector.shape_cast %7 : vector<1x32x32xf32> to vector<32x32xf32>
    %c0_12 = arith.constant 0 : index
    %c0_13 = arith.constant 0 : index
    %9 = vector.load %arg11[%c0_12, %c0_13] : memref<1x32xf32, #tpu.memory_space<vmem>>, vector<1x32xf32>
    %c0_14 = arith.constant 0 : index
    %c0_15 = arith.constant 0 : index
    %c0_16 = arith.constant 0 : index
    %10 = vector.load %arg4[%c0_14, %c0_15, %c0_16] : memref<3x6x32xf32, #tpu.memory_space<vmem>>, vector<1x6x32xf32>
    %11 = vector.shape_cast %10 : vector<1x6x32xf32> to vector<6x32xf32>
    %cst = arith.constant dense<0.000000e+00> : vector<64x32xf32>
    %12 = tpu.matmul %0, %11, %cst {dimension_numbers = #tpu.dot_dimension_numbers<[1], [0], [0], [1], [0, 0, 1, 1], [], []>} : vector<64x6xf32>, vector<6x32xf32>, vector<64x32xf32> -> vector<64x32xf32>
    %c0_17 = arith.constant 0 : index
    %c0_18 = arith.constant 0 : index
    %c0_19 = arith.constant 0 : index
    %13 = vector.load %arg5[%c0_17, %c0_18, %c0_19] : memref<3x1x32xf32, #tpu.memory_space<vmem>>, vector<1x1x32xf32>
    %14 = vector.shape_cast %13 : vector<1x1x32xf32> to vector<1x32xf32>
    %15 = vector.broadcast %1 : vector<64x1xf32> to vector<64x32xf32>
    %16 = vector.broadcast %14 : vector<1x32xf32> to vector<64x32xf32>
    %17 = arith.mulf %15, %16 : vector<64x32xf32>
    %18 = arith.addf %12, %17 : vector<64x32xf32>
    %c0_20 = arith.constant 0 : index
    %c0_21 = arith.constant 0 : index
    %c0_22 = arith.constant 0 : index
    %19 = vector.load %arg6[%c0_20, %c0_21, %c0_22] : memref<3x11x32xf32, #tpu.memory_space<vmem>>, vector<1x11x32xf32>
    %20 = vector.shape_cast %19 : vector<1x11x32xf32> to vector<11x32xf32>
    %cst_23 = arith.constant dense<0.000000e+00> : vector<64x32xf32>
    %21 = tpu.matmul %2, %20, %cst_23 {dimension_numbers = #tpu.dot_dimension_numbers<[1], [0], [0], [1], [0, 0, 1, 1], [], []>} : vector<64x11xf32>, vector<11x32xf32>, vector<64x32xf32> -> vector<64x32xf32>
    %22 = arith.addf %18, %21 : vector<64x32xf32>
    %c0_24 = arith.constant 0 : index
    %c0_25 = arith.constant 0 : index
    %23 = vector.load %arg8[%c0_24, %c0_25] : memref<1x32xf32, #tpu.memory_space<vmem>>, vector<1x32xf32>
    %24 = vector.broadcast %23 : vector<1x32xf32> to vector<64x32xf32>
    %25 = arith.addf %22, %24 : vector<64x32xf32>
    %c1_26 = arith.constant 1 : index
    %c0_27 = arith.constant 0 : index
    %c0_28 = arith.constant 0 : index
    %26 = vector.load %arg4[%c1_26, %c0_27, %c0_28] : memref<3x6x32xf32, #tpu.memory_space<vmem>>, vector<1x6x32xf32>
    %27 = vector.shape_cast %26 : vector<1x6x32xf32> to vector<6x32xf32>
    %cst_29 = arith.constant dense<0.000000e+00> : vector<64x32xf32>
    %28 = tpu.matmul %0, %27, %cst_29 {dimension_numbers = #tpu.dot_dimension_numbers<[1], [0], [0], [1], [0, 0, 1, 1], [], []>} : vector<64x6xf32>, vector<6x32xf32>, vector<64x32xf32> -> vector<64x32xf32>
    %c1_30 = arith.constant 1 : index
    %c0_31 = arith.constant 0 : index
    %c0_32 = arith.constant 0 : index
    %29 = vector.load %arg5[%c1_30, %c0_31, %c0_32] : memref<3x1x32xf32, #tpu.memory_space<vmem>>, vector<1x1x32xf32>
    %30 = vector.shape_cast %29 : vector<1x1x32xf32> to vector<1x32xf32>
    %31 = vector.broadcast %1 : vector<64x1xf32> to vector<64x32xf32>
    %32 = vector.broadcast %30 : vector<1x32xf32> to vector<64x32xf32>
    %33 = arith.mulf %31, %32 : vector<64x32xf32>
    %34 = arith.addf %28, %33 : vector<64x32xf32>
    %c1_33 = arith.constant 1 : index
    %c0_34 = arith.constant 0 : index
    %c0_35 = arith.constant 0 : index
    %35 = vector.load %arg6[%c1_33, %c0_34, %c0_35] : memref<3x11x32xf32, #tpu.memory_space<vmem>>, vector<1x11x32xf32>
    %36 = vector.shape_cast %35 : vector<1x11x32xf32> to vector<11x32xf32>
    %cst_36 = arith.constant dense<0.000000e+00> : vector<64x32xf32>
    %37 = tpu.matmul %2, %36, %cst_36 {dimension_numbers = #tpu.dot_dimension_numbers<[1], [0], [0], [1], [0, 0, 1, 1], [], []>} : vector<64x11xf32>, vector<11x32xf32>, vector<64x32xf32> -> vector<64x32xf32>
    %38 = arith.addf %34, %37 : vector<64x32xf32>
    %c0_37 = arith.constant 0 : index
    %c0_38 = arith.constant 0 : index
    %39 = vector.load %arg9[%c0_37, %c0_38] : memref<1x32xf32, #tpu.memory_space<vmem>>, vector<1x32xf32>
    %40 = vector.broadcast %39 : vector<1x32xf32> to vector<64x32xf32>
    %41 = arith.addf %38, %40 : vector<64x32xf32>
    %c2_39 = arith.constant 2 : index
    %c0_40 = arith.constant 0 : index
    %c0_41 = arith.constant 0 : index
    %42 = vector.load %arg4[%c2_39, %c0_40, %c0_41] : memref<3x6x32xf32, #tpu.memory_space<vmem>>, vector<1x6x32xf32>
    %43 = vector.shape_cast %42 : vector<1x6x32xf32> to vector<6x32xf32>
    %cst_42 = arith.constant dense<0.000000e+00> : vector<64x32xf32>
    %44 = tpu.matmul %0, %43, %cst_42 {dimension_numbers = #tpu.dot_dimension_numbers<[1], [0], [0], [1], [0, 0, 1, 1], [], []>} : vector<64x6xf32>, vector<6x32xf32>, vector<64x32xf32> -> vector<64x32xf32>
    %c2_43 = arith.constant 2 : index
    %c0_44 = arith.constant 0 : index
    %c0_45 = arith.constant 0 : index
    %45 = vector.load %arg5[%c2_43, %c0_44, %c0_45] : memref<3x1x32xf32, #tpu.memory_space<vmem>>, vector<1x1x32xf32>
    %46 = vector.shape_cast %45 : vector<1x1x32xf32> to vector<1x32xf32>
    %47 = vector.broadcast %1 : vector<64x1xf32> to vector<64x32xf32>
    %48 = vector.broadcast %46 : vector<1x32xf32> to vector<64x32xf32>
    %49 = arith.mulf %47, %48 : vector<64x32xf32>
    %50 = arith.addf %44, %49 : vector<64x32xf32>
    %c2_46 = arith.constant 2 : index
    %c0_47 = arith.constant 0 : index
    %c0_48 = arith.constant 0 : index
    %51 = vector.load %arg6[%c2_46, %c0_47, %c0_48] : memref<3x11x32xf32, #tpu.memory_space<vmem>>, vector<1x11x32xf32>
    %52 = vector.shape_cast %51 : vector<1x11x32xf32> to vector<11x32xf32>
    %cst_49 = arith.constant dense<0.000000e+00> : vector<64x32xf32>
    %53 = tpu.matmul %2, %52, %cst_49 {dimension_numbers = #tpu.dot_dimension_numbers<[1], [0], [0], [1], [0, 0, 1, 1], [], []>} : vector<64x11xf32>, vector<11x32xf32>, vector<64x32xf32> -> vector<64x32xf32>
    %54 = arith.addf %50, %53 : vector<64x32xf32>
    %c0_50 = arith.constant 0 : index
    %c0_51 = arith.constant 0 : index
    %55 = vector.load %arg10[%c0_50, %c0_51] : memref<1x32xf32, #tpu.memory_space<vmem>>, vector<1x32xf32>
    %56 = vector.broadcast %55 : vector<1x32xf32> to vector<64x32xf32>
    %57 = arith.addf %54, %56 : vector<64x32xf32>
    %cst_52 = arith.constant 0.000000e+00 : f32
    %58 = vector.broadcast %cst_52 : f32 to vector<8x32xf32>
    %cst_53 = arith.constant dense<0.000000e+00> : vector<8x32xf32>
    %59 = tpu.matmul %58, %4, %cst_53 {dimension_numbers = #tpu.dot_dimension_numbers<[1], [0], [0], [1], [0, 0, 1, 1], [], []>} : vector<8x32xf32>, vector<32x32xf32>, vector<8x32xf32> -> vector<8x32xf32>
    %cst_54 = arith.constant dense<0.000000e+00> : vector<8x32xf32>
    %60 = tpu.matmul %58, %6, %cst_54 {dimension_numbers = #tpu.dot_dimension_numbers<[1], [0], [0], [1], [0, 0, 1, 1], [], []>} : vector<8x32xf32>, vector<32x32xf32>, vector<8x32xf32> -> vector<8x32xf32>
    %cst_55 = arith.constant dense<0.000000e+00> : vector<8x32xf32>
    %61 = tpu.matmul %58, %8, %cst_55 {dimension_numbers = #tpu.dot_dimension_numbers<[1], [0], [0], [1], [0, 0, 1, 1], [], []>} : vector<8x32xf32>, vector<32x32xf32>, vector<8x32xf32> -> vector<8x32xf32>
    %62 = vector.extract_strided_slice %25 {offsets = [0, 0], sizes = [8, 32], strides = [1, 1]} : vector<64x32xf32> to vector<8x32xf32>
    %63 = arith.addf %62, %59 : vector<8x32xf32>
    %64 = arith.negf %63 : vector<8x32xf32>
    %65 = math.exp %64 : vector<8x32xf32>
    %cst_56 = arith.constant 1.000000e+00 : f32
    %66 = vector.broadcast %cst_56 : f32 to vector<8x32xf32>
    %67 = arith.addf %66, %65 : vector<8x32xf32>
    %68 = arith.divf %66, %67 : vector<8x32xf32>
    %69 = vector.extract_strided_slice %41 {offsets = [0, 0], sizes = [8, 32], strides = [1, 1]} : vector<64x32xf32> to vector<8x32xf32>
    %70 = arith.addf %69, %60 : vector<8x32xf32>
    %71 = arith.negf %70 : vector<8x32xf32>
    %72 = math.exp %71 : vector<8x32xf32>
    %cst_57 = arith.constant 1.000000e+00 : f32
    %73 = vector.broadcast %cst_57 : f32 to vector<8x32xf32>
    %74 = arith.addf %73, %72 : vector<8x32xf32>
    %75 = arith.divf %73, %74 : vector<8x32xf32>
    %76 = vector.extract_strided_slice %57 {offsets = [0, 0], sizes = [8, 32], strides = [1, 1]} : vector<64x32xf32> to vector<8x32xf32>
    %77 = vector.broadcast %9 : vector<1x32xf32> to vector<8x32xf32>
    %78 = arith.addf %61, %77 : vector<8x32xf32>
    %79 = arith.mulf %68, %78 : vector<8x32xf32>
    %80 = arith.addf %76, %79 : vector<8x32xf32>
    %81 = math.tanh %80 : vector<8x32xf32>
    %cst_58 = arith.constant 1.000000e+00 : f32
    %82 = vector.broadcast %cst_58 : f32 to vector<8x32xf32>
    %83 = arith.subf %82, %75 : vector<8x32xf32>
    %84 = arith.mulf %83, %81 : vector<8x32xf32>
    %85 = arith.mulf %75, %58 : vector<8x32xf32>
    %86 = arith.addf %84, %85 : vector<8x32xf32>
    %cst_59 = arith.constant dense<0.000000e+00> : vector<8x32xf32>
    %87 = tpu.matmul %86, %4, %cst_59 {dimension_numbers = #tpu.dot_dimension_numbers<[1], [0], [0], [1], [0, 0, 1, 1], [], []>} : vector<8x32xf32>, vector<32x32xf32>, vector<8x32xf32> -> vector<8x32xf32>
    %cst_60 = arith.constant dense<0.000000e+00> : vector<8x32xf32>
    %88 = tpu.matmul %86, %6, %cst_60 {dimension_numbers = #tpu.dot_dimension_numbers<[1], [0], [0], [1], [0, 0, 1, 1], [], []>} : vector<8x32xf32>, vector<32x32xf32>, vector<8x32xf32> -> vector<8x32xf32>
    %cst_61 = arith.constant dense<0.000000e+00> : vector<8x32xf32>
    %89 = tpu.matmul %86, %8, %cst_61 {dimension_numbers = #tpu.dot_dimension_numbers<[1], [0], [0], [1], [0, 0, 1, 1], [], []>} : vector<8x32xf32>, vector<32x32xf32>, vector<8x32xf32> -> vector<8x32xf32>
    %90 = vector.extract_strided_slice %25 {offsets = [8, 0], sizes = [8, 32], strides = [1, 1]} : vector<64x32xf32> to vector<8x32xf32>
    %91 = arith.addf %90, %87 : vector<8x32xf32>
    %92 = arith.negf %91 : vector<8x32xf32>
    %93 = math.exp %92 : vector<8x32xf32>
    %cst_62 = arith.constant 1.000000e+00 : f32
    %94 = vector.broadcast %cst_62 : f32 to vector<8x32xf32>
    %95 = arith.addf %94, %93 : vector<8x32xf32>
    %96 = arith.divf %94, %95 : vector<8x32xf32>
    %97 = vector.extract_strided_slice %41 {offsets = [8, 0], sizes = [8, 32], strides = [1, 1]} : vector<64x32xf32> to vector<8x32xf32>
    %98 = arith.addf %97, %88 : vector<8x32xf32>
    %99 = arith.negf %98 : vector<8x32xf32>
    %100 = math.exp %99 : vector<8x32xf32>
    %cst_63 = arith.constant 1.000000e+00 : f32
    %101 = vector.broadcast %cst_63 : f32 to vector<8x32xf32>
    %102 = arith.addf %101, %100 : vector<8x32xf32>
    %103 = arith.divf %101, %102 : vector<8x32xf32>
    %104 = vector.extract_strided_slice %57 {offsets = [8, 0], sizes = [8, 32], strides = [1, 1]} : vector<64x32xf32> to vector<8x32xf32>
    %105 = vector.broadcast %9 : vector<1x32xf32> to vector<8x32xf32>
    %106 = arith.addf %89, %105 : vector<8x32xf32>
    %107 = arith.mulf %96, %106 : vector<8x32xf32>
    %108 = arith.addf %104, %107 : vector<8x32xf32>
    %109 = math.tanh %108 : vector<8x32xf32>
    %cst_64 = arith.constant 1.000000e+00 : f32
    %110 = vector.broadcast %cst_64 : f32 to vector<8x32xf32>
    %111 = arith.subf %110, %103 : vector<8x32xf32>
    %112 = arith.mulf %111, %109 : vector<8x32xf32>
    %113 = arith.mulf %103, %86 : vector<8x32xf32>
    %114 = arith.addf %112, %113 : vector<8x32xf32>
    %cst_65 = arith.constant dense<0.000000e+00> : vector<8x32xf32>
    %115 = tpu.matmul %114, %4, %cst_65 {dimension_numbers = #tpu.dot_dimension_numbers<[1], [0], [0], [1], [0, 0, 1, 1], [], []>} : vector<8x32xf32>, vector<32x32xf32>, vector<8x32xf32> -> vector<8x32xf32>
    %cst_66 = arith.constant dense<0.000000e+00> : vector<8x32xf32>
    %116 = tpu.matmul %114, %6, %cst_66 {dimension_numbers = #tpu.dot_dimension_numbers<[1], [0], [0], [1], [0, 0, 1, 1], [], []>} : vector<8x32xf32>, vector<32x32xf32>, vector<8x32xf32> -> vector<8x32xf32>
    %cst_67 = arith.constant dense<0.000000e+00> : vector<8x32xf32>
    %117 = tpu.matmul %114, %8, %cst_67 {dimension_numbers = #tpu.dot_dimension_numbers<[1], [0], [0], [1], [0, 0, 1, 1], [], []>} : vector<8x32xf32>, vector<32x32xf32>, vector<8x32xf32> -> vector<8x32xf32>
    %118 = vector.extract_strided_slice %25 {offsets = [16, 0], sizes = [8, 32], strides = [1, 1]} : vector<64x32xf32> to vector<8x32xf32>
    %119 = arith.addf %118, %115 : vector<8x32xf32>
    %120 = arith.negf %119 : vector<8x32xf32>
    %121 = math.exp %120 : vector<8x32xf32>
    %cst_68 = arith.constant 1.000000e+00 : f32
    %122 = vector.broadcast %cst_68 : f32 to vector<8x32xf32>
    %123 = arith.addf %122, %121 : vector<8x32xf32>
    %124 = arith.divf %122, %123 : vector<8x32xf32>
    %125 = vector.extract_strided_slice %41 {offsets = [16, 0], sizes = [8, 32], strides = [1, 1]} : vector<64x32xf32> to vector<8x32xf32>
    %126 = arith.addf %125, %116 : vector<8x32xf32>
    %127 = arith.negf %126 : vector<8x32xf32>
    %128 = math.exp %127 : vector<8x32xf32>
    %cst_69 = arith.constant 1.000000e+00 : f32
    %129 = vector.broadcast %cst_69 : f32 to vector<8x32xf32>
    %130 = arith.addf %129, %128 : vector<8x32xf32>
    %131 = arith.divf %129, %130 : vector<8x32xf32>
    %132 = vector.extract_strided_slice %57 {offsets = [16, 0], sizes = [8, 32], strides = [1, 1]} : vector<64x32xf32> to vector<8x32xf32>
    %133 = vector.broadcast %9 : vector<1x32xf32> to vector<8x32xf32>
    %134 = arith.addf %117, %133 : vector<8x32xf32>
    %135 = arith.mulf %124, %134 : vector<8x32xf32>
    %136 = arith.addf %132, %135 : vector<8x32xf32>
    %137 = math.tanh %136 : vector<8x32xf32>
    %cst_70 = arith.constant 1.000000e+00 : f32
    %138 = vector.broadcast %cst_70 : f32 to vector<8x32xf32>
    %139 = arith.subf %138, %131 : vector<8x32xf32>
    %140 = arith.mulf %139, %137 : vector<8x32xf32>
    %141 = arith.mulf %131, %114 : vector<8x32xf32>
    %142 = arith.addf %140, %141 : vector<8x32xf32>
    %cst_71 = arith.constant dense<0.000000e+00> : vector<8x32xf32>
    %143 = tpu.matmul %142, %4, %cst_71 {dimension_numbers = #tpu.dot_dimension_numbers<[1], [0], [0], [1], [0, 0, 1, 1], [], []>} : vector<8x32xf32>, vector<32x32xf32>, vector<8x32xf32> -> vector<8x32xf32>
    %cst_72 = arith.constant dense<0.000000e+00> : vector<8x32xf32>
    %144 = tpu.matmul %142, %6, %cst_72 {dimension_numbers = #tpu.dot_dimension_numbers<[1], [0], [0], [1], [0, 0, 1, 1], [], []>} : vector<8x32xf32>, vector<32x32xf32>, vector<8x32xf32> -> vector<8x32xf32>
    %cst_73 = arith.constant dense<0.000000e+00> : vector<8x32xf32>
    %145 = tpu.matmul %142, %8, %cst_73 {dimension_numbers = #tpu.dot_dimension_numbers<[1], [0], [0], [1], [0, 0, 1, 1], [], []>} : vector<8x32xf32>, vector<32x32xf32>, vector<8x32xf32> -> vector<8x32xf32>
    %146 = vector.extract_strided_slice %25 {offsets = [24, 0], sizes = [8, 32], strides = [1, 1]} : vector<64x32xf32> to vector<8x32xf32>
    %147 = arith.addf %146, %143 : vector<8x32xf32>
    %148 = arith.negf %147 : vector<8x32xf32>
    %149 = math.exp %148 : vector<8x32xf32>
    %cst_74 = arith.constant 1.000000e+00 : f32
    %150 = vector.broadcast %cst_74 : f32 to vector<8x32xf32>
    %151 = arith.addf %150, %149 : vector<8x32xf32>
    %152 = arith.divf %150, %151 : vector<8x32xf32>
    %153 = vector.extract_strided_slice %41 {offsets = [24, 0], sizes = [8, 32], strides = [1, 1]} : vector<64x32xf32> to vector<8x32xf32>
    %154 = arith.addf %153, %144 : vector<8x32xf32>
    %155 = arith.negf %154 : vector<8x32xf32>
    %156 = math.exp %155 : vector<8x32xf32>
    %cst_75 = arith.constant 1.000000e+00 : f32
    %157 = vector.broadcast %cst_75 : f32 to vector<8x32xf32>
    %158 = arith.addf %157, %156 : vector<8x32xf32>
    %159 = arith.divf %157, %158 : vector<8x32xf32>
    %160 = vector.extract_strided_slice %57 {offsets = [24, 0], sizes = [8, 32], strides = [1, 1]} : vector<64x32xf32> to vector<8x32xf32>
    %161 = vector.broadcast %9 : vector<1x32xf32> to vector<8x32xf32>
    %162 = arith.addf %145, %161 : vector<8x32xf32>
    %163 = arith.mulf %152, %162 : vector<8x32xf32>
    %164 = arith.addf %160, %163 : vector<8x32xf32>
    %165 = math.tanh %164 : vector<8x32xf32>
    %cst_76 = arith.constant 1.000000e+00 : f32
    %166 = vector.broadcast %cst_76 : f32 to vector<8x32xf32>
    %167 = arith.subf %166, %159 : vector<8x32xf32>
    %168 = arith.mulf %167, %165 : vector<8x32xf32>
    %169 = arith.mulf %159, %142 : vector<8x32xf32>
    %170 = arith.addf %168, %169 : vector<8x32xf32>
    %cst_77 = arith.constant dense<0.000000e+00> : vector<8x32xf32>
    %171 = tpu.matmul %170, %4, %cst_77 {dimension_numbers = #tpu.dot_dimension_numbers<[1], [0], [0], [1], [0, 0, 1, 1], [], []>} : vector<8x32xf32>, vector<32x32xf32>, vector<8x32xf32> -> vector<8x32xf32>
    %cst_78 = arith.constant dense<0.000000e+00> : vector<8x32xf32>
    %172 = tpu.matmul %170, %6, %cst_78 {dimension_numbers = #tpu.dot_dimension_numbers<[1], [0], [0], [1], [0, 0, 1, 1], [], []>} : vector<8x32xf32>, vector<32x32xf32>, vector<8x32xf32> -> vector<8x32xf32>
    %cst_79 = arith.constant dense<0.000000e+00> : vector<8x32xf32>
    %173 = tpu.matmul %170, %8, %cst_79 {dimension_numbers = #tpu.dot_dimension_numbers<[1], [0], [0], [1], [0, 0, 1, 1], [], []>} : vector<8x32xf32>, vector<32x32xf32>, vector<8x32xf32> -> vector<8x32xf32>
    %174 = vector.extract_strided_slice %25 {offsets = [32, 0], sizes = [8, 32], strides = [1, 1]} : vector<64x32xf32> to vector<8x32xf32>
    %175 = arith.addf %174, %171 : vector<8x32xf32>
    %176 = arith.negf %175 : vector<8x32xf32>
    %177 = math.exp %176 : vector<8x32xf32>
    %cst_80 = arith.constant 1.000000e+00 : f32
    %178 = vector.broadcast %cst_80 : f32 to vector<8x32xf32>
    %179 = arith.addf %178, %177 : vector<8x32xf32>
    %180 = arith.divf %178, %179 : vector<8x32xf32>
    %181 = vector.extract_strided_slice %41 {offsets = [32, 0], sizes = [8, 32], strides = [1, 1]} : vector<64x32xf32> to vector<8x32xf32>
    %182 = arith.addf %181, %172 : vector<8x32xf32>
    %183 = arith.negf %182 : vector<8x32xf32>
    %184 = math.exp %183 : vector<8x32xf32>
    %cst_81 = arith.constant 1.000000e+00 : f32
    %185 = vector.broadcast %cst_81 : f32 to vector<8x32xf32>
    %186 = arith.addf %185, %184 : vector<8x32xf32>
    %187 = arith.divf %185, %186 : vector<8x32xf32>
    %188 = vector.extract_strided_slice %57 {offsets = [32, 0], sizes = [8, 32], strides = [1, 1]} : vector<64x32xf32> to vector<8x32xf32>
    %189 = vector.broadcast %9 : vector<1x32xf32> to vector<8x32xf32>
    %190 = arith.addf %173, %189 : vector<8x32xf32>
    %191 = arith.mulf %180, %190 : vector<8x32xf32>
    %192 = arith.addf %188, %191 : vector<8x32xf32>
    %193 = math.tanh %192 : vector<8x32xf32>
    %cst_82 = arith.constant 1.000000e+00 : f32
    %194 = vector.broadcast %cst_82 : f32 to vector<8x32xf32>
    %195 = arith.subf %194, %187 : vector<8x32xf32>
    %196 = arith.mulf %195, %193 : vector<8x32xf32>
    %197 = arith.mulf %187, %170 : vector<8x32xf32>
    %198 = arith.addf %196, %197 : vector<8x32xf32>
    %cst_83 = arith.constant dense<0.000000e+00> : vector<8x32xf32>
    %199 = tpu.matmul %198, %4, %cst_83 {dimension_numbers = #tpu.dot_dimension_numbers<[1], [0], [0], [1], [0, 0, 1, 1], [], []>} : vector<8x32xf32>, vector<32x32xf32>, vector<8x32xf32> -> vector<8x32xf32>
    %cst_84 = arith.constant dense<0.000000e+00> : vector<8x32xf32>
    %200 = tpu.matmul %198, %6, %cst_84 {dimension_numbers = #tpu.dot_dimension_numbers<[1], [0], [0], [1], [0, 0, 1, 1], [], []>} : vector<8x32xf32>, vector<32x32xf32>, vector<8x32xf32> -> vector<8x32xf32>
    %cst_85 = arith.constant dense<0.000000e+00> : vector<8x32xf32>
    %201 = tpu.matmul %198, %8, %cst_85 {dimension_numbers = #tpu.dot_dimension_numbers<[1], [0], [0], [1], [0, 0, 1, 1], [], []>} : vector<8x32xf32>, vector<32x32xf32>, vector<8x32xf32> -> vector<8x32xf32>
    %202 = vector.extract_strided_slice %25 {offsets = [40, 0], sizes = [8, 32], strides = [1, 1]} : vector<64x32xf32> to vector<8x32xf32>
    %203 = arith.addf %202, %199 : vector<8x32xf32>
    %204 = arith.negf %203 : vector<8x32xf32>
    %205 = math.exp %204 : vector<8x32xf32>
    %cst_86 = arith.constant 1.000000e+00 : f32
    %206 = vector.broadcast %cst_86 : f32 to vector<8x32xf32>
    %207 = arith.addf %206, %205 : vector<8x32xf32>
    %208 = arith.divf %206, %207 : vector<8x32xf32>
    %209 = vector.extract_strided_slice %41 {offsets = [40, 0], sizes = [8, 32], strides = [1, 1]} : vector<64x32xf32> to vector<8x32xf32>
    %210 = arith.addf %209, %200 : vector<8x32xf32>
    %211 = arith.negf %210 : vector<8x32xf32>
    %212 = math.exp %211 : vector<8x32xf32>
    %cst_87 = arith.constant 1.000000e+00 : f32
    %213 = vector.broadcast %cst_87 : f32 to vector<8x32xf32>
    %214 = arith.addf %213, %212 : vector<8x32xf32>
    %215 = arith.divf %213, %214 : vector<8x32xf32>
    %216 = vector.extract_strided_slice %57 {offsets = [40, 0], sizes = [8, 32], strides = [1, 1]} : vector<64x32xf32> to vector<8x32xf32>
    %217 = vector.broadcast %9 : vector<1x32xf32> to vector<8x32xf32>
    %218 = arith.addf %201, %217 : vector<8x32xf32>
    %219 = arith.mulf %208, %218 : vector<8x32xf32>
    %220 = arith.addf %216, %219 : vector<8x32xf32>
    %221 = math.tanh %220 : vector<8x32xf32>
    %cst_88 = arith.constant 1.000000e+00 : f32
    %222 = vector.broadcast %cst_88 : f32 to vector<8x32xf32>
    %223 = arith.subf %222, %215 : vector<8x32xf32>
    %224 = arith.mulf %223, %221 : vector<8x32xf32>
    %225 = arith.mulf %215, %198 : vector<8x32xf32>
    %226 = arith.addf %224, %225 : vector<8x32xf32>
    %cst_89 = arith.constant dense<0.000000e+00> : vector<8x32xf32>
    %227 = tpu.matmul %226, %4, %cst_89 {dimension_numbers = #tpu.dot_dimension_numbers<[1], [0], [0], [1], [0, 0, 1, 1], [], []>} : vector<8x32xf32>, vector<32x32xf32>, vector<8x32xf32> -> vector<8x32xf32>
    %cst_90 = arith.constant dense<0.000000e+00> : vector<8x32xf32>
    %228 = tpu.matmul %226, %6, %cst_90 {dimension_numbers = #tpu.dot_dimension_numbers<[1], [0], [0], [1], [0, 0, 1, 1], [], []>} : vector<8x32xf32>, vector<32x32xf32>, vector<8x32xf32> -> vector<8x32xf32>
    %cst_91 = arith.constant dense<0.000000e+00> : vector<8x32xf32>
    %229 = tpu.matmul %226, %8, %cst_91 {dimension_numbers = #tpu.dot_dimension_numbers<[1], [0], [0], [1], [0, 0, 1, 1], [], []>} : vector<8x32xf32>, vector<32x32xf32>, vector<8x32xf32> -> vector<8x32xf32>
    %230 = vector.extract_strided_slice %25 {offsets = [48, 0], sizes = [8, 32], strides = [1, 1]} : vector<64x32xf32> to vector<8x32xf32>
    %231 = arith.addf %230, %227 : vector<8x32xf32>
    %232 = arith.negf %231 : vector<8x32xf32>
    %233 = math.exp %232 : vector<8x32xf32>
    %cst_92 = arith.constant 1.000000e+00 : f32
    %234 = vector.broadcast %cst_92 : f32 to vector<8x32xf32>
    %235 = arith.addf %234, %233 : vector<8x32xf32>
    %236 = arith.divf %234, %235 : vector<8x32xf32>
    %237 = vector.extract_strided_slice %41 {offsets = [48, 0], sizes = [8, 32], strides = [1, 1]} : vector<64x32xf32> to vector<8x32xf32>
    %238 = arith.addf %237, %228 : vector<8x32xf32>
    %239 = arith.negf %238 : vector<8x32xf32>
    %240 = math.exp %239 : vector<8x32xf32>
    %cst_93 = arith.constant 1.000000e+00 : f32
    %241 = vector.broadcast %cst_93 : f32 to vector<8x32xf32>
    %242 = arith.addf %241, %240 : vector<8x32xf32>
    %243 = arith.divf %241, %242 : vector<8x32xf32>
    %244 = vector.extract_strided_slice %57 {offsets = [48, 0], sizes = [8, 32], strides = [1, 1]} : vector<64x32xf32> to vector<8x32xf32>
    %245 = vector.broadcast %9 : vector<1x32xf32> to vector<8x32xf32>
    %246 = arith.addf %229, %245 : vector<8x32xf32>
    %247 = arith.mulf %236, %246 : vector<8x32xf32>
    %248 = arith.addf %244, %247 : vector<8x32xf32>
    %249 = math.tanh %248 : vector<8x32xf32>
    %cst_94 = arith.constant 1.000000e+00 : f32
    %250 = vector.broadcast %cst_94 : f32 to vector<8x32xf32>
    %251 = arith.subf %250, %243 : vector<8x32xf32>
    %252 = arith.mulf %251, %249 : vector<8x32xf32>
    %253 = arith.mulf %243, %226 : vector<8x32xf32>
    %254 = arith.addf %252, %253 : vector<8x32xf32>
    %cst_95 = arith.constant dense<0.000000e+00> : vector<8x32xf32>
    %255 = tpu.matmul %254, %4, %cst_95 {dimension_numbers = #tpu.dot_dimension_numbers<[1], [0], [0], [1], [0, 0, 1, 1], [], []>} : vector<8x32xf32>, vector<32x32xf32>, vector<8x32xf32> -> vector<8x32xf32>
    %cst_96 = arith.constant dense<0.000000e+00> : vector<8x32xf32>
    %256 = tpu.matmul %254, %6, %cst_96 {dimension_numbers = #tpu.dot_dimension_numbers<[1], [0], [0], [1], [0, 0, 1, 1], [], []>} : vector<8x32xf32>, vector<32x32xf32>, vector<8x32xf32> -> vector<8x32xf32>
    %cst_97 = arith.constant dense<0.000000e+00> : vector<8x32xf32>
    %257 = tpu.matmul %254, %8, %cst_97 {dimension_numbers = #tpu.dot_dimension_numbers<[1], [0], [0], [1], [0, 0, 1, 1], [], []>} : vector<8x32xf32>, vector<32x32xf32>, vector<8x32xf32> -> vector<8x32xf32>
    %258 = vector.extract_strided_slice %25 {offsets = [56, 0], sizes = [8, 32], strides = [1, 1]} : vector<64x32xf32> to vector<8x32xf32>
    %259 = arith.addf %258, %255 : vector<8x32xf32>
    %260 = arith.negf %259 : vector<8x32xf32>
    %261 = math.exp %260 : vector<8x32xf32>
    %cst_98 = arith.constant 1.000000e+00 : f32
    %262 = vector.broadcast %cst_98 : f32 to vector<8x32xf32>
    %263 = arith.addf %262, %261 : vector<8x32xf32>
    %264 = arith.divf %262, %263 : vector<8x32xf32>
    %265 = vector.extract_strided_slice %41 {offsets = [56, 0], sizes = [8, 32], strides = [1, 1]} : vector<64x32xf32> to vector<8x32xf32>
    %266 = arith.addf %265, %256 : vector<8x32xf32>
    %267 = arith.negf %266 : vector<8x32xf32>
    %268 = math.exp %267 : vector<8x32xf32>
    %cst_99 = arith.constant 1.000000e+00 : f32
    %269 = vector.broadcast %cst_99 : f32 to vector<8x32xf32>
    %270 = arith.addf %269, %268 : vector<8x32xf32>
    %271 = arith.divf %269, %270 : vector<8x32xf32>
    %272 = vector.extract_strided_slice %57 {offsets = [56, 0], sizes = [8, 32], strides = [1, 1]} : vector<64x32xf32> to vector<8x32xf32>
    %273 = vector.broadcast %9 : vector<1x32xf32> to vector<8x32xf32>
    %274 = arith.addf %257, %273 : vector<8x32xf32>
    %275 = arith.mulf %264, %274 : vector<8x32xf32>
    %276 = arith.addf %272, %275 : vector<8x32xf32>
    %277 = math.tanh %276 : vector<8x32xf32>
    %cst_100 = arith.constant 1.000000e+00 : f32
    %278 = vector.broadcast %cst_100 : f32 to vector<8x32xf32>
    %279 = arith.subf %278, %271 : vector<8x32xf32>
    %280 = arith.mulf %279, %277 : vector<8x32xf32>
    %281 = arith.mulf %271, %254 : vector<8x32xf32>
    %282 = arith.addf %280, %281 : vector<8x32xf32>
    %c0_101 = arith.constant 0 : index
    %c0_102 = arith.constant 0 : index
    %283 = vector.load %arg12[%c0_101, %c0_102] : memref<8x32xf32, #tpu.memory_space<vmem>>, vector<8x32xf32>
    tpu.vector_store %arg12[%c0_101, %c0_102], %282 {strides = array<i32>} : memref<8x32xf32, #tpu.memory_space<vmem>>, vector<8x32xf32>,
    return
  }
  func.func @transform_0(%arg0: i32) -> (i32, i32) {
    %c0_i32 = arith.constant 0 : i32
    %c0_i32_0 = arith.constant 0 : i32
    %c0_i32_1 = arith.constant 0 : i32
    return %c0_i32, %c0_i32_0 : i32, i32
  }
  func.func @transform_1(%arg0: i32) -> (i32, i32) {
    %c0_i32 = arith.constant 0 : i32
    %c0_i32_0 = arith.constant 0 : i32
    %c0_i32_1 = arith.constant 0 : i32
    return %c0_i32, %c0_i32_0 : i32, i32
  }
  func.func @transform_2(%arg0: i32) -> (i32, i32) {
    %c0_i32 = arith.constant 0 : i32
    %c0_i32_0 = arith.constant 0 : i32
    %c0_i32_1 = arith.constant 0 : i32
    return %c0_i32, %c0_i32_0 : i32, i32
  }
  func.func @transform_3(%arg0: i32) -> (i32, i32, i32) {
    %c0_i32 = arith.constant 0 : i32
    %c0_i32_0 = arith.constant 0 : i32
    %c0_i32_1 = arith.constant 0 : i32
    %c0_i32_2 = arith.constant 0 : i32
    return %c0_i32, %c0_i32_0, %c0_i32_1 : i32, i32, i32
  }
  func.func @transform_4(%arg0: i32) -> (i32, i32, i32) {
    %c0_i32 = arith.constant 0 : i32
    %c0_i32_0 = arith.constant 0 : i32
    %c0_i32_1 = arith.constant 0 : i32
    %c0_i32_2 = arith.constant 0 : i32
    return %c0_i32, %c0_i32_0, %c0_i32_1 : i32, i32, i32
  }
  func.func @transform_5(%arg0: i32) -> (i32, i32, i32) {
    %c0_i32 = arith.constant 0 : i32
    %c0_i32_0 = arith.constant 0 : i32
    %c0_i32_1 = arith.constant 0 : i32
    %c0_i32_2 = arith.constant 0 : i32
    return %c0_i32, %c0_i32_0, %c0_i32_1 : i32, i32, i32
  }
  func.func @transform_6(%arg0: i32) -> (i32, i32, i32) {
    %c0_i32 = arith.constant 0 : i32
    %c0_i32_0 = arith.constant 0 : i32
    %c0_i32_1 = arith.constant 0 : i32
    %c0_i32_2 = arith.constant 0 : i32
    return %c0_i32, %c0_i32_0, %c0_i32_1 : i32, i32, i32
  }
  func.func @transform_7(%arg0: i32) -> (i32, i32) {
    %c0_i32 = arith.constant 0 : i32
    %c0_i32_0 = arith.constant 0 : i32
    %c0_i32_1 = arith.constant 0 : i32
    return %c0_i32, %c0_i32_0 : i32, i32
  }
  func.func @transform_8(%arg0: i32) -> (i32, i32) {
    %c0_i32 = arith.constant 0 : i32
    %c0_i32_0 = arith.constant 0 : i32
    %c0_i32_1 = arith.constant 0 : i32
    return %c0_i32, %c0_i32_0 : i32, i32
  }
  func.func @transform_9(%arg0: i32) -> (i32, i32) {
    %c0_i32 = arith.constant 0 : i32
    %c0_i32_0 = arith.constant 0 : i32
    %c0_i32_1 = arith.constant 0 : i32
    return %c0_i32, %c0_i32_0 : i32, i32
  }
  func.func @transform_10(%arg0: i32) -> (i32, i32) {
    %c0_i32 = arith.constant 0 : i32
    %c0_i32_0 = arith.constant 0 : i32
    %c0_i32_1 = arith.constant 0 : i32
    return %c0_i32, %c0_i32_0 : i32, i32
  }
  func.func @transform_11(%arg0: i32) -> (i32, i32) {
    %c0_i32 = arith.constant 0 : i32
    %c0_i32_0 = arith.constant 0 : i32
    %c0_i32_1 = arith.constant 0 : i32
    return %c0_i32, %c0_i32_0 : i32, i32
  }
}

</mosaic_0001>

<llo_original>
// kernel: _forward_impl.1
$region0: #{_forward_impl.1}
  #allocation0 [shape = 'u32[]', space=smem, size = 0x4, offset = 0x4, fixed_abs, tag = 'smem constant byte address 0x4 - core index']
  #allocation1 [shape = 'u32[144,128]{1,0:T(1,128)}', space=vmem, size = 0x12000, scoped, tag = 'internal scratch']
  %s0 = inlined_call_operand.vmem [shape: f32[64,6], index: 0, kind: input, shape index: {}]
  %s1 = inlined_call_operand.vmem [shape: f32[64,1], index: 1, kind: input, shape index: {}]
  %s2 = inlined_call_operand.vmem [shape: f32[64,11], index: 2, kind: input, shape index: {}]
  %s3 = inlined_call_operand.vmem [shape: f32[3,6,32], index: 3, kind: input, shape index: {}]
  %s4 = inlined_call_operand.vmem [shape: f32[3,1,32], index: 4, kind: input, shape index: {}]
  %s5 = inlined_call_operand.vmem [shape: f32[3,11,32], index: 5, kind: input, shape index: {}]
  %s6 = inlined_call_operand.vmem [shape: f32[3,32,32], index: 6, kind: input, shape index: {}]
  %s7 = inlined_call_operand.vmem [shape: f32[1,32], index: 7, kind: input, shape index: {}]
  %s8 = inlined_call_operand.vmem [shape: f32[1,32], index: 8, kind: input, shape index: {}]
  %s9 = inlined_call_operand.vmem [shape: f32[1,32], index: 9, kind: input, shape index: {}]
  %s10 = inlined_call_operand.vmem [shape: f32[1,32], index: 10, kind: input, shape index: {}]
  %s11 = inlined_call_operand.vmem [shape: f32[8,32], index: 11, kind: output, shape index: {}]
  %s12 = sld [smem:[#allocation0]]
  $region54: #{_forward_impl.1} parent=0
    _
  %s14 = ssub.s32 1, %s12
  %s15 = scalar_select 0, %s14, %s12
  // Predicated region
  $region2: #{_forward_impl.1} parent=0 // pred_check
    _
  $region3: #{_forward_impl.1} parent=0 // pred_check_branch
    %17 = sbr.rel (0) target = $region5
  $region4: #{_forward_impl.1} parent=0 // pred_region
    _
  $region5: #{_forward_impl.1} parent=0 // pred_fallthru
    _
  // Predicated region
  $region6: #{_forward_impl.1} parent=0 // pred_check
    _
  $region7: #{_forward_impl.1} parent=0 // pred_check_branch
    %19 = sbr.rel (0) target = $region9
  $region8: #{_forward_impl.1} parent=0 // pred_region
    _
  $region9: #{_forward_impl.1} parent=0 // pred_fallthru
    _
  // Predicated region
  $region10: #{_forward_impl.1} parent=0 // pred_check
    _
  $region11: #{_forward_impl.1} parent=0 // pred_check_branch
    %21 = sbr.rel (0) target = $region13
  $region12: #{_forward_impl.1} parent=0 // pred_region
    _
  $region13: #{_forward_impl.1} parent=0 // pred_fallthru
    _
  // Predicated region
  $region14: #{_forward_impl.1} parent=0 // pred_check
    _
  $region15: #{_forward_impl.1} parent=0 // pred_check_branch
    %23 = sbr.rel (0) target = $region17
  $region16: #{_forward_impl.1} parent=0 // pred_region
    _
  $region17: #{_forward_impl.1} parent=0 // pred_fallthru
    _
  // Predicated region
  $region18: #{_forward_impl.1} parent=0 // pred_check
    _
  $region19: #{_forward_impl.1} parent=0 // pred_check_branch
    %25 = sbr.rel (0) target = $region21
  $region20: #{_forward_impl.1} parent=0 // pred_region
    _
  $region21: #{_forward_impl.1} parent=0 // pred_fallthru
    _
  // Predicated region
  $region22: #{_forward_impl.1} parent=0 // pred_check
    _
  $region23: #{_forward_impl.1} parent=0 // pred_check_branch
    %27 = sbr.rel (0) target = $region25
  $region24: #{_forward_impl.1} parent=0 // pred_region
    _
  $region25: #{_forward_impl.1} parent=0 // pred_fallthru
    _
  // Predicated region
  $region26: #{_forward_impl.1} parent=0 // pred_check
    _
  $region27: #{_forward_impl.1} parent=0 // pred_check_branch
    %29 = sbr.rel (0) target = $region29
  $region28: #{_forward_impl.1} parent=0 // pred_region
    _
  $region29: #{_forward_impl.1} parent=0 // pred_fallthru
    _
  // Predicated region
  $region30: #{_forward_impl.1} parent=0 // pred_check
    _
  $region31: #{_forward_impl.1} parent=0 // pred_check_branch
    %31 = sbr.rel (0) target = $region33
  $region32: #{_forward_impl.1} parent=0 // pred_region
    _
  $region33: #{_forward_impl.1} parent=0 // pred_fallthru
    _
  // Predicated region
  $region34: #{_forward_impl.1} parent=0 // pred_check
    _
  $region35: #{_forward_impl.1} parent=0 // pred_check_branch
    %33 = sbr.rel (0) target = $region37
  $region36: #{_forward_impl.1} parent=0 // pred_region
    _
  $region37: #{_forward_impl.1} parent=0 // pred_fallthru
    _
  // Predicated region
  $region38: #{_forward_impl.1} parent=0 // pred_check
    _
  $region39: #{_forward_impl.1} parent=0 // pred_check_branch
    %35 = sbr.rel (0) target = $region41
  $region40: #{_forward_impl.1} parent=0 // pred_region
    _
  $region41: #{_forward_impl.1} parent=0 // pred_fallthru
    _
  // Predicated region
  $region42: #{_forward_impl.1} parent=0 // pred_check
    _
  $region43: #{_forward_impl.1} parent=0 // pred_check_branch
    %37 = sbr.rel (0) target = $region45
  $region44: #{_forward_impl.1} parent=0 // pred_region
    _
  $region45: #{_forward_impl.1} parent=0 // pred_fallthru
    _
  %v38 = vld [vmem:[%s0] sm:$0xff]
  %v39 = vld [vmem:[%s0 + $0x8] sm:$0xff]
  %v40 = vld [vmem:[%s0 + $0x10] sm:$0xff]
  %v41 = vld [vmem:[%s0 + $0x18] sm:$0xff]
  %v42 = vld [vmem:[%s0 + $0x20] sm:$0xff]
  %v43 = vld [vmem:[%s0 + $0x28] sm:$0xff]
  %v44 = vld [vmem:[%s0 + $0x30] sm:$0xff]
  %v45 = vld [vmem:[%s0 + $0x38] sm:$0xff]
  %v46 = vld [vmem:[%s1] sm:$0xff]
  %v47 = vld [vmem:[%s1 + $0x8] sm:$0xff]
  %v48 = vld [vmem:[%s1 + $0x10] sm:$0xff]
  %v49 = vld [vmem:[%s1 + $0x18] sm:$0xff]
  %v50 = vld [vmem:[%s1 + $0x20] sm:$0xff]
  %v51 = vld [vmem:[%s1 + $0x28] sm:$0xff]
  %v52 = vld [vmem:[%s1 + $0x30] sm:$0xff]
  %v53 = vld [vmem:[%s1 + $0x38] sm:$0xff]
  %v54 = vld [vmem:[%s2] sm:$0xff]
  %v55 = vld [vmem:[%s2 + $0x8] sm:$0xff]
  %v56 = vld [vmem:[%s2 + $0x10] sm:$0xff]
  %v57 = vld [vmem:[%s2 + $0x18] sm:$0xff]
  %v58 = vld [vmem:[%s2 + $0x20] sm:$0xff]
  %v59 = vld [vmem:[%s2 + $0x28] sm:$0xff]
  %v60 = vld [vmem:[%s2 + $0x30] sm:$0xff]
  %v61 = vld [vmem:[%s2 + $0x38] sm:$0xff]
  %v62 = vld [vmem:[%s6] sm:$0xff]
  %v63 = vld [vmem:[%s6 + $0x8] sm:$0xff]
  %v64 = vld [vmem:[%s6 + $0x10] sm:$0xff]
  %v65 = vld [vmem:[%s6 + $0x18] sm:$0xff]
  %s66 = scalar_lea.vmem %s6, 32
  %v67 = vld [vmem:[%s66] sm:$0xff]
  %v68 = vld [vmem:[%s66 + $0x8] sm:$0xff]
  %v69 = vld [vmem:[%s66 + $0x10] sm:$0xff]
  %v70 = vld [vmem:[%s66 + $0x18] sm:$0xff]
  %s71 = scalar_lea.vmem %s6, 64
  %v72 = vld [vmem:[%s71] sm:$0xff]
  %v73 = vld [vmem:[%s71 + $0x8] sm:$0xff]
  %v74 = vld [vmem:[%s71 + $0x10] sm:$0xff]
  %v75 = vld [vmem:[%s71 + $0x18] sm:$0xff]
  %v76 = vld [vmem:[%s10] sm:$0x1]
  %v77 = vld [vmem:[%s3] sm:$0x3f]
  %v78 = vld [vmem:[%s4] sm:$0x1]
  %80 = vset.pattern.permute.xlu0 0
  %81 = vperm.xlu0 %80, %v46
  %v82 = vpop.permute.xlu0 %81
  %85 = vset.pattern.permute.xlu0 0
  %86 = vperm.xlu0 %85, %v47
  %v87 = vpop.permute.xlu0 %86
  %90 = vset.pattern.permute.xlu0 0
  %91 = vperm.xlu0 %90, %v48
  %v92 = vpop.permute.xlu0 %91
  %95 = vset.pattern.permute.xlu0 0
  %96 = vperm.xlu0 %95, %v49
  %v97 = vpop.permute.xlu0 %96
  %100 = vset.pattern.permute.xlu0 0
  %101 = vperm.xlu0 %100, %v50
  %v102 = vpop.permute.xlu0 %101
  %105 = vset.pattern.permute.xlu0 0
  %106 = vperm.xlu0 %105, %v51
  %v107 = vpop.permute.xlu0 %106
  %110 = vset.pattern.permute.xlu0 0
  %111 = vperm.xlu0 %110, %v52
  %v112 = vpop.permute.xlu0 %111
  %115 = vset.pattern.permute.xlu0 0
  %116 = vperm.xlu0 %115, %v53
  %v117 = vpop.permute.xlu0 %116
  %v120 = vlaneseq
  %v121 = vshrl.u32 %v120, 7
  %v122 = vsub.s32 0, %v121
  %v123 = vrot.slane %v78, %v122
  %v125 = vmul.f32 %v82, %v123
  %v126 = vmul.f32 %v87, %v123
  %v127 = vmul.f32 %v92, %v123
  %v128 = vmul.f32 %v97, %v123
  %v129 = vmul.f32 %v102, %v123
  %v130 = vmul.f32 %v107, %v123
  %v131 = vmul.f32 %v112, %v123
  %v132 = vmul.f32 %v117, %v123
  %vm133 = vcmask 48128
  %v135 = vsel %vm133, %v38, 0
  %v138 = vsel %vm133, %v39, 0
  %v141 = vsel %vm133, %v40, 0
  %v144 = vsel %vm133, %v41, 0
  %v147 = vsel %vm133, %v42, 0
  %v150 = vsel %vm133, %v43, 0
  %v153 = vsel %vm133, %v44, 0
  %v156 = vsel %vm133, %v45, 0
  %vm158 = vcmask 1045504
  %v160 = vsel %vm158, %v77, 0
  %162 = vmatprep.subr.mxu0 0.0
  %163 = vmatpush1.msra.mxu0 %v160
  %164 = vmatprep.subr.mxu0 0.0
  %165 = vmatpush1.msra.mxu0 0.0
  %166 = vmatprep.subr.mxu0 0.0
  %167 = vmatpush1.msra.mxu0 0.0
  %168 = vmatprep.subr.mxu0 0.0
  %169 = vmatpush1.msra.mxu0 0.0
  %170 = vmatprep.subr.mxu0 0.0
  %171 = vmatpush1.msra.mxu0 0.0
  %172 = vmatprep.subr.mxu0 0.0
  %173 = vmatpush1.msra.mxu0 0.0
  %174 = vmatprep.subr.mxu0 0.0
  %175 = vmatpush1.msra.mxu0 0.0
  %176 = vmatprep.subr.mxu0 0.0
  %177 = vmatpush1.msra.mxu0 0.0
  %178 = vmatprep.subr.mxu0 0.0
  %179 = vmatpush1.msra.mxu0 0.0
  %180 = vmatprep.subr.mxu0 0.0
  %181 = vmatpush1.msra.mxu0 0.0
  %182 = vmatprep.subr.mxu0 0.0
  %183 = vmatpush1.msra.mxu0 0.0
  %184 = vmatprep.subr.mxu0 0.0
  %185 = vmatpush1.msra.mxu0 0.0
  %186 = vmatprep.subr.mxu0 0.0
  %187 = vmatpush1.msra.mxu0 0.0
  %188 = vmatprep.subr.mxu0 0.0
  %189 = vmatpush1.msra.mxu0 0.0
  %190 = vmatprep.subr.mxu0 0.0
  %191 = vmatpush1.msra.mxu0 0.0
  %192 = vmatprep.subr.mxu0 0.0
  %193 = vmatpush1.msra.mxu0 0.0
  %194 = vmatprep.subr.mxu0 0.0
  %195 = vmatpush1.msra.mxu0 0.0
  %196 = vmatprep.subr.mxu0 0.0
  %197 = vmatpush1.msra.mxu0 0.0
  %198 = vmatprep.subr.mxu0 0.0
  %199 = vmatpush1.msra.mxu0 0.0
  %200 = vmatprep.subr.mxu0 0.0
  %201 = vmatpush1.msra.mxu0 0.0
  %202 = vmatprep.subr.mxu0 0.0
  %203 = vmatpush1.msra.mxu0 0.0
  %204 = vmatprep.subr.mxu0 0.0
  %205 = vmatpush1.msra.mxu0 0.0
  %206 = vmatprep.subr.mxu0 0.0
  %207 = vmatpush1.msra.mxu0 0.0
  %208 = vmatprep.subr.mxu0 0.0
  %209 = vmatpush1.msra.mxu0 0.0
  %210 = vmatprep.subr.mxu0 0.0
  %211 = vmatpush1.msra.mxu0 0.0
  %212 = vmatprep.subr.mxu0 0.0
  %213 = vmatpush1.msra.mxu0 0.0
  %214 = vmatprep.subr.mxu0 0.0
  %215 = vmatpush1.msra.mxu0 0.0
  %216 = vmatprep.subr.mxu0 0.0
  %217 = vmatpush1.msra.mxu0 0.0
  %218 = vmatprep.subr.mxu0 0.0
  %219 = vmatpush1.msra.mxu0 0.0
  %220 = vmatprep.subr.mxu0 0.0
  %221 = vmatpush1.msra.mxu0 0.0
  %222 = vmatprep.subr.mxu0 0.0
  %223 = vmatpush1.msra.mxu0 0.0
  %224 = vmatprep.subr.mxu0 0.0
  %225 = vmatpush1.msra.mxu0 0.0
  %226 = vmatprep.mubr.f32.mxu0 0.0
  %227 = vmatmul.mubr.f32.gmra.mrb[0].mxu0 %v135
  %v228 = vpop.f32.mrb[0].mxu0
  %v229 = vadd.f32 %v125, %v228
  %v230 = vpop.f32.mrb[0].mxu0
  %231 = vmatprep.mubr.f32.mxu0 0.0
  %232 = vmatmul.mubr.f32.gmra.mrb[0].mxu0 %v138
  %v233 = vpop.f32.mrb[0].mxu0
  %v234 = vadd.f32 %v126, %v233
  %v235 = vpop.f32.mrb[0].mxu0
  %236 = vmatprep.mubr.f32.mxu0 0.0
  %237 = vmatmul.mubr.f32.gmra.mrb[0].mxu0 %v141
  %v238 = vpop.f32.mrb[0].mxu0
  %v239 = vadd.f32 %v127, %v238
  %v240 = vpop.f32.mrb[0].mxu0
  %241 = vmatprep.mubr.f32.mxu0 0.0
  %242 = vmatmul.mubr.f32.gmra.mrb[0].mxu0 %v144
  %v243 = vpop.f32.mrb[0].mxu0
  %v244 = vadd.f32 %v128, %v243
  %v245 = vpop.f32.mrb[0].mxu0
  %246 = vmatprep.mubr.f32.mxu0 0.0
  %247 = vmatmul.mubr.f32.gmra.mrb[0].mxu0 %v147
  %v248 = vpop.f32.mrb[0].mxu0
  %v249 = vadd.f32 %v129, %v248
  %v250 = vpop.f32.mrb[0].mxu0
  %251 = vmatprep.mubr.f32.mxu0 0.0
  %252 = vmatmul.mubr.f32.gmra.mrb[0].mxu0 %v150
  %v253 = vpop.f32.mrb[0].mxu0
  %v254 = vadd.f32 %v130, %v253
  %v255 = vpop.f32.mrb[0].mxu0
  %256 = vmatprep.mubr.f32.mxu0 0.0
  %257 = vmatmul.mubr.f32.gmra.mrb[0].mxu0 %v153
  %v258 = vpop.f32.mrb[0].mxu0
  %v259 = vadd.f32 %v131, %v258
  %v260 = vpop.f32.mrb[0].mxu0
  %261 = vmatprep.mubr.f32.mxu0 0.0
  %262 = vmatmul.mubr.f32.gmra.mrb[0].mxu0 %v156
  %v263 = vpop.f32.mrb[0].mxu0
  %v264 = vadd.f32 %v132, %v263
  %v265 = vpop.f32.mrb[0].mxu0
  %266 = vdwg.mxu0
  %v267 = vld [vmem:[%s5] sm:$0xff]
  %v268 = vld [vmem:[%s5 + $0x8] sm:$0x7]
  %vm269 = vcmask 89088
  %v271 = vsel %vm269, %v54, 0
  %v274 = vsel %vm269, %v55, 0
  %v277 = vsel %vm269, %v56, 0
  %v280 = vsel %vm269, %v57, 0
  %v283 = vsel %vm269, %v58, 0
  %v286 = vsel %vm269, %v59, 0
  %v289 = vsel %vm269, %v60, 0
  %v292 = vsel %vm269, %v61, 0
  %vm294 = vcmask 1042432
  %v296 = vsel %vm294, %v268, 0
  %298 = vmatprep.subr.mxu0 0.0
  %299 = vmatpush1.msra.mxu0 %v267
  %300 = vmatprep.subr.mxu0 0.0
  %301 = vmatpush1.msra.mxu0 %v296
  %302 = vmatprep.subr.mxu0 0.0
  %303 = vmatpush1.msra.mxu0 0.0
  %304 = vmatprep.subr.mxu0 0.0
  %305 = vmatpush1.msra.mxu0 0.0
  %306 = vmatprep.subr.mxu0 0.0
  %307 = vmatpush1.msra.mxu0 0.0
  %308 = vmatprep.subr.mxu0 0.0
  %309 = vmatpush1.msra.mxu0 0.0
  %310 = vmatprep.subr.mxu0 0.0
  %311 = vmatpush1.msra.mxu0 0.0
  %312 = vmatprep.subr.mxu0 0.0
  %313 = vmatpush1.msra.mxu0 0.0
  %314 = vmatprep.subr.mxu0 0.0
  %315 = vmatpush1.msra.mxu0 0.0
  %316 = vmatprep.subr.mxu0 0.0
  %317 = vmatpush1.msra.mxu0 0.0
  %318 = vmatprep.subr.mxu0 0.0
  %319 = vmatpush1.msra.mxu0 0.0
  %320 = vmatprep.subr.mxu0 0.0
  %321 = vmatpush1.msra.mxu0 0.0
  %322 = vmatprep.subr.mxu0 0.0
  %323 = vmatpush1.msra.mxu0 0.0
  %324 = vmatprep.subr.mxu0 0.0
  %325 = vmatpush1.msra.mxu0 0.0
  %326 = vmatprep.subr.mxu0 0.0
  %327 = vmatpush1.msra.mxu0 0.0
  %328 = vmatprep.subr.mxu0 0.0
  %329 = vmatpush1.msra.mxu0 0.0
  %330 = vmatprep.subr.mxu0 0.0
  %331 = vmatpush1.msra.mxu0 0.0
  %332 = vmatprep.subr.mxu0 0.0
  %333 = vmatpush1.msra.mxu0 0.0
  %334 = vmatprep.subr.mxu0 0.0
  %335 = vmatpush1.msra.mxu0 0.0
  %336 = vmatprep.subr.mxu0 0.0
  %337 = vmatpush1.msra.mxu0 0.0
  %338 = vmatprep.subr.mxu0 0.0
  %339 = vmatpush1.msra.mxu0 0.0
  %340 = vmatprep.subr.mxu0 0.0
  %341 = vmatpush1.msra.mxu0 0.0
  %342 = vmatprep.subr.mxu0 0.0
  %343 = vmatpush1.msra.mxu0 0.0
  %344 = vmatprep.subr.mxu0 0.0
  %345 = vmatpush1.msra.mxu0 0.0
  %346 = vmatprep.subr.mxu0 0.0
  %347 = vmatpush1.msra.mxu0 0.0
  %348 = vmatprep.subr.mxu0 0.0
  %349 = vmatpush1.msra.mxu0 0.0
  %350 = vmatprep.subr.mxu0 0.0
  %351 = vmatpush1.msra.mxu0 0.0
  %352 = vmatprep.subr.mxu0 0.0
  %353 = vmatpush1.msra.mxu0 0.0
  %354 = vmatprep.subr.mxu0 0.0
  %355 = vmatpush1.msra.mxu0 0.0
  %356 = vmatprep.subr.mxu0 0.0
  %357 = vmatpush1.msra.mxu0 0.0
  %358 = vmatprep.subr.mxu0 0.0
  %359 = vmatpush1.msra.mxu0 0.0
  %360 = vmatprep.subr.mxu0 0.0
  %361 = vmatpush1.msra.mxu0 0.0
  %362 = vmatprep.mubr.f32.mxu0 0.0
  %363 = vmatmul.mubr.f32.gmra.mrb[0].mxu0 %v271
  %v364 = vpop.f32.mrb[0].mxu0
  %v365 = vadd.f32 0.0, %v364
  %v366 = vpop.f32.mrb[0].mxu0
  %367 = vmatprep.mubr.f32.mxu0 0.0
  %368 = vmatmul.mubr.f32.gmra.mrb[0].mxu0 %v274
  %v369 = vpop.f32.mrb[0].mxu0
  %v370 = vadd.f32 0.0, %v369
  %v371 = vpop.f32.mrb[0].mxu0
  %372 = vmatprep.mubr.f32.mxu0 0.0
  %373 = vmatmul.mubr.f32.gmra.mrb[0].mxu0 %v277
  %v374 = vpop.f32.mrb[0].mxu0
  %v375 = vadd.f32 0.0, %v374
  %v376 = vpop.f32.mrb[0].mxu0
  %377 = vmatprep.mubr.f32.mxu0 0.0
  %378 = vmatmul.mubr.f32.gmra.mrb[0].mxu0 %v280
  %v379 = vpop.f32.mrb[0].mxu0
  %v380 = vadd.f32 0.0, %v379
  %v381 = vpop.f32.mrb[0].mxu0
  %382 = vmatprep.mubr.f32.mxu0 0.0
  %383 = vmatmul.mubr.f32.gmra.mrb[0].mxu0 %v283
  %v384 = vpop.f32.mrb[0].mxu0
  %v385 = vadd.f32 0.0, %v384
  %v386 = vpop.f32.mrb[0].mxu0
  %387 = vmatprep.mubr.f32.mxu0 0.0
  %388 = vmatmul.mubr.f32.gmra.mrb[0].mxu0 %v286
  %v389 = vpop.f32.mrb[0].mxu0
  %v390 = vadd.f32 0.0, %v389
  %v391 = vpop.f32.mrb[0].mxu0
  %392 = vmatprep.mubr.f32.mxu0 0.0
  %393 = vmatmul.mubr.f32.gmra.mrb[0].mxu0 %v289
  %v394 = vpop.f32.mrb[0].mxu0
  %v395 = vadd.f32 0.0, %v394
  %v396 = vpop.f32.mrb[0].mxu0
  %397 = vmatprep.mubr.f32.mxu0 0.0
  %398 = vmatmul.mubr.f32.gmra.mrb[0].mxu0 %v292
  %v399 = vpop.f32.mrb[0].mxu0
  %v400 = vadd.f32 0.0, %v399
  %v401 = vpop.f32.mrb[0].mxu0
  %402 = vdwg.mxu0
  %v403 = vadd.f32 %v229, %v365
  %v404 = vadd.f32 %v234, %v370
  %v405 = vadd.f32 %v239, %v375
  %v406 = vadd.f32 %v244, %v380
  %v407 = vadd.f32 %v249, %v385
  %v408 = vadd.f32 %v254, %v390
  %v409 = vadd.f32 %v259, %v395
  %v410 = vadd.f32 %v264, %v400
  %v411 = vld [vmem:[%s7] sm:$0x1]
  %v413 = vlaneseq
  %v414 = vshrl.u32 %v413, 7
  %v415 = vsub.s32 0, %v414
  %v416 = vrot.slane %v411, %v415
  %v418 = vadd.f32 %v403, %v416
  %v419 = vadd.f32 %v404, %v416
  %v420 = vadd.f32 %v405, %v416
  %v421 = vadd.f32 %v406, %v416
  %v422 = vadd.f32 %v407, %v416
  %v423 = vadd.f32 %v408, %v416
  %v424 = vadd.f32 %v409, %v416
  %v425 = vadd.f32 %v410, %v416
  %s426 = scalar_lea.vmem %s3, 8
  %v427 = vld [vmem:[%s426] sm:$0x3f]
  %s428 = scalar_lea.vmem %s4, 1
  %v429 = vld [vmem:[%s428] sm:$0x1]
  %v431 = vlaneseq
  %v432 = vshrl.u32 %v431, 7
  %v433 = vsub.s32 0, %v432
  %v434 = vrot.slane %v429, %v433
  %v436 = vmul.f32 %v82, %v434
  %v437 = vmul.f32 %v87, %v434
  %v438 = vmul.f32 %v92, %v434
  %v439 = vmul.f32 %v97, %v434
  %v440 = vmul.f32 %v102, %v434
  %v441 = vmul.f32 %v107, %v434
  %v442 = vmul.f32 %v112, %v434
  %v443 = vmul.f32 %v117, %v434
  %v445 = vsel %vm158, %v427, 0
  %447 = vmatprep.subr.mxu0 0.0
  %448 = vmatpush1.msra.mxu0 %v445
  %449 = vmatprep.subr.mxu0 0.0
  %450 = vmatpush1.msra.mxu0 0.0
  %451 = vmatprep.subr.mxu0 0.0
  %452 = vmatpush1.msra.mxu0 0.0
  %453 = vmatprep.subr.mxu0 0.0
  %454 = vmatpush1.msra.mxu0 0.0
  %455 = vmatprep.subr.mxu0 0.0
  %456 = vmatpush1.msra.mxu0 0.0
  %457 = vmatprep.subr.mxu0 0.0
  %458 = vmatpush1.msra.mxu0 0.0
  %459 = vmatprep.subr.mxu0 0.0
  %460 = vmatpush1.msra.mxu0 0.0
  %461 = vmatprep.subr.mxu0 0.0
  %462 = vmatpush1.msra.mxu0 0.0
  %463 = vmatprep.subr.mxu0 0.0
  %464 = vmatpush1.msra.mxu0 0.0
  %465 = vmatprep.subr.mxu0 0.0
  %466 = vmatpush1.msra.mxu0 0.0
  %467 = vmatprep.subr.mxu0 0.0
  %468 = vmatpush1.msra.mxu0 0.0
  %469 = vmatprep.subr.mxu0 0.0
  %470 = vmatpush1.msra.mxu0 0.0
  %471 = vmatprep.subr.mxu0 0.0
  %472 = vmatpush1.msra.mxu0 0.0
  %473 = vmatprep.subr.mxu0 0.0
  %474 = vmatpush1.msra.mxu0 0.0
  %475 = vmatprep.subr.mxu0 0.0
  %476 = vmatpush1.msra.mxu0 0.0
  %477 = vmatprep.subr.mxu0 0.0
  %478 = vmatpush1.msra.mxu0 0.0
  %479 = vmatprep.subr.mxu0 0.0
  %480 = vmatpush1.msra.mxu0 0.0
  %481 = vmatprep.subr.mxu0 0.0
  %482 = vmatpush1.msra.mxu0 0.0
  %483 = vmatprep.subr.mxu0 0.0
  %484 = vmatpush1.msra.mxu0 0.0
  %485 = vmatprep.subr.mxu0 0.0
  %486 = vmatpush1.msra.mxu0 0.0
  %487 = vmatprep.subr.mxu0 0.0
  %488 = vmatpush1.msra.mxu0 0.0
  %489 = vmatprep.subr.mxu0 0.0
  %490 = vmatpush1.msra.mxu0 0.0
  %491 = vmatprep.subr.mxu0 0.0
  %492 = vmatpush1.msra.mxu0 0.0
  %493 = vmatprep.subr.mxu0 0.0
  %494 = vmatpush1.msra.mxu0 0.0
  %495 = vmatprep.subr.mxu0 0.0
  %496 = vmatpush1.msra.mxu0 0.0
  %497 = vmatprep.subr.mxu0 0.0
  %498 = vmatpush1.msra.mxu0 0.0
  %499 = vmatprep.subr.mxu0 0.0
  %500 = vmatpush1.msra.mxu0 0.0
  %501 = vmatprep.subr.mxu0 0.0
  %502 = vmatpush1.msra.mxu0 0.0
  %503 = vmatprep.subr.mxu0 0.0
  %504 = vmatpush1.msra.mxu0 0.0
  %505 = vmatprep.subr.mxu0 0.0
  %506 = vmatpush1.msra.mxu0 0.0
  %507 = vmatprep.subr.mxu0 0.0
  %508 = vmatpush1.msra.mxu0 0.0
  %509 = vmatprep.subr.mxu0 0.0
  %510 = vmatpush1.msra.mxu0 0.0
  %511 = vmatprep.mubr.f32.mxu0 0.0
  %512 = vmatmul.mubr.f32.gmra.mrb[0].mxu0 %v135
  %v513 = vpop.f32.mrb[0].mxu0
  %v514 = vadd.f32 %v436, %v513
  %v515 = vpop.f32.mrb[0].mxu0
  %516 = vmatprep.mubr.f32.mxu0 0.0
  %517 = vmatmul.mubr.f32.gmra.mrb[0].mxu0 %v138
  %v518 = vpop.f32.mrb[0].mxu0
  %v519 = vadd.f32 %v437, %v518
  %v520 = vpop.f32.mrb[0].mxu0
  %521 = vmatprep.mubr.f32.mxu0 0.0
  %522 = vmatmul.mubr.f32.gmra.mrb[0].mxu0 %v141
  %v523 = vpop.f32.mrb[0].mxu0
  %v524 = vadd.f32 %v438, %v523
  %v525 = vpop.f32.mrb[0].mxu0
  %526 = vmatprep.mubr.f32.mxu0 0.0
  %527 = vmatmul.mubr.f32.gmra.mrb[0].mxu0 %v144
  %v528 = vpop.f32.mrb[0].mxu0
  %v529 = vadd.f32 %v439, %v528
  %v530 = vpop.f32.mrb[0].mxu0
  %531 = vmatprep.mubr.f32.mxu0 0.0
  %532 = vmatmul.mubr.f32.gmra.mrb[0].mxu0 %v147
  %v533 = vpop.f32.mrb[0].mxu0
  %v534 = vadd.f32 %v440, %v533
  %v535 = vpop.f32.mrb[0].mxu0
  %536 = vmatprep.mubr.f32.mxu0 0.0
  %537 = vmatmul.mubr.f32.gmra.mrb[0].mxu0 %v150
  %v538 = vpop.f32.mrb[0].mxu0
  %v539 = vadd.f32 %v441, %v538
  %v540 = vpop.f32.mrb[0].mxu0
  %541 = vmatprep.mubr.f32.mxu0 0.0
  %542 = vmatmul.mubr.f32.gmra.mrb[0].mxu0 %v153
  %v543 = vpop.f32.mrb[0].mxu0
  %v544 = vadd.f32 %v442, %v543
  %v545 = vpop.f32.mrb[0].mxu0
  %546 = vmatprep.mubr.f32.mxu0 0.0
  %547 = vmatmul.mubr.f32.gmra.mrb[0].mxu0 %v156
  %v548 = vpop.f32.mrb[0].mxu0
  %v549 = vadd.f32 %v443, %v548
  %v550 = vpop.f32.mrb[0].mxu0
  %551 = vdwg.mxu0
  %s552 = scalar_lea.vmem %s5, 16
  %v553 = vld [vmem:[%s552] sm:$0xff]
  %v554 = vld [vmem:[%s552 + $0x8] sm:$0x7]
  %v556 = vsel %vm294, %v554, 0
  %558 = vmatprep.subr.mxu0 0.0
  %559 = vmatpush1.msra.mxu0 %v553
  %560 = vmatprep.subr.mxu0 0.0
  %561 = vmatpush1.msra.mxu0 %v556
  %562 = vmatprep.subr.mxu0 0.0
  %563 = vmatpush1.msra.mxu0 0.0
  %564 = vmatprep.subr.mxu0 0.0
  %565 = vmatpush1.msra.mxu0 0.0
  %566 = vmatprep.subr.mxu0 0.0
  %567 = vmatpush1.msra.mxu0 0.0
  %568 = vmatprep.subr.mxu0 0.0
  %569 = vmatpush1.msra.mxu0 0.0
  %570 = vmatprep.subr.mxu0 0.0
  %571 = vmatpush1.msra.mxu0 0.0
  %572 = vmatprep.subr.mxu0 0.0
  %573 = vmatpush1.msra.mxu0 0.0
  %574 = vmatprep.subr.mxu0 0.0
  %575 = vmatpush1.msra.mxu0 0.0
  %576 = vmatprep.subr.mxu0 0.0
  %577 = vmatpush1.msra.mxu0 0.0
  %578 = vmatprep.subr.mxu0 0.0
  %579 = vmatpush1.msra.mxu0 0.0
  %580 = vmatprep.subr.mxu0 0.0
  %581 = vmatpush1.msra.mxu0 0.0
  %582 = vmatprep.subr.mxu0 0.0
  %583 = vmatpush1.msra.mxu0 0.0
  %584 = vmatprep.subr.mxu0 0.0
  %585 = vmatpush1.msra.mxu0 0.0
  %586 = vmatprep.subr.mxu0 0.0
  %587 = vmatpush1.msra.mxu0 0.0
  %588 = vmatprep.subr.mxu0 0.0
  %589 = vmatpush1.msra.mxu0 0.0
  %590 = vmatprep.subr.mxu0 0.0
  %591 = vmatpush1.msra.mxu0 0.0
  %592 = vmatprep.subr.mxu0 0.0
  %593 = vmatpush1.msra.mxu0 0.0
  %594 = vmatprep.subr.mxu0 0.0
  %595 = vmatpush1.msra.mxu0 0.0
  %596 = vmatprep.subr.mxu0 0.0
  %597 = vmatpush1.msra.mxu0 0.0
  %598 = vmatprep.subr.mxu0 0.0
  %599 = vmatpush1.msra.mxu0 0.0
  %600 = vmatprep.subr.mxu0 0.0
  %601 = vmatpush1.msra.mxu0 0.0
  %602 = vmatprep.subr.mxu0 0.0
  %603 = vmatpush1.msra.mxu0 0.0
  %604 = vmatprep.subr.mxu0 0.0
  %605 = vmatpush1.msra.mxu0 0.0
  %606 = vmatprep.subr.mxu0 0.0
  %607 = vmatpush1.msra.mxu0 0.0
  %608 = vmatprep.subr.mxu0 0.0
  %609 = vmatpush1.msra.mxu0 0.0
  %610 = vmatprep.subr.mxu0 0.0
  %611 = vmatpush1.msra.mxu0 0.0
  %612 = vmatprep.subr.mxu0 0.0
  %613 = vmatpush1.msra.mxu0 0.0
  %614 = vmatprep.subr.mxu0 0.0
  %615 = vmatpush1.msra.mxu0 0.0
  %616 = vmatprep.subr.mxu0 0.0
  %617 = vmatpush1.msra.mxu0 0.0
  %618 = vmatprep.subr.mxu0 0.0
  %619 = vmatpush1.msra.mxu0 0.0
  %620 = vmatprep.subr.mxu0 0.0
  %621 = vmatpush1.msra.mxu0 0.0
  %622 = vmatprep.mubr.f32.mxu0 0.0
  %623 = vmatmul.mubr.f32.gmra.mrb[0].mxu0 %v271
  %v624 = vpop.f32.mrb[0].mxu0
  %v625 = vadd.f32 0.0, %v624
  %v626 = vpop.f32.mrb[0].mxu0
  %627 = vmatprep.mubr.f32.mxu0 0.0
  %628 = vmatmul.mubr.f32.gmra.mrb[0].mxu0 %v274
  %v629 = vpop.f32.mrb[0].mxu0
  %v630 = vadd.f32 0.0, %v629
  %v631 = vpop.f32.mrb[0].mxu0
  %632 = vmatprep.mubr.f32.mxu0 0.0
  %633 = vmatmul.mubr.f32.gmra.mrb[0].mxu0 %v277
  %v634 = vpop.f32.mrb[0].mxu0
  %v635 = vadd.f32 0.0, %v634
  %v636 = vpop.f32.mrb[0].mxu0
  %637 = vmatprep.mubr.f32.mxu0 0.0
  %638 = vmatmul.mubr.f32.gmra.mrb[0].mxu0 %v280
  %v639 = vpop.f32.mrb[0].mxu0
  %v640 = vadd.f32 0.0, %v639
  %v641 = vpop.f32.mrb[0].mxu0
  %642 = vmatprep.mubr.f32.mxu0 0.0
  %643 = vmatmul.mubr.f32.gmra.mrb[0].mxu0 %v283
  %v644 = vpop.f32.mrb[0].mxu0
  %v645 = vadd.f32 0.0, %v644
  %v646 = vpop.f32.mrb[0].mxu0
  %647 = vmatprep.mubr.f32.mxu0 0.0
  %648 = vmatmul.mubr.f32.gmra.mrb[0].mxu0 %v286
  %v649 = vpop.f32.mrb[0].mxu0
  %v650 = vadd.f32 0.0, %v649
  %v651 = vpop.f32.mrb[0].mxu0
  %652 = vmatprep.mubr.f32.mxu0 0.0
  %653 = vmatmul.mubr.f32.gmra.mrb[0].mxu0 %v289
  %v654 = vpop.f32.mrb[0].mxu0
  %v655 = vadd.f32 0.0, %v654
  %v656 = vpop.f32.mrb[0].mxu0
  %657 = vmatprep.mubr.f32.mxu0 0.0
  %658 = vmatmul.mubr.f32.gmra.mrb[0].mxu0 %v292
  %v659 = vpop.f32.mrb[0].mxu0
  %v660 = vadd.f32 0.0, %v659
  %v661 = vpop.f32.mrb[0].mxu0
  %662 = vdwg.mxu0
  %v663 = vadd.f32 %v514, %v625
  %v664 = vadd.f32 %v519, %v630
  %v665 = vadd.f32 %v524, %v635
  %v666 = vadd.f32 %v529, %v640
  %v667 = vadd.f32 %v534, %v645
  %v668 = vadd.f32 %v539, %v650
  %v669 = vadd.f32 %v544, %v655
  %v670 = vadd.f32 %v549, %v660
  %v671 = vld [vmem:[%s8] sm:$0x1]
  %v673 = vlaneseq
  %v674 = vshrl.u32 %v673, 7
  %v675 = vsub.s32 0, %v674
  %v676 = vrot.slane %v671, %v675
  %v678 = vadd.f32 %v663, %v676
  %v679 = vadd.f32 %v664, %v676
  %v680 = vadd.f32 %v665, %v676
  %v681 = vadd.f32 %v666, %v676
  %v682 = vadd.f32 %v667, %v676
  %v683 = vadd.f32 %v668, %v676
  %v684 = vadd.f32 %v669, %v676
  %v685 = vadd.f32 %v670, %v676
  %s686 = scalar_lea.vmem %s3, 16
  %v687 = vld [vmem:[%s686] sm:$0x3f]
  %s688 = scalar_lea.vmem %s4, 2
  %v689 = vld [vmem:[%s688] sm:$0x1]
  %v691 = vlaneseq
  %v692 = vshrl.u32 %v691, 7
  %v693 = vsub.s32 0, %v692
  %v694 = vrot.slane %v689, %v693
  %v696 = vmul.f32 %v82, %v694
  %v697 = vmul.f32 %v87, %v694
  %v698 = vmul.f32 %v92, %v694
  %v699 = vmul.f32 %v97, %v694
  %v700 = vmul.f32 %v102, %v694
  %v701 = vmul.f32 %v107, %v694
  %v702 = vmul.f32 %v112, %v694
  %v703 = vmul.f32 %v117, %v694
  %v705 = vsel %vm158, %v687, 0
  %707 = vmatprep.subr.mxu0 0.0
  %708 = vmatpush1.msra.mxu0 %v705
  %709 = vmatprep.subr.mxu0 0.0
  %710 = vmatpush1.msra.mxu0 0.0
  %711 = vmatprep.subr.mxu0 0.0
  %712 = vmatpush1.msra.mxu0 0.0
  %713 = vmatprep.subr.mxu0 0.0
  %714 = vmatpush1.msra.mxu0 0.0
  %715 = vmatprep.subr.mxu0 0.0
  %716 = vmatpush1.msra.mxu0 0.0
  %717 = vmatprep.subr.mxu0 0.0
  %718 = vmatpush1.msra.mxu0 0.0
  %719 = vmatprep.subr.mxu0 0.0
  %720 = vmatpush1.msra.mxu0 0.0
  %721 = vmatprep.subr.mxu0 0.0
  %722 = vmatpush1.msra.mxu0 0.0
  %723 = vmatprep.subr.mxu0 0.0
  %724 = vmatpush1.msra.mxu0 0.0
  %725 = vmatprep.subr.mxu0 0.0
  %726 = vmatpush1.msra.mxu0 0.0
  %727 = vmatprep.subr.mxu0 0.0
  %728 = vmatpush1.msra.mxu0 0.0
  %729 = vmatprep.subr.mxu0 0.0
  %730 = vmatpush1.msra.mxu0 0.0
  %731 = vmatprep.subr.mxu0 0.0
  %732 = vmatpush1.msra.mxu0 0.0
  %733 = vmatprep.subr.mxu0 0.0
  %734 = vmatpush1.msra.mxu0 0.0
  %735 = vmatprep.subr.mxu0 0.0
  %736 = vmatpush1.msra.mxu0 0.0
  %737 = vmatprep.subr.mxu0 0.0
  %738 = vmatpush1.msra.mxu0 0.0
  %739 = vmatprep.subr.mxu0 0.0
  %740 = vmatpush1.msra.mxu0 0.0
  %741 = vmatprep.subr.mxu0 0.0
  %742 = vmatpush1.msra.mxu0 0.0
  %743 = vmatprep.subr.mxu0 0.0
  %744 = vmatpush1.msra.mxu0 0.0
  %745 = vmatprep.subr.mxu0 0.0
  %746 = vmatpush1.msra.mxu0 0.0
  %747 = vmatprep.subr.mxu0 0.0
  %748 = vmatpush1.msra.mxu0 0.0
  %749 = vmatprep.subr.mxu0 0.0
  %750 = vmatpush1.msra.mxu0 0.0
  %751 = vmatprep.subr.mxu0 0.0
  %752 = vmatpush1.msra.mxu0 0.0
  %753 = vmatprep.subr.mxu0 0.0
  %754 = vmatpush1.msra.mxu0 0.0
  %755 = vmatprep.subr.mxu0 0.0
  %756 = vmatpush1.msra.mxu0 0.0
  %757 = vmatprep.subr.mxu0 0.0
  %758 = vmatpush1.msra.mxu0 0.0
  %759 = vmatprep.subr.mxu0 0.0
  %760 = vmatpush1.msra.mxu0 0.0
  %761 = vmatprep.subr.mxu0 0.0
  %762 = vmatpush1.msra.mxu0 0.0
  %763 = vmatprep.subr.mxu0 0.0
  %764 = vmatpush1.msra.mxu0 0.0
  %765 = vmatprep.subr.mxu0 0.0
  %766 = vmatpush1.msra.mxu0 0.0
  %767 = vmatprep.subr.mxu0 0.0
  %768 = vmatpush1.msra.mxu0 0.0
  %769 = vmatprep.subr.mxu0 0.0
  %770 = vmatpush1.msra.mxu0 0.0
  %771 = vmatprep.mubr.f32.mxu0 0.0
  %772 = vmatmul.mubr.f32.gmra.mrb[0].mxu0 %v135
  %v773 = vpop.f32.mrb[0].mxu0
  %v774 = vadd.f32 %v696, %v773
  %v775 = vpop.f32.mrb[0].mxu0
  %776 = vmatprep.mubr.f32.mxu0 0.0
  %777 = vmatmul.mubr.f32.gmra.mrb[0].mxu0 %v138
  %v778 = vpop.f32.mrb[0].mxu0
  %v779 = vadd.f32 %v697, %v778
  %v780 = vpop.f32.mrb[0].mxu0
  %781 = vmatprep.mubr.f32.mxu0 0.0
  %782 = vmatmul.mubr.f32.gmra.mrb[0].mxu0 %v141
  %v783 = vpop.f32.mrb[0].mxu0
  %v784 = vadd.f32 %v698, %v783
  %v785 = vpop.f32.mrb[0].mxu0
  %786 = vmatprep.mubr.f32.mxu0 0.0
  %787 = vmatmul.mubr.f32.gmra.mrb[0].mxu0 %v144
  %v788 = vpop.f32.mrb[0].mxu0
  %v789 = vadd.f32 %v699, %v788
  %v790 = vpop.f32.mrb[0].mxu0
  %791 = vmatprep.mubr.f32.mxu0 0.0
  %792 = vmatmul.mubr.f32.gmra.mrb[0].mxu0 %v147
  %v793 = vpop.f32.mrb[0].mxu0
  %v794 = vadd.f32 %v700, %v793
  %v795 = vpop.f32.mrb[0].mxu0
  %796 = vmatprep.mubr.f32.mxu0 0.0
  %797 = vmatmul.mubr.f32.gmra.mrb[0].mxu0 %v150
  %v798 = vpop.f32.mrb[0].mxu0
  %v799 = vadd.f32 %v701, %v798
  %v800 = vpop.f32.mrb[0].mxu0
  %801 = vmatprep.mubr.f32.mxu0 0.0
  %802 = vmatmul.mubr.f32.gmra.mrb[0].mxu0 %v153
  %v803 = vpop.f32.mrb[0].mxu0
  %v804 = vadd.f32 %v702, %v803
  %v805 = vpop.f32.mrb[0].mxu0
  %806 = vmatprep.mubr.f32.mxu0 0.0
  %807 = vmatmul.mubr.f32.gmra.mrb[0].mxu0 %v156
  %v808 = vpop.f32.mrb[0].mxu0
  %v809 = vadd.f32 %v703, %v808
  %v810 = vpop.f32.mrb[0].mxu0
  %811 = vdwg.mxu0
  %s812 = scalar_lea.vmem %s5, 32
  %v813 = vld [vmem:[%s812] sm:$0xff]
  %v814 = vld [vmem:[%s812 + $0x8] sm:$0x7]
  %v816 = vsel %vm294, %v814, 0
  %818 = vmatprep.subr.mxu0 0.0
  %819 = vmatpush1.msra.mxu0 %v813
  %820 = vmatprep.subr.mxu0 0.0
  %821 = vmatpush1.msra.mxu0 %v816
  %822 = vmatprep.subr.mxu0 0.0
  %823 = vmatpush1.msra.mxu0 0.0
  %824 = vmatprep.subr.mxu0 0.0
  %825 = vmatpush1.msra.mxu0 0.0
  %826 = vmatprep.subr.mxu0 0.0
  %827 = vmatpush1.msra.mxu0 0.0
  %828 = vmatprep.subr.mxu0 0.0
  %829 = vmatpush1.msra.mxu0 0.0
  %830 = vmatprep.subr.mxu0 0.0
  %831 = vmatpush1.msra.mxu0 0.0
  %832 = vmatprep.subr.mxu0 0.0
  %833 = vmatpush1.msra.mxu0 0.0
  %834 = vmatprep.subr.mxu0 0.0
  %835 = vmatpush1.msra.mxu0 0.0
  %836 = vmatprep.subr.mxu0 0.0
  %837 = vmatpush1.msra.mxu0 0.0
  %838 = vmatprep.subr.mxu0 0.0
  %839 = vmatpush1.msra.mxu0 0.0
  %840 = vmatprep.subr.mxu0 0.0
  %841 = vmatpush1.msra.mxu0 0.0
  %842 = vmatprep.subr.mxu0 0.0
  %843 = vmatpush1.msra.mxu0 0.0
  %844 = vmatprep.subr.mxu0 0.0
  %845 = vmatpush1.msra.mxu0 0.0
  %846 = vmatprep.subr.mxu0 0.0
  %847 = vmatpush1.msra.mxu0 0.0
  %848 = vmatprep.subr.mxu0 0.0
  %849 = vmatpush1.msra.mxu0 0.0
  %850 = vmatprep.subr.mxu0 0.0
  %851 = vmatpush1.msra.mxu0 0.0
  %852 = vmatprep.subr.mxu0 0.0
  %853 = vmatpush1.msra.mxu0 0.0
  %854 = vmatprep.subr.mxu0 0.0
  %855 = vmatpush1.msra.mxu0 0.0
  %856 = vmatprep.subr.mxu0 0.0
  %857 = vmatpush1.msra.mxu0 0.0
  %858 = vmatprep.subr.mxu0 0.0
  %859 = vmatpush1.msra.mxu0 0.0
  %860 = vmatprep.subr.mxu0 0.0
  %861 = vmatpush1.msra.mxu0 0.0
  %862 = vmatprep.subr.mxu0 0.0
  %863 = vmatpush1.msra.mxu0 0.0
  %864 = vmatprep.subr.mxu0 0.0
  %865 = vmatpush1.msra.mxu0 0.0
  %866 = vmatprep.subr.mxu0 0.0
  %867 = vmatpush1.msra.mxu0 0.0
  %868 = vmatprep.subr.mxu0 0.0
  %869 = vmatpush1.msra.mxu0 0.0
  %870 = vmatprep.subr.mxu0 0.0
  %871 = vmatpush1.msra.mxu0 0.0
  %872 = vmatprep.subr.mxu0 0.0
  %873 = vmatpush1.msra.mxu0 0.0
  %874 = vmatprep.subr.mxu0 0.0
  %875 = vmatpush1.msra.mxu0 0.0
  %876 = vmatprep.subr.mxu0 0.0
  %877 = vmatpush1.msra.mxu0 0.0
  %878 = vmatprep.subr.mxu0 0.0
  %879 = vmatpush1.msra.mxu0 0.0
  %880 = vmatprep.subr.mxu0 0.0
  %881 = vmatpush1.msra.mxu0 0.0
  %882 = vmatprep.mubr.f32.mxu0 0.0
  %883 = vmatmul.mubr.f32.gmra.mrb[0].mxu0 %v271
  %v884 = vpop.f32.mrb[0].mxu0
  %v885 = vadd.f32 0.0, %v884
  %v886 = vpop.f32.mrb[0].mxu0
  %887 = vmatprep.mubr.f32.mxu0 0.0
  %888 = vmatmul.mubr.f32.gmra.mrb[0].mxu0 %v274
  %v889 = vpop.f32.mrb[0].mxu0
  %v890 = vadd.f32 0.0, %v889
  %v891 = vpop.f32.mrb[0].mxu0
  %892 = vmatprep.mubr.f32.mxu0 0.0
  %893 = vmatmul.mubr.f32.gmra.mrb[0].mxu0 %v277
  %v894 = vpop.f32.mrb[0].mxu0
  %v895 = vadd.f32 0.0, %v894
  %v896 = vpop.f32.mrb[0].mxu0
  %897 = vmatprep.mubr.f32.mxu0 0.0
  %898 = vmatmul.mubr.f32.gmra.mrb[0].mxu0 %v280
  %v899 = vpop.f32.mrb[0].mxu0
  %v900 = vadd.f32 0.0, %v899
  %v901 = vpop.f32.mrb[0].mxu0
  %902 = vmatprep.mubr.f32.mxu0 0.0
  %903 = vmatmul.mubr.f32.gmra.mrb[0].mxu0 %v283
  %v904 = vpop.f32.mrb[0].mxu0
  %v905 = vadd.f32 0.0, %v904
  %v906 = vpop.f32.mrb[0].mxu0
  %907 = vmatprep.mubr.f32.mxu0 0.0
  %908 = vmatmul.mubr.f32.gmra.mrb[0].mxu0 %v286
  %v909 = vpop.f32.mrb[0].mxu0
  %v910 = vadd.f32 0.0, %v909
  %v911 = vpop.f32.mrb[0].mxu0
  %912 = vmatprep.mubr.f32.mxu0 0.0
  %913 = vmatmul.mubr.f32.gmra.mrb[0].mxu0 %v289
  %v914 = vpop.f32.mrb[0].mxu0
  %v915 = vadd.f32 0.0, %v914
  %v916 = vpop.f32.mrb[0].mxu0
  %917 = vmatprep.mubr.f32.mxu0 0.0
  %918 = vmatmul.mubr.f32.gmra.mrb[0].mxu0 %v292
  %v919 = vpop.f32.mrb[0].mxu0
  %v920 = vadd.f32 0.0, %v919
  %v921 = vpop.f32.mrb[0].mxu0
  %922 = vdwg.mxu0
  %v923 = vadd.f32 %v774, %v885
  %v924 = vadd.f32 %v779, %v890
  %v925 = vadd.f32 %v784, %v895
  %v926 = vadd.f32 %v789, %v900
  %v927 = vadd.f32 %v794, %v905
  %v928 = vadd.f32 %v799, %v910
  %v929 = vadd.f32 %v804, %v915
  %v930 = vadd.f32 %v809, %v920
  %v931 = vld [vmem:[%s9] sm:$0x1]
  %v933 = vlaneseq
  %v934 = vshrl.u32 %v933, 7
  %v935 = vsub.s32 0, %v934
  %v936 = vrot.slane %v931, %v935
  %v938 = vadd.f32 %v923, %v936
  %v939 = vadd.f32 %v924, %v936
  %v940 = vadd.f32 %v925, %v936
  %v941 = vadd.f32 %v926, %v936
  %v942 = vadd.f32 %v927, %v936
  %v943 = vadd.f32 %v928, %v936
  %v944 = vadd.f32 %v929, %v936
  %v945 = vadd.f32 %v930, %v936
  %vm946 = vcmask 261120
  %v948 = vsel %vm946, 0.0, 0
  %950 = vmatprep.subr.mxu0 0.0
  %951 = vmatpush1.msra.mxu0 %v62
  %952 = vmatprep.subr.mxu0 0.0
  %953 = vmatpush1.msra.mxu0 %v63
  %954 = vmatprep.subr.mxu0 0.0
  %955 = vmatpush1.msra.mxu0 %v64
  %956 = vmatprep.subr.mxu0 0.0
  %957 = vmatpush1.msra.mxu0 %v65
  %958 = vmatprep.subr.mxu0 0.0
  %959 = vmatpush1.msra.mxu0 0.0
  %960 = vmatprep.subr.mxu0 0.0
  %961 = vmatpush1.msra.mxu0 0.0
  %962 = vmatprep.subr.mxu0 0.0
  %963 = vmatpush1.msra.mxu0 0.0
  %964 = vmatprep.subr.mxu0 0.0
  %965 = vmatpush1.msra.mxu0 0.0
  %966 = vmatprep.subr.mxu0 0.0
  %967 = vmatpush1.msra.mxu0 0.0
  %968 = vmatprep.subr.mxu0 0.0
  %969 = vmatpush1.msra.mxu0 0.0
  %970 = vmatprep.subr.mxu0 0.0
  %971 = vmatpush1.msra.mxu0 0.0
  %972 = vmatprep.subr.mxu0 0.0
  %973 = vmatpush1.msra.mxu0 0.0
  %974 = vmatprep.subr.mxu0 0.0
  %975 = vmatpush1.msra.mxu0 0.0
  %976 = vmatprep.subr.mxu0 0.0
  %977 = vmatpush1.msra.mxu0 0.0
  %978 = vmatprep.subr.mxu0 0.0
  %979 = vmatpush1.msra.mxu0 0.0
  %980 = vmatprep.subr.mxu0 0.0
  %981 = vmatpush1.msra.mxu0 0.0
  %982 = vmatprep.subr.mxu0 0.0
  %983 = vmatpush1.msra.mxu0 0.0
  %984 = vmatprep.subr.mxu0 0.0
  %985 = vmatpush1.msra.mxu0 0.0
  %986 = vmatprep.subr.mxu0 0.0
  %987 = vmatpush1.msra.mxu0 0.0
  %988 = vmatprep.subr.mxu0 0.0
  %989 = vmatpush1.msra.mxu0 0.0
  %990 = vmatprep.subr.mxu0 0.0
  %991 = vmatpush1.msra.mxu0 0.0
  %992 = vmatprep.subr.mxu0 0.0
  %993 = vmatpush1.msra.mxu0 0.0
  %994 = vmatprep.subr.mxu0 0.0
  %995 = vmatpush1.msra.mxu0 0.0
  %996 = vmatprep.subr.mxu0 0.0
  %997 = vmatpush1.msra.mxu0 0.0
  %998 = vmatprep.subr.mxu0 0.0
  %999 = vmatpush1.msra.mxu0 0.0
  %1000 = vmatprep.subr.mxu0 0.0
  %1001 = vmatpush1.msra.mxu0 0.0
  %1002 = vmatprep.subr.mxu0 0.0
  %1003 = vmatpush1.msra.mxu0 0.0
  %1004 = vmatprep.subr.mxu0 0.0
  %1005 = vmatpush1.msra.mxu0 0.0
  %1006 = vmatprep.subr.mxu0 0.0
  %1007 = vmatpush1.msra.mxu0 0.0
  %1008 = vmatprep.subr.mxu0 0.0
  %1009 = vmatpush1.msra.mxu0 0.0
  %1010 = vmatprep.subr.mxu0 0.0
  %1011 = vmatpush1.msra.mxu0 0.0
  %1012 = vmatprep.subr.mxu0 0.0
  %1013 = vmatpush1.msra.mxu0 0.0
  %1014 = vmatprep.mubr.f32.mxu0 0.0
  %1015 = vmatmul.mubr.f32.gmra.mrb[0].mxu0 %v948
  %v1016 = vpop.f32.mrb[0].mxu0
  %v1017 = vadd.f32 0.0, %v1016
  %v1018 = vpop.f32.mrb[0].mxu0
  %1019 = vdwg.mxu0
  %1020 = vmatprep.subr.mxu0 0.0
  %1021 = vmatpush1.msra.mxu0 %v67
  %1022 = vmatprep.subr.mxu0 0.0
  %1023 = vmatpush1.msra.mxu0 %v68
  %1024 = vmatprep.subr.mxu0 0.0
  %1025 = vmatpush1.msra.mxu0 %v69
  %1026 = vmatprep.subr.mxu0 0.0
  %1027 = vmatpush1.msra.mxu0 %v70
  %1028 = vmatprep.subr.mxu0 0.0
  %1029 = vmatpush1.msra.mxu0 0.0
  %1030 = vmatprep.subr.mxu0 0.0
  %1031 = vmatpush1.msra.mxu0 0.0
  %1032 = vmatprep.subr.mxu0 0.0
  %1033 = vmatpush1.msra.mxu0 0.0
  %1034 = vmatprep.subr.mxu0 0.0
  %1035 = vmatpush1.msra.mxu0 0.0
  %1036 = vmatprep.subr.mxu0 0.0
  %1037 = vmatpush1.msra.mxu0 0.0
  %1038 = vmatprep.subr.mxu0 0.0
  %1039 = vmatpush1.msra.mxu0 0.0
  %1040 = vmatprep.subr.mxu0 0.0
  %1041 = vmatpush1.msra.mxu0 0.0
  %1042 = vmatprep.subr.mxu0 0.0
  %1043 = vmatpush1.msra.mxu0 0.0
  %1044 = vmatprep.subr.mxu0 0.0
  %1045 = vmatpush1.msra.mxu0 0.0
  %1046 = vmatprep.subr.mxu0 0.0
  %1047 = vmatpush1.msra.mxu0 0.0
  %1048 = vmatprep.subr.mxu0 0.0
  %1049 = vmatpush1.msra.mxu0 0.0
  %1050 = vmatprep.subr.mxu0 0.0
  %1051 = vmatpush1.msra.mxu0 0.0
  %1052 = vmatprep.subr.mxu0 0.0
  %1053 = vmatpush1.msra.mxu0 0.0
  %1054 = vmatprep.subr.mxu0 0.0
  %1055 = vmatpush1.msra.mxu0 0.0
  %1056 = vmatprep.subr.mxu0 0.0
  %1057 = vmatpush1.msra.mxu0 0.0
  %1058 = vmatprep.subr.mxu0 0.0
  %1059 = vmatpush1.msra.mxu0 0.0
  %1060 = vmatprep.subr.mxu0 0.0
  %1061 = vmatpush1.msra.mxu0 0.0
  %1062 = vmatprep.subr.mxu0 0.0
  %1063 = vmatpush1.msra.mxu0 0.0
  %1064 = vmatprep.subr.mxu0 0.0
  %1065 = vmatpush1.msra.mxu0 0.0
  %1066 = vmatprep.subr.mxu0 0.0
  %1067 = vmatpush1.msra.mxu0 0.0
  %1068 = vmatprep.subr.mxu0 0.0
  %1069 = vmatpush1.msra.mxu0 0.0
  %1070 = vmatprep.subr.mxu0 0.0
  %1071 = vmatpush1.msra.mxu0 0.0
  %1072 = vmatprep.subr.mxu0 0.0
  %1073 = vmatpush1.msra.mxu0 0.0
  %1074 = vmatprep.subr.mxu0 0.0
  %1075 = vmatpush1.msra.mxu0 0.0
  %1076 = vmatprep.subr.mxu0 0.0
  %1077 = vmatpush1.msra.mxu0 0.0
  %1078 = vmatprep.subr.mxu0 0.0
  %1079 = vmatpush1.msra.mxu0 0.0
  %1080 = vmatprep.subr.mxu0 0.0
  %1081 = vmatpush1.msra.mxu0 0.0
  %1082 = vmatprep.subr.mxu0 0.0
  %1083 = vmatpush1.msra.mxu0 0.0
  %1084 = vmatprep.mubr.f32.mxu0 0.0
  %1085 = vmatmul.mubr.f32.gmra.mrb[0].mxu0 %v948
  %v1086 = vpop.f32.mrb[0].mxu0
  %v1087 = vadd.f32 0.0, %v1086
  %v1088 = vpop.f32.mrb[0].mxu0
  %1089 = vdwg.mxu0
  %v1090 = vadd.f32 %v418, %v1017
  %v1091 = vxor.u32 %v1090, 2147483648
  %v1092 = vmul.f32 %v1091, 1.442695
  %v1093 = vpow.pop %v1092
  %v1094 = vadd.f32 %v1093, 1.0
  %v1095 = vrcp.pop %v1094
  %v1096 = vmul.f32 1.0, %v1095
  %v1097 = vadd.f32 %v678, %v1087
  %v1098 = vxor.u32 %v1097, 2147483648
  %v1099 = vmul.f32 %v1098, 1.442695
  %v1100 = vpow.pop %v1099
  %v1101 = vadd.f32 %v1100, 1.0
  %v1102 = vrcp.pop %v1101
  %v1103 = vmul.f32 1.0, %v1102
  %v1105 = vlaneseq
  %v1106 = vshrl.u32 %v1105, 7
  %v1107 = vsub.s32 0, %v1106
  %v1108 = vrot.slane %v76, %v1107
  %1110 = vmatprep.subr.mxu0 0.0
  %1111 = vmatpush1.msra.mxu0 %v72
  %1112 = vmatprep.subr.mxu0 0.0
  %1113 = vmatpush1.msra.mxu0 %v73
  %1114 = vmatprep.subr.mxu0 0.0
  %1115 = vmatpush1.msra.mxu0 %v74
  %1116 = vmatprep.subr.mxu0 0.0
  %1117 = vmatpush1.msra.mxu0 %v75
  %1118 = vmatprep.subr.mxu0 0.0
  %1119 = vmatpush1.msra.mxu0 0.0
  %1120 = vmatprep.subr.mxu0 0.0
  %1121 = vmatpush1.msra.mxu0 0.0
  %1122 = vmatprep.subr.mxu0 0.0
  %1123 = vmatpush1.msra.mxu0 0.0
  %1124 = vmatprep.subr.mxu0 0.0
  %1125 = vmatpush1.msra.mxu0 0.0
  %1126 = vmatprep.subr.mxu0 0.0
  %1127 = vmatpush1.msra.mxu0 0.0
  %1128 = vmatprep.subr.mxu0 0.0
  %1129 = vmatpush1.msra.mxu0 0.0
  %1130 = vmatprep.subr.mxu0 0.0
  %1131 = vmatpush1.msra.mxu0 0.0
  %1132 = vmatprep.subr.mxu0 0.0
  %1133 = vmatpush1.msra.mxu0 0.0
  %1134 = vmatprep.subr.mxu0 0.0
  %1135 = vmatpush1.msra.mxu0 0.0
  %1136 = vmatprep.subr.mxu0 0.0
  %1137 = vmatpush1.msra.mxu0 0.0
  %1138 = vmatprep.subr.mxu0 0.0
  %1139 = vmatpush1.msra.mxu0 0.0
  %1140 = vmatprep.subr.mxu0 0.0
  %1141 = vmatpush1.msra.mxu0 0.0
  %1142 = vmatprep.subr.mxu0 0.0
  %1143 = vmatpush1.msra.mxu0 0.0
  %1144 = vmatprep.subr.mxu0 0.0
  %1145 = vmatpush1.msra.mxu0 0.0
  %1146 = vmatprep.subr.mxu0 0.0
  %1147 = vmatpush1.msra.mxu0 0.0
  %1148 = vmatprep.subr.mxu0 0.0
  %1149 = vmatpush1.msra.mxu0 0.0
  %1150 = vmatprep.subr.mxu0 0.0
  %1151 = vmatpush1.msra.mxu0 0.0
  %1152 = vmatprep.subr.mxu0 0.0
  %1153 = vmatpush1.msra.mxu0 0.0
  %1154 = vmatprep.subr.mxu0 0.0
  %1155 = vmatpush1.msra.mxu0 0.0
  %1156 = vmatprep.subr.mxu0 0.0
  %1157 = vmatpush1.msra.mxu0 0.0
  %1158 = vmatprep.subr.mxu0 0.0
  %1159 = vmatpush1.msra.mxu0 0.0
  %1160 = vmatprep.subr.mxu0 0.0
  %1161 = vmatpush1.msra.mxu0 0.0
  %1162 = vmatprep.subr.mxu0 0.0
  %1163 = vmatpush1.msra.mxu0 0.0
  %1164 = vmatprep.subr.mxu0 0.0
  %1165 = vmatpush1.msra.mxu0 0.0
  %1166 = vmatprep.subr.mxu0 0.0
  %1167 = vmatpush1.msra.mxu0 0.0
  %1168 = vmatprep.subr.mxu0 0.0
  %1169 = vmatpush1.msra.mxu0 0.0
  %1170 = vmatprep.subr.mxu0 0.0
  %1171 = vmatpush1.msra.mxu0 0.0
  %1172 = vmatprep.subr.mxu0 0.0
  %1173 = vmatpush1.msra.mxu0 0.0
  %1174 = vmatprep.mubr.f32.mxu0 0.0
  %1175 = vmatmul.mubr.f32.gmra.mrb[0].mxu0 %v948
  %v1176 = vpop.f32.mrb[0].mxu0
  %v1177 = vadd.f32 %v1108, %v1176
  %v1178 = vpop.f32.mrb[0].mxu0
  %1179 = vdwg.mxu0
  %v1180 = vmul.f32 %v1096, %v1177
  %v1181 = vadd.f32 %v938, %v1180
  %v1182 = vtanh.pop %v1181
  %v1183 = vsub.f32 1.0, %v1103
  %v1184 = vmul.f32 %v1183, %v1182
  %v1185 = vmul.f32 %v1103, 0.0
  %v1186 = vadd.f32 %v1184, %v1185
  %v1188 = vsel %vm946, %v1186, 0
  %1190 = vmatprep.subr.mxu0 0.0
  %1191 = vmatpush1.msra.mxu0 %v62
  %1192 = vmatprep.subr.mxu0 0.0
  %1193 = vmatpush1.msra.mxu0 %v63
  %1194 = vmatprep.subr.mxu0 0.0
  %1195 = vmatpush1.msra.mxu0 %v64
  %1196 = vmatprep.subr.mxu0 0.0
  %1197 = vmatpush1.msra.mxu0 %v65
  %1198 = vmatprep.subr.mxu0 0.0
  %1199 = vmatpush1.msra.mxu0 0.0
  %1200 = vmatprep.subr.mxu0 0.0
  %1201 = vmatpush1.msra.mxu0 0.0
  %1202 = vmatprep.subr.mxu0 0.0
  %1203 = vmatpush1.msra.mxu0 0.0
  %1204 = vmatprep.subr.mxu0 0.0
  %1205 = vmatpush1.msra.mxu0 0.0
  %1206 = vmatprep.subr.mxu0 0.0
  %1207 = vmatpush1.msra.mxu0 0.0
  %1208 = vmatprep.subr.mxu0 0.0
  %1209 = vmatpush1.msra.mxu0 0.0
  %1210 = vmatprep.subr.mxu0 0.0
  %1211 = vmatpush1.msra.mxu0 0.0
  %1212 = vmatprep.subr.mxu0 0.0
  %1213 = vmatpush1.msra.mxu0 0.0
  %1214 = vmatprep.subr.mxu0 0.0
  %1215 = vmatpush1.msra.mxu0 0.0
  %1216 = vmatprep.subr.mxu0 0.0
  %1217 = vmatpush1.msra.mxu0 0.0
  %1218 = vmatprep.subr.mxu0 0.0
  %1219 = vmatpush1.msra.mxu0 0.0
  %1220 = vmatprep.subr.mxu0 0.0
  %1221 = vmatpush1.msra.mxu0 0.0
  %1222 = vmatprep.subr.mxu0 0.0
  %1223 = vmatpush1.msra.mxu0 0.0
  %1224 = vmatprep.subr.mxu0 0.0
  %1225 = vmatpush1.msra.mxu0 0.0
  %1226 = vmatprep.subr.mxu0 0.0
  %1227 = vmatpush1.msra.mxu0 0.0
  %1228 = vmatprep.subr.mxu0 0.0
  %1229 = vmatpush1.msra.mxu0 0.0
  %1230 = vmatprep.subr.mxu0 0.0
  %1231 = vmatpush1.msra.mxu0 0.0
  %1232 = vmatprep.subr.mxu0 0.0
  %1233 = vmatpush1.msra.mxu0 0.0
  %1234 = vmatprep.subr.mxu0 0.0
  %1235 = vmatpush1.msra.mxu0 0.0
  %1236 = vmatprep.subr.mxu0 0.0
  %1237 = vmatpush1.msra.mxu0 0.0
  %1238 = vmatprep.subr.mxu0 0.0
  %1239 = vmatpush1.msra.mxu0 0.0
  %1240 = vmatprep.subr.mxu0 0.0
  %1241 = vmatpush1.msra.mxu0 0.0
  %1242 = vmatprep.subr.mxu0 0.0
  %1243 = vmatpush1.msra.mxu0 0.0
  %1244 = vmatprep.subr.mxu0 0.0
  %1245 = vmatpush1.msra.mxu0 0.0
  %1246 = vmatprep.subr.mxu0 0.0
  %1247 = vmatpush1.msra.mxu0 0.0
  %1248 = vmatprep.subr.mxu0 0.0
  %1249 = vmatpush1.msra.mxu0 0.0
  %1250 = vmatprep.subr.mxu0 0.0
  %1251 = vmatpush1.msra.mxu0 0.0
  %1252 = vmatprep.subr.mxu0 0.0
  %1253 = vmatpush1.msra.mxu0 0.0
  %1254 = vmatprep.mubr.f32.mxu0 0.0
  %1255 = vmatmul.mubr.f32.gmra.mrb[0].mxu0 %v1188
  %v1256 = vpop.f32.mrb[0].mxu0
  %v1257 = vadd.f32 0.0, %v1256
  %v1258 = vpop.f32.mrb[0].mxu0
  %1259 = vdwg.mxu0
  %1260 = vmatprep.subr.mxu0 0.0
  %1261 = vmatpush1.msra.mxu0 %v67
  %1262 = vmatprep.subr.mxu0 0.0
  %1263 = vmatpush1.msra.mxu0 %v68
  %1264 = vmatprep.subr.mxu0 0.0
  %1265 = vmatpush1.msra.mxu0 %v69
  %1266 = vmatprep.subr.mxu0 0.0
  %1267 = vmatpush1.msra.mxu0 %v70
  %1268 = vmatprep.subr.mxu0 0.0
  %1269 = vmatpush1.msra.mxu0 0.0
  %1270 = vmatprep.subr.mxu0 0.0
  %1271 = vmatpush1.msra.mxu0 0.0
  %1272 = vmatprep.subr.mxu0 0.0
  %1273 = vmatpush1.msra.mxu0 0.0
  %1274 = vmatprep.subr.mxu0 0.0
  %1275 = vmatpush1.msra.mxu0 0.0
  %1276 = vmatprep.subr.mxu0 0.0
  %1277 = vmatpush1.msra.mxu0 0.0
  %1278 = vmatprep.subr.mxu0 0.0
  %1279 = vmatpush1.msra.mxu0 0.0
  %1280 = vmatprep.subr.mxu0 0.0
  %1281 = vmatpush1.msra.mxu0 0.0
  %1282 = vmatprep.subr.mxu0 0.0
  %1283 = vmatpush1.msra.mxu0 0.0
  %1284 = vmatprep.subr.mxu0 0.0
  %1285 = vmatpush1.msra.mxu0 0.0
  %1286 = vmatprep.subr.mxu0 0.0
  %1287 = vmatpush1.msra.mxu0 0.0
  %1288 = vmatprep.subr.mxu0 0.0
  %1289 = vmatpush1.msra.mxu0 0.0
  %1290 = vmatprep.subr.mxu0 0.0
  %1291 = vmatpush1.msra.mxu0 0.0
  %1292 = vmatprep.subr.mxu0 0.0
  %1293 = vmatpush1.msra.mxu0 0.0
  %1294 = vmatprep.subr.mxu0 0.0
  %1295 = vmatpush1.msra.mxu0 0.0
  %1296 = vmatprep.subr.mxu0 0.0
  %1297 = vmatpush1.msra.mxu0 0.0
  %1298 = vmatprep.subr.mxu0 0.0
  %1299 = vmatpush1.msra.mxu0 0.0
  %1300 = vmatprep.subr.mxu0 0.0
  %1301 = vmatpush1.msra.mxu0 0.0
  %1302 = vmatprep.subr.mxu0 0.0
  %1303 = vmatpush1.msra.mxu0 0.0
  %1304 = vmatprep.subr.mxu0 0.0
  %1305 = vmatpush1.msra.mxu0 0.0
  %1306 = vmatprep.subr.mxu0 0.0
  %1307 = vmatpush1.msra.mxu0 0.0
  %1308 = vmatprep.subr.mxu0 0.0
  %1309 = vmatpush1.msra.mxu0 0.0
  %1310 = vmatprep.subr.mxu0 0.0
  %1311 = vmatpush1.msra.mxu0 0.0
  %1312 = vmatprep.subr.mxu0 0.0
  %1313 = vmatpush1.msra.mxu0 0.0
  %1314 = vmatprep.subr.mxu0 0.0
  %1315 = vmatpush1.msra.mxu0 0.0
  %1316 = vmatprep.subr.mxu0 0.0
  %1317 = vmatpush1.msra.mxu0 0.0
  %1318 = vmatprep.subr.mxu0 0.0
  %1319 = vmatpush1.msra.mxu0 0.0
  %1320 = vmatprep.subr.mxu0 0.0
  %1321 = vmatpush1.msra.mxu0 0.0
  %1322 = vmatprep.subr.mxu0 0.0
  %1323 = vmatpush1.msra.mxu0 0.0
  %1324 = vmatprep.mubr.f32.mxu0 0.0
  %1325 = vmatmul.mubr.f32.gmra.mrb[0].mxu0 %v1188
  %v1326 = vpop.f32.mrb[0].mxu0
  %v1327 = vadd.f32 0.0, %v1326
  %v1328 = vpop.f32.mrb[0].mxu0
  %1329 = vdwg.mxu0
  %v1330 = vadd.f32 %v419, %v1257
  %v1331 = vxor.u32 %v1330, 2147483648
  %v1332 = vmul.f32 %v1331, 1.442695
  %v1333 = vpow.pop %v1332
  %v1334 = vadd.f32 %v1333, 1.0
  %v1335 = vrcp.pop %v1334
  %v1336 = vmul.f32 1.0, %v1335
  %v1337 = vadd.f32 %v679, %v1327
  %v1338 = vxor.u32 %v1337, 2147483648
  %v1339 = vmul.f32 %v1338, 1.442695
  %v1340 = vpow.pop %v1339
  %v1341 = vadd.f32 %v1340, 1.0
  %v1342 = vrcp.pop %v1341
  %v1343 = vmul.f32 1.0, %v1342
  %1344 = vmatprep.subr.mxu0 0.0
  %1345 = vmatpush1.msra.mxu0 %v72
  %1346 = vmatprep.subr.mxu0 0.0
  %1347 = vmatpush1.msra.mxu0 %v73
  %1348 = vmatprep.subr.mxu0 0.0
  %1349 = vmatpush1.msra.mxu0 %v74
  %1350 = vmatprep.subr.mxu0 0.0
  %1351 = vmatpush1.msra.mxu0 %v75
  %1352 = vmatprep.subr.mxu0 0.0
  %1353 = vmatpush1.msra.mxu0 0.0
  %1354 = vmatprep.subr.mxu0 0.0
  %1355 = vmatpush1.msra.mxu0 0.0
  %1356 = vmatprep.subr.mxu0 0.0
  %1357 = vmatpush1.msra.mxu0 0.0
  %1358 = vmatprep.subr.mxu0 0.0
  %1359 = vmatpush1.msra.mxu0 0.0
  %1360 = vmatprep.subr.mxu0 0.0
  %1361 = vmatpush1.msra.mxu0 0.0
  %1362 = vmatprep.subr.mxu0 0.0
  %1363 = vmatpush1.msra.mxu0 0.0
  %1364 = vmatprep.subr.mxu0 0.0
  %1365 = vmatpush1.msra.mxu0 0.0
  %1366 = vmatprep.subr.mxu0 0.0
  %1367 = vmatpush1.msra.mxu0 0.0
  %1368 = vmatprep.subr.mxu0 0.0
  %1369 = vmatpush1.msra.mxu0 0.0
  %1370 = vmatprep.subr.mxu0 0.0
  %1371 = vmatpush1.msra.mxu0 0.0
  %1372 = vmatprep.subr.mxu0 0.0
  %1373 = vmatpush1.msra.mxu0 0.0
  %1374 = vmatprep.subr.mxu0 0.0
  %1375 = vmatpush1.msra.mxu0 0.0
  %1376 = vmatprep.subr.mxu0 0.0
  %1377 = vmatpush1.msra.mxu0 0.0
  %1378 = vmatprep.subr.mxu0 0.0
  %1379 = vmatpush1.msra.mxu0 0.0
  %1380 = vmatprep.subr.mxu0 0.0
  %1381 = vmatpush1.msra.mxu0 0.0
  %1382 = vmatprep.subr.mxu0 0.0
  %1383 = vmatpush1.msra.mxu0 0.0
  %1384 = vmatprep.subr.mxu0 0.0
  %1385 = vmatpush1.msra.mxu0 0.0
  %1386 = vmatprep.subr.mxu0 0.0
  %1387 = vmatpush1.msra.mxu0 0.0
  %1388 = vmatprep.subr.mxu0 0.0
  %1389 = vmatpush1.msra.mxu0 0.0
  %1390 = vmatprep.subr.mxu0 0.0
  %1391 = vmatpush1.msra.mxu0 0.0
  %1392 = vmatprep.subr.mxu0 0.0
  %1393 = vmatpush1.msra.mxu0 0.0
  %1394 = vmatprep.subr.mxu0 0.0
  %1395 = vmatpush1.msra.mxu0 0.0
  %1396 = vmatprep.subr.mxu0 0.0
  %1397 = vmatpush1.msra.mxu0 0.0
  %1398 = vmatprep.subr.mxu0 0.0
  %1399 = vmatpush1.msra.mxu0 0.0
  %1400 = vmatprep.subr.mxu0 0.0
  %1401 = vmatpush1.msra.mxu0 0.0
  %1402 = vmatprep.subr.mxu0 0.0
  %1403 = vmatpush1.msra.mxu0 0.0
  %1404 = vmatprep.subr.mxu0 0.0
  %1405 = vmatpush1.msra.mxu0 0.0
  %1406 = vmatprep.subr.mxu0 0.0
  %1407 = vmatpush1.msra.mxu0 0.0
  %1408 = vmatprep.mubr.f32.mxu0 0.0
  %1409 = vmatmul.mubr.f32.gmra.mrb[0].mxu0 %v1188
  %v1410 = vpop.f32.mrb[0].mxu0
  %v1411 = vadd.f32 %v1108, %v1410
  %v1412 = vpop.f32.mrb[0].mxu0
  %1413 = vdwg.mxu0
  %v1414 = vmul.f32 %v1336, %v1411
  %v1415 = vadd.f32 %v939, %v1414
  %v1416 = vtanh.pop %v1415
  %v1417 = vsub.f32 1.0, %v1343
  %v1418 = vmul.f32 %v1417, %v1416
  %v1419 = vmul.f32 %v1343, %v1186
  %v1420 = vadd.f32 %v1418, %v1419
  %v1422 = vsel %vm946, %v1420, 0
  %1424 = vmatprep.subr.mxu0 0.0
  %1425 = vmatpush1.msra.mxu0 %v62
  %1426 = vmatprep.subr.mxu0 0.0
  %1427 = vmatpush1.msra.mxu0 %v63
  %1428 = vmatprep.subr.mxu0 0.0
  %1429 = vmatpush1.msra.mxu0 %v64
  %1430 = vmatprep.subr.mxu0 0.0
  %1431 = vmatpush1.msra.mxu0 %v65
  %1432 = vmatprep.subr.mxu0 0.0
  %1433 = vmatpush1.msra.mxu0 0.0
  %1434 = vmatprep.subr.mxu0 0.0
  %1435 = vmatpush1.msra.mxu0 0.0
  %1436 = vmatprep.subr.mxu0 0.0
  %1437 = vmatpush1.msra.mxu0 0.0
  %1438 = vmatprep.subr.mxu0 0.0
  %1439 = vmatpush1.msra.mxu0 0.0
  %1440 = vmatprep.subr.mxu0 0.0
  %1441 = vmatpush1.msra.mxu0 0.0
  %1442 = vmatprep.subr.mxu0 0.0
  %1443 = vmatpush1.msra.mxu0 0.0
  %1444 = vmatprep.subr.mxu0 0.0
  %1445 = vmatpush1.msra.mxu0 0.0
  %1446 = vmatprep.subr.mxu0 0.0
  %1447 = vmatpush1.msra.mxu0 0.0
  %1448 = vmatprep.subr.mxu0 0.0
  %1449 = vmatpush1.msra.mxu0 0.0
  %1450 = vmatprep.subr.mxu0 0.0
  %1451 = vmatpush1.msra.mxu0 0.0
  %1452 = vmatprep.subr.mxu0 0.0
  %1453 = vmatpush1.msra.mxu0 0.0
  %1454 = vmatprep.subr.mxu0 0.0
  %1455 = vmatpush1.msra.mxu0 0.0
  %1456 = vmatprep.subr.mxu0 0.0
  %1457 = vmatpush1.msra.mxu0 0.0
  %1458 = vmatprep.subr.mxu0 0.0
  %1459 = vmatpush1.msra.mxu0 0.0
  %1460 = vmatprep.subr.mxu0 0.0
  %1461 = vmatpush1.msra.mxu0 0.0
  %1462 = vmatprep.subr.mxu0 0.0
  %1463 = vmatpush1.msra.mxu0 0.0
  %1464 = vmatprep.subr.mxu0 0.0
  %1465 = vmatpush1.msra.mxu0 0.0
  %1466 = vmatprep.subr.mxu0 0.0
  %1467 = vmatpush1.msra.mxu0 0.0
  %1468 = vmatprep.subr.mxu0 0.0
  %1469 = vmatpush1.msra.mxu0 0.0
  %1470 = vmatprep.subr.mxu0 0.0
  %1471 = vmatpush1.msra.mxu0 0.0
  %1472 = vmatprep.subr.mxu0 0.0
  %1473 = vmatpush1.msra.mxu0 0.0
  %1474 = vmatprep.subr.mxu0 0.0
  %1475 = vmatpush1.msra.mxu0 0.0
  %1476 = vmatprep.subr.mxu0 0.0
  %1477 = vmatpush1.msra.mxu0 0.0
  %1478 = vmatprep.subr.mxu0 0.0
  %1479 = vmatpush1.msra.mxu0 0.0
  %1480 = vmatprep.subr.mxu0 0.0
  %1481 = vmatpush1.msra.mxu0 0.0
  %1482 = vmatprep.subr.mxu0 0.0
  %1483 = vmatpush1.msra.mxu0 0.0
  %1484 = vmatprep.subr.mxu0 0.0
  %1485 = vmatpush1.msra.mxu0 0.0
  %1486 = vmatprep.subr.mxu0 0.0
  %1487 = vmatpush1.msra.mxu0 0.0
  %1488 = vmatprep.mubr.f32.mxu0 0.0
  %1489 = vmatmul.mubr.f32.gmra.mrb[0].mxu0 %v1422
  %v1490 = vpop.f32.mrb[0].mxu0
  %v1491 = vadd.f32 0.0, %v1490
  %v1492 = vpop.f32.mrb[0].mxu0
  %1493 = vdwg.mxu0
  %1494 = vmatprep.subr.mxu0 0.0
  %1495 = vmatpush1.msra.mxu0 %v67
  %1496 = vmatprep.subr.mxu0 0.0
  %1497 = vmatpush1.msra.mxu0 %v68
  %1498 = vmatprep.subr.mxu0 0.0
  %1499 = vmatpush1.msra.mxu0 %v69
  %1500 = vmatprep.subr.mxu0 0.0
  %1501 = vmatpush1.msra.mxu0 %v70
  %1502 = vmatprep.subr.mxu0 0.0
  %1503 = vmatpush1.msra.mxu0 0.0
  %1504 = vmatprep.subr.mxu0 0.0
  %1505 = vmatpush1.msra.mxu0 0.0
  %1506 = vmatprep.subr.mxu0 0.0
  %1507 = vmatpush1.msra.mxu0 0.0
  %1508 = vmatprep.subr.mxu0 0.0
  %1509 = vmatpush1.msra.mxu0 0.0
  %1510 = vmatprep.subr.mxu0 0.0
  %1511 = vmatpush1.msra.mxu0 0.0
  %1512 = vmatprep.subr.mxu0 0.0
  %1513 = vmatpush1.msra.mxu0 0.0
  %1514 = vmatprep.subr.mxu0 0.0
  %1515 = vmatpush1.msra.mxu0 0.0
  %1516 = vmatprep.subr.mxu0 0.0
  %1517 = vmatpush1.msra.mxu0 0.0
  %1518 = vmatprep.subr.mxu0 0.0
  %1519 = vmatpush1.msra.mxu0 0.0
  %1520 = vmatprep.subr.mxu0 0.0
  %1521 = vmatpush1.msra.mxu0 0.0
  %1522 = vmatprep.subr.mxu0 0.0
  %1523 = vmatpush1.msra.mxu0 0.0
  %1524 = vmatprep.subr.mxu0 0.0
  %1525 = vmatpush1.msra.mxu0 0.0
  %1526 = vmatprep.subr.mxu0 0.0
  %1527 = vmatpush1.msra.mxu0 0.0
  %1528 = vmatprep.subr.mxu0 0.0
  %1529 = vmatpush1.msra.mxu0 0.0
  %1530 = vmatprep.subr.mxu0 0.0
  %1531 = vmatpush1.msra.mxu0 0.0
  %1532 = vmatprep.subr.mxu0 0.0
  %1533 = vmatpush1.msra.mxu0 0.0
  %1534 = vmatprep.subr.mxu0 0.0
  %1535 = vmatpush1.msra.mxu0 0.0
  %1536 = vmatprep.subr.mxu0 0.0
  %1537 = vmatpush1.msra.mxu0 0.0
  %1538 = vmatprep.subr.mxu0 0.0
  %1539 = vmatpush1.msra.mxu0 0.0
  %1540 = vmatprep.subr.mxu0 0.0
  %1541 = vmatpush1.msra.mxu0 0.0
  %1542 = vmatprep.subr.mxu0 0.0
  %1543 = vmatpush1.msra.mxu0 0.0
  %1544 = vmatprep.subr.mxu0 0.0
  %1545 = vmatpush1.msra.mxu0 0.0
  %1546 = vmatprep.subr.mxu0 0.0
  %1547 = vmatpush1.msra.mxu0 0.0
  %1548 = vmatprep.subr.mxu0 0.0
  %1549 = vmatpush1.msra.mxu0 0.0
  %1550 = vmatprep.subr.mxu0 0.0
  %1551 = vmatpush1.msra.mxu0 0.0
  %1552 = vmatprep.subr.mxu0 0.0
  %1553 = vmatpush1.msra.mxu0 0.0
  %1554 = vmatprep.subr.mxu0 0.0
  %1555 = vmatpush1.msra.mxu0 0.0
  %1556 = vmatprep.subr.mxu0 0.0
  %1557 = vmatpush1.msra.mxu0 0.0
  %1558 = vmatprep.mubr.f32.mxu0 0.0
  %1559 = vmatmul.mubr.f32.gmra.mrb[0].mxu0 %v1422
  %v1560 = vpop.f32.mrb[0].mxu0
  %v1561 = vadd.f32 0.0, %v1560
  %v1562 = vpop.f32.mrb[0].mxu0
  %1563 = vdwg.mxu0
  %v1564 = vadd.f32 %v420, %v1491
  %v1565 = vxor.u32 %v1564, 2147483648
  %v1566 = vmul.f32 %v1565, 1.442695
  %v1567 = vpow.pop %v1566
  %v1568 = vadd.f32 %v1567, 1.0
  %v1569 = vrcp.pop %v1568
  %v1570 = vmul.f32 1.0, %v1569
  %v1571 = vadd.f32 %v680, %v1561
  %v1572 = vxor.u32 %v1571, 2147483648
  %v1573 = vmul.f32 %v1572, 1.442695
  %v1574 = vpow.pop %v1573
  %v1575 = vadd.f32 %v1574, 1.0
  %v1576 = vrcp.pop %v1575
  %v1577 = vmul.f32 1.0, %v1576
  %1578 = vmatprep.subr.mxu0 0.0
  %1579 = vmatpush1.msra.mxu0 %v72
  %1580 = vmatprep.subr.mxu0 0.0
  %1581 = vmatpush1.msra.mxu0 %v73
  %1582 = vmatprep.subr.mxu0 0.0
  %1583 = vmatpush1.msra.mxu0 %v74
  %1584 = vmatprep.subr.mxu0 0.0
  %1585 = vmatpush1.msra.mxu0 %v75
  %1586 = vmatprep.subr.mxu0 0.0
  %1587 = vmatpush1.msra.mxu0 0.0
  %1588 = vmatprep.subr.mxu0 0.0
  %1589 = vmatpush1.msra.mxu0 0.0
  %1590 = vmatprep.subr.mxu0 0.0
  %1591 = vmatpush1.msra.mxu0 0.0
  %1592 = vmatprep.subr.mxu0 0.0
  %1593 = vmatpush1.msra.mxu0 0.0
  %1594 = vmatprep.subr.mxu0 0.0
  %1595 = vmatpush1.msra.mxu0 0.0
  %1596 = vmatprep.subr.mxu0 0.0
  %1597 = vmatpush1.msra.mxu0 0.0
  %1598 = vmatprep.subr.mxu0 0.0
  %1599 = vmatpush1.msra.mxu0 0.0
  %1600 = vmatprep.subr.mxu0 0.0
  %1601 = vmatpush1.msra.mxu0 0.0
  %1602 = vmatprep.subr.mxu0 0.0
  %1603 = vmatpush1.msra.mxu0 0.0
  %1604 = vmatprep.subr.mxu0 0.0
  %1605 = vmatpush1.msra.mxu0 0.0
  %1606 = vmatprep.subr.mxu0 0.0
  %1607 = vmatpush1.msra.mxu0 0.0
  %1608 = vmatprep.subr.mxu0 0.0
  %1609 = vmatpush1.msra.mxu0 0.0
  %1610 = vmatprep.subr.mxu0 0.0
  %1611 = vmatpush1.msra.mxu0 0.0
  %1612 = vmatprep.subr.mxu0 0.0
  %1613 = vmatpush1.msra.mxu0 0.0
  %1614 = vmatprep.subr.mxu0 0.0
  %1615 = vmatpush1.msra.mxu0 0.0
  %1616 = vmatprep.subr.mxu0 0.0
  %1617 = vmatpush1.msra.mxu0 0.0
  %1618 = vmatprep.subr.mxu0 0.0
  %1619 = vmatpush1.msra.mxu0 0.0
  %1620 = vmatprep.subr.mxu0 0.0
  %1621 = vmatpush1.msra.mxu0 0.0
  %1622 = vmatprep.subr.mxu0 0.0
  %1623 = vmatpush1.msra.mxu0 0.0
  %1624 = vmatprep.subr.mxu0 0.0
  %1625 = vmatpush1.msra.mxu0 0.0
  %1626 = vmatprep.subr.mxu0 0.0
  %1627 = vmatpush1.msra.mxu0 0.0
  %1628 = vmatprep.subr.mxu0 0.0
  %1629 = vmatpush1.msra.mxu0 0.0
  %1630 = vmatprep.subr.mxu0 0.0
  %1631 = vmatpush1.msra.mxu0 0.0
  %1632 = vmatprep.subr.mxu0 0.0
  %1633 = vmatpush1.msra.mxu0 0.0
  %1634 = vmatprep.subr.mxu0 0.0
  %1635 = vmatpush1.msra.mxu0 0.0
  %1636 = vmatprep.subr.mxu0 0.0
  %1637 = vmatpush1.msra.mxu0 0.0
  %1638 = vmatprep.subr.mxu0 0.0
  %1639 = vmatpush1.msra.mxu0 0.0
  %1640 = vmatprep.subr.mxu0 0.0
  %1641 = vmatpush1.msra.mxu0 0.0
  %1642 = vmatprep.mubr.f32.mxu0 0.0
  %1643 = vmatmul.mubr.f32.gmra.mrb[0].mxu0 %v1422
  %v1644 = vpop.f32.mrb[0].mxu0
  %v1645 = vadd.f32 %v1108, %v1644
  %v1646 = vpop.f32.mrb[0].mxu0
  %1647 = vdwg.mxu0
  %v1648 = vmul.f32 %v1570, %v1645
  %v1649 = vadd.f32 %v940, %v1648
  %v1650 = vtanh.pop %v1649
  %v1651 = vsub.f32 1.0, %v1577
  %v1652 = vmul.f32 %v1651, %v1650
  %v1653 = vmul.f32 %v1577, %v1420
  %v1654 = vadd.f32 %v1652, %v1653
  %v1656 = vsel %vm946, %v1654, 0
  %1658 = vmatprep.subr.mxu0 0.0
  %1659 = vmatpush1.msra.mxu0 %v62
  %1660 = vmatprep.subr.mxu0 0.0
  %1661 = vmatpush1.msra.mxu0 %v63
  %1662 = vmatprep.subr.mxu0 0.0
  %1663 = vmatpush1.msra.mxu0 %v64
  %1664 = vmatprep.subr.mxu0 0.0
  %1665 = vmatpush1.msra.mxu0 %v65
  %1666 = vmatprep.subr.mxu0 0.0
  %1667 = vmatpush1.msra.mxu0 0.0
  %1668 = vmatprep.subr.mxu0 0.0
  %1669 = vmatpush1.msra.mxu0 0.0
  %1670 = vmatprep.subr.mxu0 0.0
  %1671 = vmatpush1.msra.mxu0 0.0
  %1672 = vmatprep.subr.mxu0 0.0
  %1673 = vmatpush1.msra.mxu0 0.0
  %1674 = vmatprep.subr.mxu0 0.0
  %1675 = vmatpush1.msra.mxu0 0.0
  %1676 = vmatprep.subr.mxu0 0.0
  %1677 = vmatpush1.msra.mxu0 0.0
  %1678 = vmatprep.subr.mxu0 0.0
  %1679 = vmatpush1.msra.mxu0 0.0
  %1680 = vmatprep.subr.mxu0 0.0
  %1681 = vmatpush1.msra.mxu0 0.0
  %1682 = vmatprep.subr.mxu0 0.0
  %1683 = vmatpush1.msra.mxu0 0.0
  %1684 = vmatprep.subr.mxu0 0.0
  %1685 = vmatpush1.msra.mxu0 0.0
  %1686 = vmatprep.subr.mxu0 0.0
  %1687 = vmatpush1.msra.mxu0 0.0
  %1688 = vmatprep.subr.mxu0 0.0
  %1689 = vmatpush1.msra.mxu0 0.0
  %1690 = vmatprep.subr.mxu0 0.0
  %1691 = vmatpush1.msra.mxu0 0.0
  %1692 = vmatprep.subr.mxu0 0.0
  %1693 = vmatpush1.msra.mxu0 0.0
  %1694 = vmatprep.subr.mxu0 0.0
  %1695 = vmatpush1.msra.mxu0 0.0
  %1696 = vmatprep.subr.mxu0 0.0
  %1697 = vmatpush1.msra.mxu0 0.0
  %1698 = vmatprep.subr.mxu0 0.0
  %1699 = vmatpush1.msra.mxu0 0.0
  %1700 = vmatprep.subr.mxu0 0.0
  %1701 = vmatpush1.msra.mxu0 0.0
  %1702 = vmatprep.subr.mxu0 0.0
  %1703 = vmatpush1.msra.mxu0 0.0
  %1704 = vmatprep.subr.mxu0 0.0
  %1705 = vmatpush1.msra.mxu0 0.0
  %1706 = vmatprep.subr.mxu0 0.0
  %1707 = vmatpush1.msra.mxu0 0.0
  %1708 = vmatprep.subr.mxu0 0.0
  %1709 = vmatpush1.msra.mxu0 0.0
  %1710 = vmatprep.subr.mxu0 0.0
  %1711 = vmatpush1.msra.mxu0 0.0
  %1712 = vmatprep.subr.mxu0 0.0
  %1713 = vmatpush1.msra.mxu0 0.0
  %1714 = vmatprep.subr.mxu0 0.0
  %1715 = vmatpush1.msra.mxu0 0.0
  %1716 = vmatprep.subr.mxu0 0.0
  %1717 = vmatpush1.msra.mxu0 0.0
  %1718 = vmatprep.subr.mxu0 0.0
  %1719 = vmatpush1.msra.mxu0 0.0
  %1720 = vmatprep.subr.mxu0 0.0
  %1721 = vmatpush1.msra.mxu0 0.0
  %1722 = vmatprep.mubr.f32.mxu0 0.0
  %1723 = vmatmul.mubr.f32.gmra.mrb[0].mxu0 %v1656
  %v1724 = vpop.f32.mrb[0].mxu0
  %v1725 = vadd.f32 0.0, %v1724
  %v1726 = vpop.f32.mrb[0].mxu0
  %1727 = vdwg.mxu0
  %1728 = vmatprep.subr.mxu0 0.0
  %1729 = vmatpush1.msra.mxu0 %v67
  %1730 = vmatprep.subr.mxu0 0.0
  %1731 = vmatpush1.msra.mxu0 %v68
  %1732 = vmatprep.subr.mxu0 0.0
  %1733 = vmatpush1.msra.mxu0 %v69
  %1734 = vmatprep.subr.mxu0 0.0
  %1735 = vmatpush1.msra.mxu0 %v70
  %1736 = vmatprep.subr.mxu0 0.0
  %1737 = vmatpush1.msra.mxu0 0.0
  %1738 = vmatprep.subr.mxu0 0.0
  %1739 = vmatpush1.msra.mxu0 0.0
  %1740 = vmatprep.subr.mxu0 0.0
  %1741 = vmatpush1.msra.mxu0 0.0
  %1742 = vmatprep.subr.mxu0 0.0
  %1743 = vmatpush1.msra.mxu0 0.0
  %1744 = vmatprep.subr.mxu0 0.0
  %1745 = vmatpush1.msra.mxu0 0.0
  %1746 = vmatprep.subr.mxu0 0.0
  %1747 = vmatpush1.msra.mxu0 0.0
  %1748 = vmatprep.subr.mxu0 0.0
  %1749 = vmatpush1.msra.mxu0 0.0
  %1750 = vmatprep.subr.mxu0 0.0
  %1751 = vmatpush1.msra.mxu0 0.0
  %1752 = vmatprep.subr.mxu0 0.0
  %1753 = vmatpush1.msra.mxu0 0.0
  %1754 = vmatprep.subr.mxu0 0.0
  %1755 = vmatpush1.msra.mxu0 0.0
  %1756 = vmatprep.subr.mxu0 0.0
  %1757 = vmatpush1.msra.mxu0 0.0
  %1758 = vmatprep.subr.mxu0 0.0
  %1759 = vmatpush1.msra.mxu0 0.0
  %1760 = vmatprep.subr.mxu0 0.0
  %1761 = vmatpush1.msra.mxu0 0.0
  %1762 = vmatprep.subr.mxu0 0.0
  %1763 = vmatpush1.msra.mxu0 0.0
  %1764 = vmatprep.subr.mxu0 0.0
  %1765 = vmatpush1.msra.mxu0 0.0
  %1766 = vmatprep.subr.mxu0 0.0
  %1767 = vmatpush1.msra.mxu0 0.0
  %1768 = vmatprep.subr.mxu0 0.0
  %1769 = vmatpush1.msra.mxu0 0.0
  %1770 = vmatprep.subr.mxu0 0.0
  %1771 = vmatpush1.msra.mxu0 0.0
  %1772 = vmatprep.subr.mxu0 0.0
  %1773 = vmatpush1.msra.mxu0 0.0
  %1774 = vmatprep.subr.mxu0 0.0
  %1775 = vmatpush1.msra.mxu0 0.0
  %1776 = vmatprep.subr.mxu0 0.0
  %1777 = vmatpush1.msra.mxu0 0.0
  %1778 = vmatprep.subr.mxu0 0.0
  %1779 = vmatpush1.msra.mxu0 0.0
  %1780 = vmatprep.subr.mxu0 0.0
  %1781 = vmatpush1.msra.mxu0 0.0
  %1782 = vmatprep.subr.mxu0 0.0
  %1783 = vmatpush1.msra.mxu0 0.0
  %1784 = vmatprep.subr.mxu0 0.0
  %1785 = vmatpush1.msra.mxu0 0.0
  %1786 = vmatprep.subr.mxu0 0.0
  %1787 = vmatpush1.msra.mxu0 0.0
  %1788 = vmatprep.subr.mxu0 0.0
  %1789 = vmatpush1.msra.mxu0 0.0
  %1790 = vmatprep.subr.mxu0 0.0
  %1791 = vmatpush1.msra.mxu0 0.0
  %1792 = vmatprep.mubr.f32.mxu0 0.0
  %1793 = vmatmul.mubr.f32.gmra.mrb[0].mxu0 %v1656
  %v1794 = vpop.f32.mrb[0].mxu0
  %v1795 = vadd.f32 0.0, %v1794
  %v1796 = vpop.f32.mrb[0].mxu0
  %1797 = vdwg.mxu0
  %v1798 = vadd.f32 %v421, %v1725
  %v1799 = vxor.u32 %v1798, 2147483648
  %v1800 = vmul.f32 %v1799, 1.442695
  %v1801 = vpow.pop %v1800
  %v1802 = vadd.f32 %v1801, 1.0
  %v1803 = vrcp.pop %v1802
  %v1804 = vmul.f32 1.0, %v1803
  %v1805 = vadd.f32 %v681, %v1795
  %v1806 = vxor.u32 %v1805, 2147483648
  %v1807 = vmul.f32 %v1806, 1.442695
  %v1808 = vpow.pop %v1807
  %v1809 = vadd.f32 %v1808, 1.0
  %v1810 = vrcp.pop %v1809
  %v1811 = vmul.f32 1.0, %v1810
  %1812 = vmatprep.subr.mxu0 0.0
  %1813 = vmatpush1.msra.mxu0 %v72
  %1814 = vmatprep.subr.mxu0 0.0
  %1815 = vmatpush1.msra.mxu0 %v73
  %1816 = vmatprep.subr.mxu0 0.0
  %1817 = vmatpush1.msra.mxu0 %v74
  %1818 = vmatprep.subr.mxu0 0.0
  %1819 = vmatpush1.msra.mxu0 %v75
  %1820 = vmatprep.subr.mxu0 0.0
  %1821 = vmatpush1.msra.mxu0 0.0
  %1822 = vmatprep.subr.mxu0 0.0
  %1823 = vmatpush1.msra.mxu0 0.0
  %1824 = vmatprep.subr.mxu0 0.0
  %1825 = vmatpush1.msra.mxu0 0.0
  %1826 = vmatprep.subr.mxu0 0.0
  %1827 = vmatpush1.msra.mxu0 0.0
  %1828 = vmatprep.subr.mxu0 0.0
  %1829 = vmatpush1.msra.mxu0 0.0
  %1830 = vmatprep.subr.mxu0 0.0
  %1831 = vmatpush1.msra.mxu0 0.0
  %1832 = vmatprep.subr.mxu0 0.0
  %1833 = vmatpush1.msra.mxu0 0.0
  %1834 = vmatprep.subr.mxu0 0.0
  %1835 = vmatpush1.msra.mxu0 0.0
  %1836 = vmatprep.subr.mxu0 0.0
  %1837 = vmatpush1.msra.mxu0 0.0
  %1838 = vmatprep.subr.mxu0 0.0
  %1839 = vmatpush1.msra.mxu0 0.0
  %1840 = vmatprep.subr.mxu0 0.0
  %1841 = vmatpush1.msra.mxu0 0.0
  %1842 = vmatprep.subr.mxu0 0.0
  %1843 = vmatpush1.msra.mxu0 0.0
  %1844 = vmatprep.subr.mxu0 0.0
  %1845 = vmatpush1.msra.mxu0 0.0
  %1846 = vmatprep.subr.mxu0 0.0
  %1847 = vmatpush1.msra.mxu0 0.0
  %1848 = vmatprep.subr.mxu0 0.0
  %1849 = vmatpush1.msra.mxu0 0.0
  %1850 = vmatprep.subr.mxu0 0.0
  %1851 = vmatpush1.msra.mxu0 0.0
  %1852 = vmatprep.subr.mxu0 0.0
  %1853 = vmatpush1.msra.mxu0 0.0
  %1854 = vmatprep.subr.mxu0 0.0
  %1855 = vmatpush1.msra.mxu0 0.0
  %1856 = vmatprep.subr.mxu0 0.0
  %1857 = vmatpush1.msra.mxu0 0.0
  %1858 = vmatprep.subr.mxu0 0.0
  %1859 = vmatpush1.msra.mxu0 0.0
  %1860 = vmatprep.subr.mxu0 0.0
  %1861 = vmatpush1.msra.mxu0 0.0
  %1862 = vmatprep.subr.mxu0 0.0
  %1863 = vmatpush1.msra.mxu0 0.0
  %1864 = vmatprep.subr.mxu0 0.0
  %1865 = vmatpush1.msra.mxu0 0.0
  %1866 = vmatprep.subr.mxu0 0.0
  %1867 = vmatpush1.msra.mxu0 0.0
  %1868 = vmatprep.subr.mxu0 0.0
  %1869 = vmatpush1.msra.mxu0 0.0
  %1870 = vmatprep.subr.mxu0 0.0
  %1871 = vmatpush1.msra.mxu0 0.0
  %1872 = vmatprep.subr.mxu0 0.0
  %1873 = vmatpush1.msra.mxu0 0.0
  %1874 = vmatprep.subr.mxu0 0.0
  %1875 = vmatpush1.msra.mxu0 0.0
  %1876 = vmatprep.mubr.f32.mxu0 0.0
  %1877 = vmatmul.mubr.f32.gmra.mrb[0].mxu0 %v1656
  %v1878 = vpop.f32.mrb[0].mxu0
  %v1879 = vadd.f32 %v1108, %v1878
  %v1880 = vpop.f32.mrb[0].mxu0
  %1881 = vdwg.mxu0
  %v1882 = vmul.f32 %v1804, %v1879
  %v1883 = vadd.f32 %v941, %v1882
  %v1884 = vtanh.pop %v1883
  %v1885 = vsub.f32 1.0, %v1811
  %v1886 = vmul.f32 %v1885, %v1884
  %v1887 = vmul.f32 %v1811, %v1654
  %v1888 = vadd.f32 %v1886, %v1887
  %v1890 = vsel %vm946, %v1888, 0
  %1892 = vmatprep.subr.mxu0 0.0
  %1893 = vmatpush1.msra.mxu0 %v62
  %1894 = vmatprep.subr.mxu0 0.0
  %1895 = vmatpush1.msra.mxu0 %v63
  %1896 = vmatprep.subr.mxu0 0.0
  %1897 = vmatpush1.msra.mxu0 %v64
  %1898 = vmatprep.subr.mxu0 0.0
  %1899 = vmatpush1.msra.mxu0 %v65
  %1900 = vmatprep.subr.mxu0 0.0
  %1901 = vmatpush1.msra.mxu0 0.0
  %1902 = vmatprep.subr.mxu0 0.0
  %1903 = vmatpush1.msra.mxu0 0.0
  %1904 = vmatprep.subr.mxu0 0.0
  %1905 = vmatpush1.msra.mxu0 0.0
  %1906 = vmatprep.subr.mxu0 0.0
  %1907 = vmatpush1.msra.mxu0 0.0
  %1908 = vmatprep.subr.mxu0 0.0
  %1909 = vmatpush1.msra.mxu0 0.0
  %1910 = vmatprep.subr.mxu0 0.0
  %1911 = vmatpush1.msra.mxu0 0.0
  %1912 = vmatprep.subr.mxu0 0.0
  %1913 = vmatpush1.msra.mxu0 0.0
  %1914 = vmatprep.subr.mxu0 0.0
  %1915 = vmatpush1.msra.mxu0 0.0
  %1916 = vmatprep.subr.mxu0 0.0
  %1917 = vmatpush1.msra.mxu0 0.0
  %1918 = vmatprep.subr.mxu0 0.0
  %1919 = vmatpush1.msra.mxu0 0.0
  %1920 = vmatprep.subr.mxu0 0.0
  %1921 = vmatpush1.msra.mxu0 0.0
  %1922 = vmatprep.subr.mxu0 0.0
  %1923 = vmatpush1.msra.mxu0 0.0
  %1924 = vmatprep.subr.mxu0 0.0
  %1925 = vmatpush1.msra.mxu0 0.0
  %1926 = vmatprep.subr.mxu0 0.0
  %1927 = vmatpush1.msra.mxu0 0.0
  %1928 = vmatprep.subr.mxu0 0.0
  %1929 = vmatpush1.msra.mxu0 0.0
  %1930 = vmatprep.subr.mxu0 0.0
  %1931 = vmatpush1.msra.mxu0 0.0
  %1932 = vmatprep.subr.mxu0 0.0
  %1933 = vmatpush1.msra.mxu0 0.0
  %1934 = vmatprep.subr.mxu0 0.0
  %1935 = vmatpush1.msra.mxu0 0.0
  %1936 = vmatprep.subr.mxu0 0.0
  %1937 = vmatpush1.msra.mxu0 0.0
  %1938 = vmatprep.subr.mxu0 0.0
  %1939 = vmatpush1.msra.mxu0 0.0
  %1940 = vmatprep.subr.mxu0 0.0
  %1941 = vmatpush1.msra.mxu0 0.0
  %1942 = vmatprep.subr.mxu0 0.0
  %1943 = vmatpush1.msra.mxu0 0.0
  %1944 = vmatprep.subr.mxu0 0.0
  %1945 = vmatpush1.msra.mxu0 0.0
  %1946 = vmatprep.subr.mxu0 0.0
  %1947 = vmatpush1.msra.mxu0 0.0
  %1948 = vmatprep.subr.mxu0 0.0
  %1949 = vmatpush1.msra.mxu0 0.0
  %1950 = vmatprep.subr.mxu0 0.0
  %1951 = vmatpush1.msra.mxu0 0.0
  %1952 = vmatprep.subr.mxu0 0.0
  %1953 = vmatpush1.msra.mxu0 0.0
  %1954 = vmatprep.subr.mxu0 0.0
  %1955 = vmatpush1.msra.mxu0 0.0
  %1956 = vmatprep.mubr.f32.mxu0 0.0
  %1957 = vmatmul.mubr.f32.gmra.mrb[0].mxu0 %v1890
  %v1958 = vpop.f32.mrb[0].mxu0
  %v1959 = vadd.f32 0.0, %v1958
  %v1960 = vpop.f32.mrb[0].mxu0
  %1961 = vdwg.mxu0
  %1962 = vmatprep.subr.mxu0 0.0
  %1963 = vmatpush1.msra.mxu0 %v67
  %1964 = vmatprep.subr.mxu0 0.0
  %1965 = vmatpush1.msra.mxu0 %v68
  %1966 = vmatprep.subr.mxu0 0.0
  %1967 = vmatpush1.msra.mxu0 %v69
  %1968 = vmatprep.subr.mxu0 0.0
  %1969 = vmatpush1.msra.mxu0 %v70
  %1970 = vmatprep.subr.mxu0 0.0
  %1971 = vmatpush1.msra.mxu0 0.0
  %1972 = vmatprep.subr.mxu0 0.0
  %1973 = vmatpush1.msra.mxu0 0.0
  %1974 = vmatprep.subr.mxu0 0.0
  %1975 = vmatpush1.msra.mxu0 0.0
  %1976 = vmatprep.subr.mxu0 0.0
  %1977 = vmatpush1.msra.mxu0 0.0
  %1978 = vmatprep.subr.mxu0 0.0
  %1979 = vmatpush1.msra.mxu0 0.0
  %1980 = vmatprep.subr.mxu0 0.0
  %1981 = vmatpush1.msra.mxu0 0.0
  %1982 = vmatprep.subr.mxu0 0.0
  %1983 = vmatpush1.msra.mxu0 0.0
  %1984 = vmatprep.subr.mxu0 0.0
  %1985 = vmatpush1.msra.mxu0 0.0
  %1986 = vmatprep.subr.mxu0 0.0
  %1987 = vmatpush1.msra.mxu0 0.0
  %1988 = vmatprep.subr.mxu0 0.0
  %1989 = vmatpush1.msra.mxu0 0.0
  %1990 = vmatprep.subr.mxu0 0.0
  %1991 = vmatpush1.msra.mxu0 0.0
  %1992 = vmatprep.subr.mxu0 0.0
  %1993 = vmatpush1.msra.mxu0 0.0
  %1994 = vmatprep.subr.mxu0 0.0
  %1995 = vmatpush1.msra.mxu0 0.0
  %1996 = vmatprep.subr.mxu0 0.0
  %1997 = vmatpush1.msra.mxu0 0.0
  %1998 = vmatprep.subr.mxu0 0.0
  %1999 = vmatpush1.msra.mxu0 0.0
  %2000 = vmatprep.subr.mxu0 0.0
  %2001 = vmatpush1.msra.mxu0 0.0
  %2002 = vmatprep.subr.mxu0 0.0
  %2003 = vmatpush1.msra.mxu0 0.0
  %2004 = vmatprep.subr.mxu0 0.0
  %2005 = vmatpush1.msra.mxu0 0.0
  %2006 = vmatprep.subr.mxu0 0.0
  %2007 = vmatpush1.msra.mxu0 0.0
  %2008 = vmatprep.subr.mxu0 0.0
  %2009 = vmatpush1.msra.mxu0 0.0
  %2010 = vmatprep.subr.mxu0 0.0
  %2011 = vmatpush1.msra.mxu0 0.0
  %2012 = vmatprep.subr.mxu0 0.0
  %2013 = vmatpush1.msra.mxu0 0.0
  %2014 = vmatprep.subr.mxu0 0.0
  %2015 = vmatpush1.msra.mxu0 0.0
  %2016 = vmatprep.subr.mxu0 0.0
  %2017 = vmatpush1.msra.mxu0 0.0
  %2018 = vmatprep.subr.mxu0 0.0
  %2019 = vmatpush1.msra.mxu0 0.0
  %2020 = vmatprep.subr.mxu0 0.0
  %2021 = vmatpush1.msra.mxu0 0.0
  %2022 = vmatprep.subr.mxu0 0.0
  %2023 = vmatpush1.msra.mxu0 0.0
  %2024 = vmatprep.subr.mxu0 0.0
  %2025 = vmatpush1.msra.mxu0 0.0
  %2026 = vmatprep.mubr.f32.mxu0 0.0
  %2027 = vmatmul.mubr.f32.gmra.mrb[0].mxu0 %v1890
  %v2028 = vpop.f32.mrb[0].mxu0
  %v2029 = vadd.f32 0.0, %v2028
  %v2030 = vpop.f32.mrb[0].mxu0
  %2031 = vdwg.mxu0
  %v2032 = vadd.f32 %v422, %v1959
  %v2033 = vxor.u32 %v2032, 2147483648
  %v2034 = vmul.f32 %v2033, 1.442695
  %v2035 = vpow.pop %v2034
  %v2036 = vadd.f32 %v2035, 1.0
  %v2037 = vrcp.pop %v2036
  %v2038 = vmul.f32 1.0, %v2037
  %v2039 = vadd.f32 %v682, %v2029
  %v2040 = vxor.u32 %v2039, 2147483648
  %v2041 = vmul.f32 %v2040, 1.442695
  %v2042 = vpow.pop %v2041
  %v2043 = vadd.f32 %v2042, 1.0
  %v2044 = vrcp.pop %v2043
  %v2045 = vmul.f32 1.0, %v2044
  %2046 = vmatprep.subr.mxu0 0.0
  %2047 = vmatpush1.msra.mxu0 %v72
  %2048 = vmatprep.subr.mxu0 0.0
  %2049 = vmatpush1.msra.mxu0 %v73
  %2050 = vmatprep.subr.mxu0 0.0
  %2051 = vmatpush1.msra.mxu0 %v74
  %2052 = vmatprep.subr.mxu0 0.0
  %2053 = vmatpush1.msra.mxu0 %v75
  %2054 = vmatprep.subr.mxu0 0.0
  %2055 = vmatpush1.msra.mxu0 0.0
  %2056 = vmatprep.subr.mxu0 0.0
  %2057 = vmatpush1.msra.mxu0 0.0
  %2058 = vmatprep.subr.mxu0 0.0
  %2059 = vmatpush1.msra.mxu0 0.0
  %2060 = vmatprep.subr.mxu0 0.0
  %2061 = vmatpush1.msra.mxu0 0.0
  %2062 = vmatprep.subr.mxu0 0.0
  %2063 = vmatpush1.msra.mxu0 0.0
  %2064 = vmatprep.subr.mxu0 0.0
  %2065 = vmatpush1.msra.mxu0 0.0
  %2066 = vmatprep.subr.mxu0 0.0
  %2067 = vmatpush1.msra.mxu0 0.0
  %2068 = vmatprep.subr.mxu0 0.0
  %2069 = vmatpush1.msra.mxu0 0.0
  %2070 = vmatprep.subr.mxu0 0.0
  %2071 = vmatpush1.msra.mxu0 0.0
  %2072 = vmatprep.subr.mxu0 0.0
  %2073 = vmatpush1.msra.mxu0 0.0
  %2074 = vmatprep.subr.mxu0 0.0
  %2075 = vmatpush1.msra.mxu0 0.0
  %2076 = vmatprep.subr.mxu0 0.0
  %2077 = vmatpush1.msra.mxu0 0.0
  %2078 = vmatprep.subr.mxu0 0.0
  %2079 = vmatpush1.msra.mxu0 0.0
  %2080 = vmatprep.subr.mxu0 0.0
  %2081 = vmatpush1.msra.mxu0 0.0
  %2082 = vmatprep.subr.mxu0 0.0
  %2083 = vmatpush1.msra.mxu0 0.0
  %2084 = vmatprep.subr.mxu0 0.0
  %2085 = vmatpush1.msra.mxu0 0.0
  %2086 = vmatprep.subr.mxu0 0.0
  %2087 = vmatpush1.msra.mxu0 0.0
  %2088 = vmatprep.subr.mxu0 0.0
  %2089 = vmatpush1.msra.mxu0 0.0
  %2090 = vmatprep.subr.mxu0 0.0
  %2091 = vmatpush1.msra.mxu0 0.0
  %2092 = vmatprep.subr.mxu0 0.0
  %2093 = vmatpush1.msra.mxu0 0.0
  %2094 = vmatprep.subr.mxu0 0.0
  %2095 = vmatpush1.msra.mxu0 0.0
  %2096 = vmatprep.subr.mxu0 0.0
  %2097 = vmatpush1.msra.mxu0 0.0
  %2098 = vmatprep.subr.mxu0 0.0
  %2099 = vmatpush1.msra.mxu0 0.0
  %2100 = vmatprep.subr.mxu0 0.0
  %2101 = vmatpush1.msra.mxu0 0.0
  %2102 = vmatprep.subr.mxu0 0.0
  %2103 = vmatpush1.msra.mxu0 0.0
  %2104 = vmatprep.subr.mxu0 0.0
  %2105 = vmatpush1.msra.mxu0 0.0
  %2106 = vmatprep.subr.mxu0 0.0
  %2107 = vmatpush1.msra.mxu0 0.0
  %2108 = vmatprep.subr.mxu0 0.0
  %2109 = vmatpush1.msra.mxu0 0.0
  %2110 = vmatprep.mubr.f32.mxu0 0.0
  %2111 = vmatmul.mubr.f32.gmra.mrb[0].mxu0 %v1890
  %v2112 = vpop.f32.mrb[0].mxu0
  %v2113 = vadd.f32 %v1108, %v2112
  %v2114 = vpop.f32.mrb[0].mxu0
  %2115 = vdwg.mxu0
  %v2116 = vmul.f32 %v2038, %v2113
  %v2117 = vadd.f32 %v942, %v2116
  %v2118 = vtanh.pop %v2117
  %v2119 = vsub.f32 1.0, %v2045
  %v2120 = vmul.f32 %v2119, %v2118
  %v2121 = vmul.f32 %v2045, %v1888
  %v2122 = vadd.f32 %v2120, %v2121
  %v2124 = vsel %vm946, %v2122, 0
  %2126 = vmatprep.subr.mxu0 0.0
  %2127 = vmatpush1.msra.mxu0 %v62
  %2128 = vmatprep.subr.mxu0 0.0
  %2129 = vmatpush1.msra.mxu0 %v63
  %2130 = vmatprep.subr.mxu0 0.0
  %2131 = vmatpush1.msra.mxu0 %v64
  %2132 = vmatprep.subr.mxu0 0.0
  %2133 = vmatpush1.msra.mxu0 %v65
  %2134 = vmatprep.subr.mxu0 0.0
  %2135 = vmatpush1.msra.mxu0 0.0
  %2136 = vmatprep.subr.mxu0 0.0
  %2137 = vmatpush1.msra.mxu0 0.0
  %2138 = vmatprep.subr.mxu0 0.0
  %2139 = vmatpush1.msra.mxu0 0.0
  %2140 = vmatprep.subr.mxu0 0.0
  %2141 = vmatpush1.msra.mxu0 0.0
  %2142 = vmatprep.subr.mxu0 0.0
  %2143 = vmatpush1.msra.mxu0 0.0
  %2144 = vmatprep.subr.mxu0 0.0
  %2145 = vmatpush1.msra.mxu0 0.0
  %2146 = vmatprep.subr.mxu0 0.0
  %2147 = vmatpush1.msra.mxu0 0.0
  %2148 = vmatprep.subr.mxu0 0.0
  %2149 = vmatpush1.msra.mxu0 0.0
  %2150 = vmatprep.subr.mxu0 0.0
  %2151 = vmatpush1.msra.mxu0 0.0
  %2152 = vmatprep.subr.mxu0 0.0
  %2153 = vmatpush1.msra.mxu0 0.0
  %2154 = vmatprep.subr.mxu0 0.0
  %2155 = vmatpush1.msra.mxu0 0.0
  %2156 = vmatprep.subr.mxu0 0.0
  %2157 = vmatpush1.msra.mxu0 0.0
  %2158 = vmatprep.subr.mxu0 0.0
  %2159 = vmatpush1.msra.mxu0 0.0
  %2160 = vmatprep.subr.mxu0 0.0
  %2161 = vmatpush1.msra.mxu0 0.0
  %2162 = vmatprep.subr.mxu0 0.0
  %2163 = vmatpush1.msra.mxu0 0.0
  %2164 = vmatprep.subr.mxu0 0.0
  %2165 = vmatpush1.msra.mxu0 0.0
  %2166 = vmatprep.subr.mxu0 0.0
  %2167 = vmatpush1.msra.mxu0 0.0
  %2168 = vmatprep.subr.mxu0 0.0
  %2169 = vmatpush1.msra.mxu0 0.0
  %2170 = vmatprep.subr.mxu0 0.0
  %2171 = vmatpush1.msra.mxu0 0.0
  %2172 = vmatprep.subr.mxu0 0.0
  %2173 = vmatpush1.msra.mxu0 0.0
  %2174 = vmatprep.subr.mxu0 0.0
  %2175 = vmatpush1.msra.mxu0 0.0
  %2176 = vmatprep.subr.mxu0 0.0
  %2177 = vmatpush1.msra.mxu0 0.0
  %2178 = vmatprep.subr.mxu0 0.0
  %2179 = vmatpush1.msra.mxu0 0.0
  %2180 = vmatprep.subr.mxu0 0.0
  %2181 = vmatpush1.msra.mxu0 0.0
  %2182 = vmatprep.subr.mxu0 0.0
  %2183 = vmatpush1.msra.mxu0 0.0
  %2184 = vmatprep.subr.mxu0 0.0
  %2185 = vmatpush1.msra.mxu0 0.0
  %2186 = vmatprep.subr.mxu0 0.0
  %2187 = vmatpush1.msra.mxu0 0.0
  %2188 = vmatprep.subr.mxu0 0.0
  %2189 = vmatpush1.msra.mxu0 0.0
  %2190 = vmatprep.mubr.f32.mxu0 0.0
  %2191 = vmatmul.mubr.f32.gmra.mrb[0].mxu0 %v2124
  %v2192 = vpop.f32.mrb[0].mxu0
  %v2193 = vadd.f32 0.0, %v2192
  %v2194 = vpop.f32.mrb[0].mxu0
  %2195 = vdwg.mxu0
  %2196 = vmatprep.subr.mxu0 0.0
  %2197 = vmatpush1.msra.mxu0 %v67
  %2198 = vmatprep.subr.mxu0 0.0
  %2199 = vmatpush1.msra.mxu0 %v68
  %2200 = vmatprep.subr.mxu0 0.0
  %2201 = vmatpush1.msra.mxu0 %v69
  %2202 = vmatprep.subr.mxu0 0.0
  %2203 = vmatpush1.msra.mxu0 %v70
  %2204 = vmatprep.subr.mxu0 0.0
  %2205 = vmatpush1.msra.mxu0 0.0
  %2206 = vmatprep.subr.mxu0 0.0
  %2207 = vmatpush1.msra.mxu0 0.0
  %2208 = vmatprep.subr.mxu0 0.0
  %2209 = vmatpush1.msra.mxu0 0.0
  %2210 = vmatprep.subr.mxu0 0.0
  %2211 = vmatpush1.msra.mxu0 0.0
  %2212 = vmatprep.subr.mxu0 0.0
  %2213 = vmatpush1.msra.mxu0 0.0
  %2214 = vmatprep.subr.mxu0 0.0
  %2215 = vmatpush1.msra.mxu0 0.0
  %2216 = vmatprep.subr.mxu0 0.0
  %2217 = vmatpush1.msra.mxu0 0.0
  %2218 = vmatprep.subr.mxu0 0.0
  %2219 = vmatpush1.msra.mxu0 0.0
  %2220 = vmatprep.subr.mxu0 0.0
  %2221 = vmatpush1.msra.mxu0 0.0
  %2222 = vmatprep.subr.mxu0 0.0
  %2223 = vmatpush1.msra.mxu0 0.0
  %2224 = vmatprep.subr.mxu0 0.0
  %2225 = vmatpush1.msra.mxu0 0.0
  %2226 = vmatprep.subr.mxu0 0.0
  %2227 = vmatpush1.msra.mxu0 0.0
  %2228 = vmatprep.subr.mxu0 0.0
  %2229 = vmatpush1.msra.mxu0 0.0
  %2230 = vmatprep.subr.mxu0 0.0
  %2231 = vmatpush1.msra.mxu0 0.0
  %2232 = vmatprep.subr.mxu0 0.0
  %2233 = vmatpush1.msra.mxu0 0.0
  %2234 = vmatprep.subr.mxu0 0.0
  %2235 = vmatpush1.msra.mxu0 0.0
  %2236 = vmatprep.subr.mxu0 0.0
  %2237 = vmatpush1.msra.mxu0 0.0
  %2238 = vmatprep.subr.mxu0 0.0
  %2239 = vmatpush1.msra.mxu0 0.0
  %2240 = vmatprep.subr.mxu0 0.0
  %2241 = vmatpush1.msra.mxu0 0.0
  %2242 = vmatprep.subr.mxu0 0.0
  %2243 = vmatpush1.msra.mxu0 0.0
  %2244 = vmatprep.subr.mxu0 0.0
  %2245 = vmatpush1.msra.mxu0 0.0
  %2246 = vmatprep.subr.mxu0 0.0
  %2247 = vmatpush1.msra.mxu0 0.0
  %2248 = vmatprep.subr.mxu0 0.0
  %2249 = vmatpush1.msra.mxu0 0.0
  %2250 = vmatprep.subr.mxu0 0.0
  %2251 = vmatpush1.msra.mxu0 0.0
  %2252 = vmatprep.subr.mxu0 0.0
  %2253 = vmatpush1.msra.mxu0 0.0
  %2254 = vmatprep.subr.mxu0 0.0
  %2255 = vmatpush1.msra.mxu0 0.0
  %2256 = vmatprep.subr.mxu0 0.0
  %2257 = vmatpush1.msra.mxu0 0.0
  %2258 = vmatprep.subr.mxu0 0.0
  %2259 = vmatpush1.msra.mxu0 0.0
  %2260 = vmatprep.mubr.f32.mxu0 0.0
  %2261 = vmatmul.mubr.f32.gmra.mrb[0].mxu0 %v2124
  %v2262 = vpop.f32.mrb[0].mxu0
  %v2263 = vadd.f32 0.0, %v2262
  %v2264 = vpop.f32.mrb[0].mxu0
  %2265 = vdwg.mxu0
  %v2266 = vadd.f32 %v423, %v2193
  %v2267 = vxor.u32 %v2266, 2147483648
  %v2268 = vmul.f32 %v2267, 1.442695
  %v2269 = vpow.pop %v2268
  %v2270 = vadd.f32 %v2269, 1.0
  %v2271 = vrcp.pop %v2270
  %v2272 = vmul.f32 1.0, %v2271
  %v2273 = vadd.f32 %v683, %v2263
  %v2274 = vxor.u32 %v2273, 2147483648
  %v2275 = vmul.f32 %v2274, 1.442695
  %v2276 = vpow.pop %v2275
  %v2277 = vadd.f32 %v2276, 1.0
  %v2278 = vrcp.pop %v2277
  %v2279 = vmul.f32 1.0, %v2278
  %2280 = vmatprep.subr.mxu0 0.0
  %2281 = vmatpush1.msra.mxu0 %v72
  %2282 = vmatprep.subr.mxu0 0.0
  %2283 = vmatpush1.msra.mxu0 %v73
  %2284 = vmatprep.subr.mxu0 0.0
  %2285 = vmatpush1.msra.mxu0 %v74
  %2286 = vmatprep.subr.mxu0 0.0
  %2287 = vmatpush1.msra.mxu0 %v75
  %2288 = vmatprep.subr.mxu0 0.0
  %2289 = vmatpush1.msra.mxu0 0.0
  %2290 = vmatprep.subr.mxu0 0.0
  %2291 = vmatpush1.msra.mxu0 0.0
  %2292 = vmatprep.subr.mxu0 0.0
  %2293 = vmatpush1.msra.mxu0 0.0
  %2294 = vmatprep.subr.mxu0 0.0
  %2295 = vmatpush1.msra.mxu0 0.0
  %2296 = vmatprep.subr.mxu0 0.0
  %2297 = vmatpush1.msra.mxu0 0.0
  %2298 = vmatprep.subr.mxu0 0.0
  %2299 = vmatpush1.msra.mxu0 0.0
  %2300 = vmatprep.subr.mxu0 0.0
  %2301 = vmatpush1.msra.mxu0 0.0
  %2302 = vmatprep.subr.mxu0 0.0
  %2303 = vmatpush1.msra.mxu0 0.0
  %2304 = vmatprep.subr.mxu0 0.0
  %2305 = vmatpush1.msra.mxu0 0.0
  %2306 = vmatprep.subr.mxu0 0.0
  %2307 = vmatpush1.msra.mxu0 0.0
  %2308 = vmatprep.subr.mxu0 0.0
  %2309 = vmatpush1.msra.mxu0 0.0
  %2310 = vmatprep.subr.mxu0 0.0
  %2311 = vmatpush1.msra.mxu0 0.0
  %2312 = vmatprep.subr.mxu0 0.0
  %2313 = vmatpush1.msra.mxu0 0.0
  %2314 = vmatprep.subr.mxu0 0.0
  %2315 = vmatpush1.msra.mxu0 0.0
  %2316 = vmatprep.subr.mxu0 0.0
  %2317 = vmatpush1.msra.mxu0 0.0
  %2318 = vmatprep.subr.mxu0 0.0
  %2319 = vmatpush1.msra.mxu0 0.0
  %2320 = vmatprep.subr.mxu0 0.0
  %2321 = vmatpush1.msra.mxu0 0.0
  %2322 = vmatprep.subr.mxu0 0.0
  %2323 = vmatpush1.msra.mxu0 0.0
  %2324 = vmatprep.subr.mxu0 0.0
  %2325 = vmatpush1.msra.mxu0 0.0
  %2326 = vmatprep.subr.mxu0 0.0
  %2327 = vmatpush1.msra.mxu0 0.0
  %2328 = vmatprep.subr.mxu0 0.0
  %2329 = vmatpush1.msra.mxu0 0.0
  %2330 = vmatprep.subr.mxu0 0.0
  %2331 = vmatpush1.msra.mxu0 0.0
  %2332 = vmatprep.subr.mxu0 0.0
  %2333 = vmatpush1.msra.mxu0 0.0
  %2334 = vmatprep.subr.mxu0 0.0
  %2335 = vmatpush1.msra.mxu0 0.0
  %2336 = vmatprep.subr.mxu0 0.0
  %2337 = vmatpush1.msra.mxu0 0.0
  %2338 = vmatprep.subr.mxu0 0.0
  %2339 = vmatpush1.msra.mxu0 0.0
  %2340 = vmatprep.subr.mxu0 0.0
  %2341 = vmatpush1.msra.mxu0 0.0
  %2342 = vmatprep.subr.mxu0 0.0
  %2343 = vmatpush1.msra.mxu0 0.0
  %2344 = vmatprep.mubr.f32.mxu0 0.0
  %2345 = vmatmul.mubr.f32.gmra.mrb[0].mxu0 %v2124
  %v2346 = vpop.f32.mrb[0].mxu0
  %v2347 = vadd.f32 %v1108, %v2346
  %v2348 = vpop.f32.mrb[0].mxu0
  %2349 = vdwg.mxu0
  %v2350 = vmul.f32 %v2272, %v2347
  %v2351 = vadd.f32 %v943, %v2350
  %v2352 = vtanh.pop %v2351
  %v2353 = vsub.f32 1.0, %v2279
  %v2354 = vmul.f32 %v2353, %v2352
  %v2355 = vmul.f32 %v2279, %v2122
  %v2356 = vadd.f32 %v2354, %v2355
  %v2358 = vsel %vm946, %v2356, 0
  %2360 = vmatprep.subr.mxu0 0.0
  %2361 = vmatpush1.msra.mxu0 %v62
  %2362 = vmatprep.subr.mxu0 0.0
  %2363 = vmatpush1.msra.mxu0 %v63
  %2364 = vmatprep.subr.mxu0 0.0
  %2365 = vmatpush1.msra.mxu0 %v64
  %2366 = vmatprep.subr.mxu0 0.0
  %2367 = vmatpush1.msra.mxu0 %v65
  %2368 = vmatprep.subr.mxu0 0.0
  %2369 = vmatpush1.msra.mxu0 0.0
  %2370 = vmatprep.subr.mxu0 0.0
  %2371 = vmatpush1.msra.mxu0 0.0
  %2372 = vmatprep.subr.mxu0 0.0
  %2373 = vmatpush1.msra.mxu0 0.0
  %2374 = vmatprep.subr.mxu0 0.0
  %2375 = vmatpush1.msra.mxu0 0.0
  %2376 = vmatprep.subr.mxu0 0.0
  %2377 = vmatpush1.msra.mxu0 0.0
  %2378 = vmatprep.subr.mxu0 0.0
  %2379 = vmatpush1.msra.mxu0 0.0
  %2380 = vmatprep.subr.mxu0 0.0
  %2381 = vmatpush1.msra.mxu0 0.0
  %2382 = vmatprep.subr.mxu0 0.0
  %2383 = vmatpush1.msra.mxu0 0.0
  %2384 = vmatprep.subr.mxu0 0.0
  %2385 = vmatpush1.msra.mxu0 0.0
  %2386 = vmatprep.subr.mxu0 0.0
  %2387 = vmatpush1.msra.mxu0 0.0
  %2388 = vmatprep.subr.mxu0 0.0
  %2389 = vmatpush1.msra.mxu0 0.0
  %2390 = vmatprep.subr.mxu0 0.0
  %2391 = vmatpush1.msra.mxu0 0.0
  %2392 = vmatprep.subr.mxu0 0.0
  %2393 = vmatpush1.msra.mxu0 0.0
  %2394 = vmatprep.subr.mxu0 0.0
  %2395 = vmatpush1.msra.mxu0 0.0
  %2396 = vmatprep.subr.mxu0 0.0
  %2397 = vmatpush1.msra.mxu0 0.0
  %2398 = vmatprep.subr.mxu0 0.0
  %2399 = vmatpush1.msra.mxu0 0.0
  %2400 = vmatprep.subr.mxu0 0.0
  %2401 = vmatpush1.msra.mxu0 0.0
  %2402 = vmatprep.subr.mxu0 0.0
  %2403 = vmatpush1.msra.mxu0 0.0
  %2404 = vmatprep.subr.mxu0 0.0
  %2405 = vmatpush1.msra.mxu0 0.0
  %2406 = vmatprep.subr.mxu0 0.0
  %2407 = vmatpush1.msra.mxu0 0.0
  %2408 = vmatprep.subr.mxu0 0.0
  %2409 = vmatpush1.msra.mxu0 0.0
  %2410 = vmatprep.subr.mxu0 0.0
  %2411 = vmatpush1.msra.mxu0 0.0
  %2412 = vmatprep.subr.mxu0 0.0
  %2413 = vmatpush1.msra.mxu0 0.0
  %2414 = vmatprep.subr.mxu0 0.0
  %2415 = vmatpush1.msra.mxu0 0.0
  %2416 = vmatprep.subr.mxu0 0.0
  %2417 = vmatpush1.msra.mxu0 0.0
  %2418 = vmatprep.subr.mxu0 0.0
  %2419 = vmatpush1.msra.mxu0 0.0
  %2420 = vmatprep.subr.mxu0 0.0
  %2421 = vmatpush1.msra.mxu0 0.0
  %2422 = vmatprep.subr.mxu0 0.0
  %2423 = vmatpush1.msra.mxu0 0.0
  %2424 = vmatprep.mubr.f32.mxu0 0.0
  %2425 = vmatmul.mubr.f32.gmra.mrb[0].mxu0 %v2358
  %v2426 = vpop.f32.mrb[0].mxu0
  %v2427 = vadd.f32 0.0, %v2426
  %v2428 = vpop.f32.mrb[0].mxu0
  %2429 = vdwg.mxu0
  %2430 = vmatprep.subr.mxu0 0.0
  %2431 = vmatpush1.msra.mxu0 %v67
  %2432 = vmatprep.subr.mxu0 0.0
  %2433 = vmatpush1.msra.mxu0 %v68
  %2434 = vmatprep.subr.mxu0 0.0
  %2435 = vmatpush1.msra.mxu0 %v69
  %2436 = vmatprep.subr.mxu0 0.0
  %2437 = vmatpush1.msra.mxu0 %v70
  %2438 = vmatprep.subr.mxu0 0.0
  %2439 = vmatpush1.msra.mxu0 0.0
  %2440 = vmatprep.subr.mxu0 0.0
  %2441 = vmatpush1.msra.mxu0 0.0
  %2442 = vmatprep.subr.mxu0 0.0
  %2443 = vmatpush1.msra.mxu0 0.0
  %2444 = vmatprep.subr.mxu0 0.0
  %2445 = vmatpush1.msra.mxu0 0.0
  %2446 = vmatprep.subr.mxu0 0.0
  %2447 = vmatpush1.msra.mxu0 0.0
  %2448 = vmatprep.subr.mxu0 0.0
  %2449 = vmatpush1.msra.mxu0 0.0
  %2450 = vmatprep.subr.mxu0 0.0
  %2451 = vmatpush1.msra.mxu0 0.0
  %2452 = vmatprep.subr.mxu0 0.0
  %2453 = vmatpush1.msra.mxu0 0.0
  %2454 = vmatprep.subr.mxu0 0.0
  %2455 = vmatpush1.msra.mxu0 0.0
  %2456 = vmatprep.subr.mxu0 0.0
  %2457 = vmatpush1.msra.mxu0 0.0
  %2458 = vmatprep.subr.mxu0 0.0
  %2459 = vmatpush1.msra.mxu0 0.0
  %2460 = vmatprep.subr.mxu0 0.0
  %2461 = vmatpush1.msra.mxu0 0.0
  %2462 = vmatprep.subr.mxu0 0.0
  %2463 = vmatpush1.msra.mxu0 0.0
  %2464 = vmatprep.subr.mxu0 0.0
  %2465 = vmatpush1.msra.mxu0 0.0
  %2466 = vmatprep.subr.mxu0 0.0
  %2467 = vmatpush1.msra.mxu0 0.0
  %2468 = vmatprep.subr.mxu0 0.0
  %2469 = vmatpush1.msra.mxu0 0.0
  %2470 = vmatprep.subr.mxu0 0.0
  %2471 = vmatpush1.msra.mxu0 0.0
  %2472 = vmatprep.subr.mxu0 0.0
  %2473 = vmatpush1.msra.mxu0 0.0
  %2474 = vmatprep.subr.mxu0 0.0
  %2475 = vmatpush1.msra.mxu0 0.0
  %2476 = vmatprep.subr.mxu0 0.0
  %2477 = vmatpush1.msra.mxu0 0.0
  %2478 = vmatprep.subr.mxu0 0.0
  %2479 = vmatpush1.msra.mxu0 0.0
  %2480 = vmatprep.subr.mxu0 0.0
  %2481 = vmatpush1.msra.mxu0 0.0
  %2482 = vmatprep.subr.mxu0 0.0
  %2483 = vmatpush1.msra.mxu0 0.0
  %2484 = vmatprep.subr.mxu0 0.0
  %2485 = vmatpush1.msra.mxu0 0.0
  %2486 = vmatprep.subr.mxu0 0.0
  %2487 = vmatpush1.msra.mxu0 0.0
  %2488 = vmatprep.subr.mxu0 0.0
  %2489 = vmatpush1.msra.mxu0 0.0
  %2490 = vmatprep.subr.mxu0 0.0
  %2491 = vmatpush1.msra.mxu0 0.0
  %2492 = vmatprep.subr.mxu0 0.0
  %2493 = vmatpush1.msra.mxu0 0.0
  %2494 = vmatprep.mubr.f32.mxu0 0.0
  %2495 = vmatmul.mubr.f32.gmra.mrb[0].mxu0 %v2358
  %v2496 = vpop.f32.mrb[0].mxu0
  %v2497 = vadd.f32 0.0, %v2496
  %v2498 = vpop.f32.mrb[0].mxu0
  %2499 = vdwg.mxu0
  %v2500 = vadd.f32 %v424, %v2427
  %v2501 = vxor.u32 %v2500, 2147483648
  %v2502 = vmul.f32 %v2501, 1.442695
  %v2503 = vpow.pop %v2502
  %v2504 = vadd.f32 %v2503, 1.0
  %v2505 = vrcp.pop %v2504
  %v2506 = vmul.f32 1.0, %v2505
  %v2507 = vadd.f32 %v684, %v2497
  %v2508 = vxor.u32 %v2507, 2147483648
  %v2509 = vmul.f32 %v2508, 1.442695
  %v2510 = vpow.pop %v2509
  %v2511 = vadd.f32 %v2510, 1.0
  %v2512 = vrcp.pop %v2511
  %v2513 = vmul.f32 1.0, %v2512
  %2514 = vmatprep.subr.mxu0 0.0
  %2515 = vmatpush1.msra.mxu0 %v72
  %2516 = vmatprep.subr.mxu0 0.0
  %2517 = vmatpush1.msra.mxu0 %v73
  %2518 = vmatprep.subr.mxu0 0.0
  %2519 = vmatpush1.msra.mxu0 %v74
  %2520 = vmatprep.subr.mxu0 0.0
  %2521 = vmatpush1.msra.mxu0 %v75
  %2522 = vmatprep.subr.mxu0 0.0
  %2523 = vmatpush1.msra.mxu0 0.0
  %2524 = vmatprep.subr.mxu0 0.0
  %2525 = vmatpush1.msra.mxu0 0.0
  %2526 = vmatprep.subr.mxu0 0.0
  %2527 = vmatpush1.msra.mxu0 0.0
  %2528 = vmatprep.subr.mxu0 0.0
  %2529 = vmatpush1.msra.mxu0 0.0
  %2530 = vmatprep.subr.mxu0 0.0
  %2531 = vmatpush1.msra.mxu0 0.0
  %2532 = vmatprep.subr.mxu0 0.0
  %2533 = vmatpush1.msra.mxu0 0.0
  %2534 = vmatprep.subr.mxu0 0.0
  %2535 = vmatpush1.msra.mxu0 0.0
  %2536 = vmatprep.subr.mxu0 0.0
  %2537 = vmatpush1.msra.mxu0 0.0
  %2538 = vmatprep.subr.mxu0 0.0
  %2539 = vmatpush1.msra.mxu0 0.0
  %2540 = vmatprep.subr.mxu0 0.0
  %2541 = vmatpush1.msra.mxu0 0.0
  %2542 = vmatprep.subr.mxu0 0.0
  %2543 = vmatpush1.msra.mxu0 0.0
  %2544 = vmatprep.subr.mxu0 0.0
  %2545 = vmatpush1.msra.mxu0 0.0
  %2546 = vmatprep.subr.mxu0 0.0
  %2547 = vmatpush1.msra.mxu0 0.0
  %2548 = vmatprep.subr.mxu0 0.0
  %2549 = vmatpush1.msra.mxu0 0.0
  %2550 = vmatprep.subr.mxu0 0.0
  %2551 = vmatpush1.msra.mxu0 0.0
  %2552 = vmatprep.subr.mxu0 0.0
  %2553 = vmatpush1.msra.mxu0 0.0
  %2554 = vmatprep.subr.mxu0 0.0
  %2555 = vmatpush1.msra.mxu0 0.0
  %2556 = vmatprep.subr.mxu0 0.0
  %2557 = vmatpush1.msra.mxu0 0.0
  %2558 = vmatprep.subr.mxu0 0.0
  %2559 = vmatpush1.msra.mxu0 0.0
  %2560 = vmatprep.subr.mxu0 0.0
  %2561 = vmatpush1.msra.mxu0 0.0
  %2562 = vmatprep.subr.mxu0 0.0
  %2563 = vmatpush1.msra.mxu0 0.0
  %2564 = vmatprep.subr.mxu0 0.0
  %2565 = vmatpush1.msra.mxu0 0.0
  %2566 = vmatprep.subr.mxu0 0.0
  %2567 = vmatpush1.msra.mxu0 0.0
  %2568 = vmatprep.subr.mxu0 0.0
  %2569 = vmatpush1.msra.mxu0 0.0
  %2570 = vmatprep.subr.mxu0 0.0
  %2571 = vmatpush1.msra.mxu0 0.0
  %2572 = vmatprep.subr.mxu0 0.0
  %2573 = vmatpush1.msra.mxu0 0.0
  %2574 = vmatprep.subr.mxu0 0.0
  %2575 = vmatpush1.msra.mxu0 0.0
  %2576 = vmatprep.subr.mxu0 0.0
  %2577 = vmatpush1.msra.mxu0 0.0
  %2578 = vmatprep.mubr.f32.mxu0 0.0
  %2579 = vmatmul.mubr.f32.gmra.mrb[0].mxu0 %v2358
  %v2580 = vpop.f32.mrb[0].mxu0
  %v2581 = vadd.f32 %v1108, %v2580
  %v2582 = vpop.f32.mrb[0].mxu0
  %2583 = vdwg.mxu0
  %v2584 = vmul.f32 %v2506, %v2581
  %v2585 = vadd.f32 %v944, %v2584
  %v2586 = vtanh.pop %v2585
  %v2587 = vsub.f32 1.0, %v2513
  %v2588 = vmul.f32 %v2587, %v2586
  %v2589 = vmul.f32 %v2513, %v2356
  %v2590 = vadd.f32 %v2588, %v2589
  %v2592 = vsel %vm946, %v2590, 0
  %2594 = vmatprep.subr.mxu0 0.0
  %2595 = vmatpush1.msra.mxu0 %v62
  %2596 = vmatprep.subr.mxu0 0.0
  %2597 = vmatpush1.msra.mxu0 %v63
  %2598 = vmatprep.subr.mxu0 0.0
  %2599 = vmatpush1.msra.mxu0 %v64
  %2600 = vmatprep.subr.mxu0 0.0
  %2601 = vmatpush1.msra.mxu0 %v65
  %2602 = vmatprep.subr.mxu0 0.0
  %2603 = vmatpush1.msra.mxu0 0.0
  %2604 = vmatprep.subr.mxu0 0.0
  %2605 = vmatpush1.msra.mxu0 0.0
  %2606 = vmatprep.subr.mxu0 0.0
  %2607 = vmatpush1.msra.mxu0 0.0
  %2608 = vmatprep.subr.mxu0 0.0
  %2609 = vmatpush1.msra.mxu0 0.0
  %2610 = vmatprep.subr.mxu0 0.0
  %2611 = vmatpush1.msra.mxu0 0.0
  %2612 = vmatprep.subr.mxu0 0.0
  %2613 = vmatpush1.msra.mxu0 0.0
  %2614 = vmatprep.subr.mxu0 0.0
  %2615 = vmatpush1.msra.mxu0 0.0
  %2616 = vmatprep.subr.mxu0 0.0
  %2617 = vmatpush1.msra.mxu0 0.0
  %2618 = vmatprep.subr.mxu0 0.0
  %2619 = vmatpush1.msra.mxu0 0.0
  %2620 = vmatprep.subr.mxu0 0.0
  %2621 = vmatpush1.msra.mxu0 0.0
  %2622 = vmatprep.subr.mxu0 0.0
  %2623 = vmatpush1.msra.mxu0 0.0
  %2624 = vmatprep.subr.mxu0 0.0
  %2625 = vmatpush1.msra.mxu0 0.0
  %2626 = vmatprep.subr.mxu0 0.0
  %2627 = vmatpush1.msra.mxu0 0.0
  %2628 = vmatprep.subr.mxu0 0.0
  %2629 = vmatpush1.msra.mxu0 0.0
  %2630 = vmatprep.subr.mxu0 0.0
  %2631 = vmatpush1.msra.mxu0 0.0
  %2632 = vmatprep.subr.mxu0 0.0
  %2633 = vmatpush1.msra.mxu0 0.0
  %2634 = vmatprep.subr.mxu0 0.0
  %2635 = vmatpush1.msra.mxu0 0.0
  %2636 = vmatprep.subr.mxu0 0.0
  %2637 = vmatpush1.msra.mxu0 0.0
  %2638 = vmatprep.subr.mxu0 0.0
  %2639 = vmatpush1.msra.mxu0 0.0
  %2640 = vmatprep.subr.mxu0 0.0
  %2641 = vmatpush1.msra.mxu0 0.0
  %2642 = vmatprep.subr.mxu0 0.0
  %2643 = vmatpush1.msra.mxu0 0.0
  %2644 = vmatprep.subr.mxu0 0.0
  %2645 = vmatpush1.msra.mxu0 0.0
  %2646 = vmatprep.subr.mxu0 0.0
  %2647 = vmatpush1.msra.mxu0 0.0
  %2648 = vmatprep.subr.mxu0 0.0
  %2649 = vmatpush1.msra.mxu0 0.0
  %2650 = vmatprep.subr.mxu0 0.0
  %2651 = vmatpush1.msra.mxu0 0.0
  %2652 = vmatprep.subr.mxu0 0.0
  %2653 = vmatpush1.msra.mxu0 0.0
  %2654 = vmatprep.subr.mxu0 0.0
  %2655 = vmatpush1.msra.mxu0 0.0
  %2656 = vmatprep.subr.mxu0 0.0
  %2657 = vmatpush1.msra.mxu0 0.0
  %2658 = vmatprep.mubr.f32.mxu0 0.0
  %2659 = vmatmul.mubr.f32.gmra.mrb[0].mxu0 %v2592
  %v2660 = vpop.f32.mrb[0].mxu0
  %v2661 = vadd.f32 0.0, %v2660
  %v2662 = vpop.f32.mrb[0].mxu0
  %2663 = vdwg.mxu0
  %2664 = vmatprep.subr.mxu0 0.0
  %2665 = vmatpush1.msra.mxu0 %v67
  %2666 = vmatprep.subr.mxu0 0.0
  %2667 = vmatpush1.msra.mxu0 %v68
  %2668 = vmatprep.subr.mxu0 0.0
  %2669 = vmatpush1.msra.mxu0 %v69
  %2670 = vmatprep.subr.mxu0 0.0
  %2671 = vmatpush1.msra.mxu0 %v70
  %2672 = vmatprep.subr.mxu0 0.0
  %2673 = vmatpush1.msra.mxu0 0.0
  %2674 = vmatprep.subr.mxu0 0.0
  %2675 = vmatpush1.msra.mxu0 0.0
  %2676 = vmatprep.subr.mxu0 0.0
  %2677 = vmatpush1.msra.mxu0 0.0
  %2678 = vmatprep.subr.mxu0 0.0
  %2679 = vmatpush1.msra.mxu0 0.0
  %2680 = vmatprep.subr.mxu0 0.0
  %2681 = vmatpush1.msra.mxu0 0.0
  %2682 = vmatprep.subr.mxu0 0.0
  %2683 = vmatpush1.msra.mxu0 0.0
  %2684 = vmatprep.subr.mxu0 0.0
  %2685 = vmatpush1.msra.mxu0 0.0
  %2686 = vmatprep.subr.mxu0 0.0
  %2687 = vmatpush1.msra.mxu0 0.0
  %2688 = vmatprep.subr.mxu0 0.0
  %2689 = vmatpush1.msra.mxu0 0.0
  %2690 = vmatprep.subr.mxu0 0.0
  %2691 = vmatpush1.msra.mxu0 0.0
  %2692 = vmatprep.subr.mxu0 0.0
  %2693 = vmatpush1.msra.mxu0 0.0
  %2694 = vmatprep.subr.mxu0 0.0
  %2695 = vmatpush1.msra.mxu0 0.0
  %2696 = vmatprep.subr.mxu0 0.0
  %2697 = vmatpush1.msra.mxu0 0.0
  %2698 = vmatprep.subr.mxu0 0.0
  %2699 = vmatpush1.msra.mxu0 0.0
  %2700 = vmatprep.subr.mxu0 0.0
  %2701 = vmatpush1.msra.mxu0 0.0
  %2702 = vmatprep.subr.mxu0 0.0
  %2703 = vmatpush1.msra.mxu0 0.0
  %2704 = vmatprep.subr.mxu0 0.0
  %2705 = vmatpush1.msra.mxu0 0.0
  %2706 = vmatprep.subr.mxu0 0.0
  %2707 = vmatpush1.msra.mxu0 0.0
  %2708 = vmatprep.subr.mxu0 0.0
  %2709 = vmatpush1.msra.mxu0 0.0
  %2710 = vmatprep.subr.mxu0 0.0
  %2711 = vmatpush1.msra.mxu0 0.0
  %2712 = vmatprep.subr.mxu0 0.0
  %2713 = vmatpush1.msra.mxu0 0.0
  %2714 = vmatprep.subr.mxu0 0.0
  %2715 = vmatpush1.msra.mxu0 0.0
  %2716 = vmatprep.subr.mxu0 0.0
  %2717 = vmatpush1.msra.mxu0 0.0
  %2718 = vmatprep.subr.mxu0 0.0
  %2719 = vmatpush1.msra.mxu0 0.0
  %2720 = vmatprep.subr.mxu0 0.0
  %2721 = vmatpush1.msra.mxu0 0.0
  %2722 = vmatprep.subr.mxu0 0.0
  %2723 = vmatpush1.msra.mxu0 0.0
  %2724 = vmatprep.subr.mxu0 0.0
  %2725 = vmatpush1.msra.mxu0 0.0
  %2726 = vmatprep.subr.mxu0 0.0
  %2727 = vmatpush1.msra.mxu0 0.0
  %2728 = vmatprep.mubr.f32.mxu0 0.0
  %2729 = vmatmul.mubr.f32.gmra.mrb[0].mxu0 %v2592
  %v2730 = vpop.f32.mrb[0].mxu0
  %v2731 = vadd.f32 0.0, %v2730
  %v2732 = vpop.f32.mrb[0].mxu0
  %2733 = vdwg.mxu0
  %v2734 = vadd.f32 %v425, %v2661
  %v2735 = vxor.u32 %v2734, 2147483648
  %v2736 = vmul.f32 %v2735, 1.442695
  %v2737 = vpow.pop %v2736
  %v2738 = vadd.f32 %v2737, 1.0
  %v2739 = vrcp.pop %v2738
  %v2740 = vmul.f32 1.0, %v2739
  %v2741 = vadd.f32 %v685, %v2731
  %v2742 = vxor.u32 %v2741, 2147483648
  %v2743 = vmul.f32 %v2742, 1.442695
  %v2744 = vpow.pop %v2743
  %v2745 = vadd.f32 %v2744, 1.0
  %v2746 = vrcp.pop %v2745
  %v2747 = vmul.f32 1.0, %v2746
  %2748 = vmatprep.subr.mxu0 0.0
  %2749 = vmatpush1.msra.mxu0 %v72
  %2750 = vmatprep.subr.mxu0 0.0
  %2751 = vmatpush1.msra.mxu0 %v73
  %2752 = vmatprep.subr.mxu0 0.0
  %2753 = vmatpush1.msra.mxu0 %v74
  %2754 = vmatprep.subr.mxu0 0.0
  %2755 = vmatpush1.msra.mxu0 %v75
  %2756 = vmatprep.subr.mxu0 0.0
  %2757 = vmatpush1.msra.mxu0 0.0
  %2758 = vmatprep.subr.mxu0 0.0
  %2759 = vmatpush1.msra.mxu0 0.0
  %2760 = vmatprep.subr.mxu0 0.0
  %2761 = vmatpush1.msra.mxu0 0.0
  %2762 = vmatprep.subr.mxu0 0.0
  %2763 = vmatpush1.msra.mxu0 0.0
  %2764 = vmatprep.subr.mxu0 0.0
  %2765 = vmatpush1.msra.mxu0 0.0
  %2766 = vmatprep.subr.mxu0 0.0
  %2767 = vmatpush1.msra.mxu0 0.0
  %2768 = vmatprep.subr.mxu0 0.0
  %2769 = vmatpush1.msra.mxu0 0.0
  %2770 = vmatprep.subr.mxu0 0.0
  %2771 = vmatpush1.msra.mxu0 0.0
  %2772 = vmatprep.subr.mxu0 0.0
  %2773 = vmatpush1.msra.mxu0 0.0
  %2774 = vmatprep.subr.mxu0 0.0
  %2775 = vmatpush1.msra.mxu0 0.0
  %2776 = vmatprep.subr.mxu0 0.0
  %2777 = vmatpush1.msra.mxu0 0.0
  %2778 = vmatprep.subr.mxu0 0.0
  %2779 = vmatpush1.msra.mxu0 0.0
  %2780 = vmatprep.subr.mxu0 0.0
  %2781 = vmatpush1.msra.mxu0 0.0
  %2782 = vmatprep.subr.mxu0 0.0
  %2783 = vmatpush1.msra.mxu0 0.0
  %2784 = vmatprep.subr.mxu0 0.0
  %2785 = vmatpush1.msra.mxu0 0.0
  %2786 = vmatprep.subr.mxu0 0.0
  %2787 = vmatpush1.msra.mxu0 0.0
  %2788 = vmatprep.subr.mxu0 0.0
  %2789 = vmatpush1.msra.mxu0 0.0
  %2790 = vmatprep.subr.mxu0 0.0
  %2791 = vmatpush1.msra.mxu0 0.0
  %2792 = vmatprep.subr.mxu0 0.0
  %2793 = vmatpush1.msra.mxu0 0.0
  %2794 = vmatprep.subr.mxu0 0.0
  %2795 = vmatpush1.msra.mxu0 0.0
  %2796 = vmatprep.subr.mxu0 0.0
  %2797 = vmatpush1.msra.mxu0 0.0
  %2798 = vmatprep.subr.mxu0 0.0
  %2799 = vmatpush1.msra.mxu0 0.0
  %2800 = vmatprep.subr.mxu0 0.0
  %2801 = vmatpush1.msra.mxu0 0.0
  %2802 = vmatprep.subr.mxu0 0.0
  %2803 = vmatpush1.msra.mxu0 0.0
  %2804 = vmatprep.subr.mxu0 0.0
  %2805 = vmatpush1.msra.mxu0 0.0
  %2806 = vmatprep.subr.mxu0 0.0
  %2807 = vmatpush1.msra.mxu0 0.0
  %2808 = vmatprep.subr.mxu0 0.0
  %2809 = vmatpush1.msra.mxu0 0.0
  %2810 = vmatprep.subr.mxu0 0.0
  %2811 = vmatpush1.msra.mxu0 0.0
  %2812 = vmatprep.mubr.f32.mxu0 0.0
  %2813 = vmatmul.mubr.f32.gmra.mrb[0].mxu0 %v2592
  %v2814 = vpop.f32.mrb[0].mxu0
  %v2815 = vadd.f32 %v1108, %v2814
  %v2816 = vpop.f32.mrb[0].mxu0
  %2817 = vdwg.mxu0
  %v2818 = vmul.f32 %v2740, %v2815
  %v2819 = vadd.f32 %v945, %v2818
  %v2820 = vtanh.pop %v2819
  %v2821 = vsub.f32 1.0, %v2747
  %v2822 = vmul.f32 %v2821, %v2820
  %v2823 = vmul.f32 %v2747, %v2590
  %v2824 = vadd.f32 %v2822, %v2823
  %2825 = vst.msk [vmem:[%s11] sm:$0xff] %vm946, %v2824
  // Predicated region
  $region46: #{_forward_impl.1} parent=0 // pred_check
    _
  $region47: #{_forward_impl.1} parent=0 // pred_check_branch
    %2827 = sbr.rel (0) target = $region49
  $region48: #{_forward_impl.1} parent=0 // pred_region
    _
  $region49: #{_forward_impl.1} parent=0 // pred_fallthru
    _
  // Predicated region
  $region50: #{_forward_impl.1} parent=0 // pred_check
    _
  $region51: #{_forward_impl.1} parent=0 // pred_check_branch
    %2829 = sbr.rel (0) target = $region53
  $region52: #{_forward_impl.1} parent=0 // pred_region
    _
  $region53: #{_forward_impl.1} parent=0 // pred_fallthru
    _

</llo_original>
